<compile_context>
chip_gen: v7x
topology: tpu7x:2x2x1
jax: 0.10.0
libtpu: 0.0.40
codegen_flags: <defaults>
</compile_context>

<pallas_src>
import functools
import math

import jax
import jax.numpy as jnp
from jax.experimental import pallas as pl
from jax.experimental.pallas import tpu as pltpu


def _round_up(n, m):
    return ((n + m - 1) // m) * m


def _pad_rows(x, n_pad):
    n = x.shape[0]
    if n_pad == n:
        return x
    pad = [(0, n_pad - n)] + [(0, 0)] * (x.ndim - 1)
    return jnp.pad(x, pad)


# ----------------------------------------------------------------------------
# Kernel 1: fused, bias-free projection  (q1|k1|v1|q2|k2|v2) = x1 @ W_cat
# ----------------------------------------------------------------------------
def _fused_proj_kernel(x_ref, w_ref, o_ref):
    o_ref[...] = jnp.dot(
        x_ref[...], w_ref[...], preferred_element_type=jnp.float32
    ).astype(o_ref.dtype)


def _fused_projection(x_bf16, w_bf16, *, row_tile=128):
    n, d_in = x_bf16.shape
    d_out = w_bf16.shape[1]
    n_pad = _round_up(n, row_tile)
    xp = _pad_rows(x_bf16, n_pad)
    out = pl.pallas_call(
        _fused_proj_kernel,
        out_shape=jax.ShapeDtypeStruct((n_pad, d_out), jnp.bfloat16),
        grid_spec=pltpu.PrefetchScalarGridSpec(
            num_scalar_prefetch=0,
            grid=(n_pad // row_tile,),
            in_specs=[
                pl.BlockSpec((row_tile, d_in), lambda i: (i, 0)),
                pl.BlockSpec((d_in, d_out), lambda i: (0, 0)),
            ],
            out_specs=pl.BlockSpec((row_tile, d_out), lambda i: (i, 0)),
        ),
        compiler_params=pltpu.CompilerParams(
            dimension_semantics=("parallel",),
            vmem_limit_bytes=48 * 1024 * 1024,
        ),
    )(xp, w_bf16)
    return out[:n]


# ----------------------------------------------------------------------------
# Kernel 2: fused attention + outputs + back projection + residual + LayerNorm
# ----------------------------------------------------------------------------
def _ipa_attention_kernel(
    q1_ref, k1_ref, v1_ref, x2_ref, pq_ref, pk_ref, v2_ref, inv_ref, x1_ref,
    msum1_ref, m2_ref, wbia_ref, e1_ref, ev_ref, wback_ref, bback_ref,
    lng_ref, lnb_ref,
    o_ref,
    *, heads, c, f2, vpz, eps,
):
    f32 = jnp.float32
    bf16 = jnp.bfloat16
    A, C, F2, V = heads, c, f2, vpz
    AC, AV = A * C, A * V
    tm = q1_ref.shape[0]
    K = k1_ref.shape[1]

    # ---- attention scores (wl/sqrt(c), wl, -0.1*wc*wl*gamma all pre-folded) ---
    q1 = q1_ref[...]                                         # bf16 [tm, AC]
    k1 = k1_ref[...]                                         # bf16 [tm, K, AC]
    prod = (q1[:, None, :] * k1).reshape(tm * K, AC)         # bf16
    s = jnp.dot(prod, msum1_ref[...], preferred_element_type=f32)            # score1
    s = s + jnp.dot(x2_ref[...].reshape(tm * K, F2), wbia_ref[...],
                    preferred_element_type=f32)                               # bias
    diff = pq_ref[...].astype(f32)[:, None, :] - pk_ref[...].astype(f32)      # [tm, K, 3AQ]
    sq = (diff * diff).reshape(tm * K, diff.shape[-1])
    s = s + jnp.dot(sq, m2_ref[...], preferred_element_type=f32)              # score2 (scaled, negated)

    # ---- softmax over neighbours (f32) ----------------------------------------
    scores = s.reshape(tm, K, A)
    mmax = jnp.max(scores, axis=1, keepdims=True)
    e = jnp.exp(scores - mmax)
    attn = e / jnp.sum(e, axis=1, keepdims=True)             # [tm, K, A] f32
    attn2d = attn.reshape(tm * K, A)

    # ---- output1 = einsum('nka,nkai->nai', attn, value1) ----------------------
    w_c = jnp.dot(attn2d, e1_ref[...], preferred_element_type=f32).reshape(tm, K, AC)
    out1 = jnp.sum(w_c * v1_ref[...].astype(f32), axis=1)    # [tm, AC]

    # ---- output2 = einsum('nka,nki->nai', attn, x2): per-head, lane-dense F2 ---
    x2f = x2_ref[...].astype(f32)                            # [tm, K, F2]
    out2 = jnp.concatenate(
        [jnp.sum(attn[:, :, h:h + 1] * x2f, axis=1) for h in range(A)], axis=-1)  # [tm, A*F2]

    # ---- output_ipa: weighted global value points, then inverse rigid frame ----
    w_v = jnp.dot(attn2d, ev_ref[...], preferred_element_type=f32).reshape(tm, K, 3 * AV)
    og = jnp.sum(w_v * v2_ref[...].astype(f32), axis=1)      # [tm, 3*AV] d-major

    inv = inv_ref[...]                                       # f32 [tm, 12] = R^-1 | t^-1
    loc = []
    for d in range(3):
        acc = inv[:, 9 + d:10 + d]
        for j in range(3):
            acc = acc + inv[:, 3 * d + j:3 * d + j + 1] * og[:, j * AV:(j + 1) * AV]
        loc.append(acc)                                      # [tm, AV]
    normv = jnp.sqrt(loc[0] * loc[0] + loc[1] * loc[1] + loc[2] * loc[2])

    # ---- `back` projection: segmented bf16 matmuls (== concat(...) @ W_back + b)
    wb = wback_ref
    o1_end = AC
    o2_end = o1_end + A * F2
    back = jnp.dot(out1.astype(bf16), wb[0:o1_end, :], preferred_element_type=f32)
    back = back + jnp.dot(out2.astype(bf16), wb[o1_end:o2_end, :],
                          preferred_element_type=f32)
    for d in range(3):
        lo = o2_end + d * AV
        back = back + jnp.dot(loc[d].astype(bf16), wb[lo:lo + AV, :],
                              preferred_element_type=f32)
    n_lo = o2_end + 3 * AV
    back = back + jnp.dot(normv.astype(bf16), wb[n_lo:n_lo + AV, :],
                          preferred_element_type=f32)
    back = back + bback_ref[...]

    # ---- residual + LayerNorm (f32) --------------------------------------------
    h = math.sqrt(2.0) * x1_ref[...] + back
    mu = jnp.mean(h, axis=-1, keepdims=True)
    hc = h - mu
    var = jnp.mean(hc * hc, axis=-1, keepdims=True)
    out = hc * jax.lax.rsqrt(var + eps)
    o_ref[...] = (out * lng_ref[...] + lnb_ref[...]).astype(o_ref.dtype)


# ----------------------------------------------------------------------------
# Shared helpers (assumed Rope / rigid-transform definitions)
# ----------------------------------------------------------------------------
def _rotate_half(x):
    h = x.shape[-1] // 2
    return jnp.concatenate([-x[..., h:], x[..., :h]], axis=-1)


def _apply_rope(x, cos, sin):
    # x: [N, A, C]; cos/sin: [N, C]
    return x * cos[:, None, :] + _rotate_half(x) * sin[:, None, :]


def _onehot(rows_to_head, num_heads, dtype=jnp.float32):
    return (rows_to_head[:, None] == jnp.arange(num_heads)[None, :]).astype(dtype)


# ----------------------------------------------------------------------------
# Wrapper: full InvariantPointAttention forward
# ----------------------------------------------------------------------------
def invariant_point_attention(x1, x2, affines, pos_emb, edge_index, params, config,
                              *, proj_row_tile=128, attn_row_tile=64,
                              vmem_limit_bytes=48 * 1024 * 1024):
    rot, trans = affines                     # [N,3,3], [N,3]
    cos, sin = pos_emb                       # [N, C] each
    A = config["attention_heads"]
    C = config["c"]
    Q = config["query_points"]
    V = config["point_values"]
    ifz = config["in_features"]
    F2 = ifz // 2
    N, K = edge_index.shape
    AC, AQ, AV = A * C, A * Q, A * V
    AQ3, AV3 = 3 * AQ, 3 * AV

    wc = math.sqrt(2.0 / (9.0 * Q))
    wl = math.sqrt(1.0 / 3.0)
    bf16, f32 = jnp.bfloat16, jnp.float32
    hi = jax.lax.Precision.HIGHEST

    # ---- fused projection (one lane-dense bf16 matmul; wl/sqrt(c) folded into q1 cols)
    w_cat = jnp.concatenate(
        [params["wq1"] * (wl / math.sqrt(C)), params["wk1"], params["wv1"],
         params["wq2"], params["wk2"], params["wv2"]], axis=1).astype(bf16)
    proj = _fused_projection(x1.astype(bf16), w_cat, row_tile=proj_row_tile)

    o = 0
    q1 = proj[:, o:o + AC].astype(f32).reshape(N, A, C); o += AC
    k1 = proj[:, o:o + AC].astype(f32).reshape(N, A, C); o += AC
    v1 = proj[:, o:o + AC]; o += AC                      # bf16, flat (a, c) order
    q2 = proj[:, o:o + AQ3].astype(f32).reshape(N, A, Q, 3); o += AQ3
    k2 = proj[:, o:o + AQ3].astype(f32).reshape(N, A, Q, 3); o += AQ3
    v2 = proj[:, o:o + AV3].astype(f32).reshape(N, A, V, 3); o += AV3

    # ---- RoPE (per source node), then neighbour gathers on bf16 data ----------
    q1r = _apply_rope(q1, cos, sin).reshape(N, AC).astype(bf16)
    k1r = _apply_rope(k1, cos, sin).reshape(N, AC).astype(bf16)
    k1g = jnp.take(k1r, edge_index, axis=0)              # [N, K, AC] bf16
    v1g = jnp.take(v1, edge_index, axis=0)               # [N, K, AC] bf16

    # ---- rigid transforms of the point clouds (f32), flattened lane-dense d-major
    def mul_vecs(r, t, vecs):                            # r [N,3,3], t [N,3]
        extra = vecs.ndim - 2
        rb = r.reshape((N,) + (1,) * extra + (3, 3))
        tb = t.reshape((N,) + (1,) * extra + (3,))
        return jnp.einsum('...ij,...j->...i', rb, vecs, precision=hi) + tb

    ptsq = mul_vecs(rot, trans, q2)                                      # [N, A, Q, 3]
    ptsq = ptsq.transpose(0, 3, 1, 2).reshape(N, AQ3).astype(bf16)       # [N, 144] d-major

    k2g = jnp.take(k2, edge_index, axis=0)                               # [N, K, A, Q, 3]
    ptsk = mul_vecs(rot, trans, k2g)
    ptsk = ptsk.transpose(0, 1, 4, 2, 3).reshape(N, K, AQ3).astype(bf16)

    v2g = jnp.take(mul_vecs(rot, trans, v2), edge_index, axis=0)         # [N, K, A, V, 3]
    v2g = v2g.transpose(0, 1, 4, 2, 3).reshape(N, K, AV3).astype(bf16)

    # inverse affine packed as [R^-1 (row major) | t^-1]  -> [N, 12]
    rinv = jnp.swapaxes(rot, 1, 2)
    tinv = -jnp.einsum('nij,nj->ni', rinv, trans, precision=hi)
    invaff = jnp.concatenate([rinv.reshape(N, 9), tinv], axis=1).astype(f32)

    # ---- constant head-sum / head-expand matrices and folded weights (hoisted) -
    msum1 = _onehot(jnp.arange(AC) // C, A, bf16)                        # [AC, A]
    m2 = _onehot((jnp.arange(AQ3) % AQ) // Q, A, f32)
    m2 = m2 * (-(0.1 * wc * wl)) * params["gamma"].astype(f32)           # [AQ3, A]
    wbia = (wl * params["w_bia"]).astype(bf16)                           # [F2, A]
    e1 = _onehot(jnp.arange(AC) // C, A, f32).T                          # [A, AC]
    ev = _onehot((jnp.arange(AV3) % AV) // V, A, f32).T                  # [A, AV3]

    # `back` weight: permute output_ipa rows from canonical (a, v, d) to d-major (d, a, v)
    base = AC + A * F2
    av = jnp.arange(AV)
    ipa_perm = jnp.concatenate([av * 3 + d for d in range(3)])
    rows = jnp.concatenate([jnp.arange(base), base + ipa_perm,
                            jnp.arange(base + 3 * AV, base + 4 * AV)])
    wback = jnp.take(params["w_back"], rows, axis=0).astype(bf16)        # [2496, ifz]
    d_cat = base + 4 * AV

    # ---- pad node rows to the row tile and run the fused attention kernel ------
    tm = attn_row_tile
    n_pad = _round_up(N, tm)
    pad = lambda a: _pad_rows(a, n_pad)

    kernel = functools.partial(_ipa_attention_kernel, heads=A, c=C, f2=F2,
                               vpz=V, eps=1e-5)

    row = lambda i: (i, 0)
    row3 = lambda i: (i, 0, 0)
    full2 = lambda i: (0, 0)

    in_specs = [
        pl.BlockSpec((tm, AC), row),                   # q1 (RoPE'd, pre-scaled)     bf16
        pl.BlockSpec((tm, K, AC), row3),               # k1 gathered (RoPE'd)        bf16
        pl.BlockSpec((tm, K, AC), row3),               # v1 gathered                 bf16
        pl.BlockSpec((tm, K, F2), row3),               # x2                          bf16
        pl.BlockSpec((tm, AQ3), row),                  # query points (d-major)      bf16
        pl.BlockSpec((tm, K, AQ3), row3),              # key points (d-major)        bf16
        pl.BlockSpec((tm, K, AV3), row3),              # value points (d-major)      bf16
        pl.BlockSpec((tm, 12), row),                   # inverse affine              f32
        pl.BlockSpec((tm, ifz), row),                  # x1 (residual)               f32
        pl.BlockSpec((AC, A), full2),                  # score1 head-sum             bf16
        pl.BlockSpec((AQ3, A), full2),                 # score2 head-sum (scaled)    f32
        pl.BlockSpec((F2, A), full2),                  # bias weight (wl folded)     bf16
        pl.BlockSpec((A, AC), full2),                  # out1 head-expand            f32
        pl.BlockSpec((A, AV3), full2),                 # point head-expand           f32
        pl.BlockSpec((d_cat, ifz), full2),             # back weight (permuted rows) bf16
        pl.BlockSpec((1, ifz), full2),                 # back bias                   f32
        pl.BlockSpec((1, ifz), full2),                 # LayerNorm weight            f32
        pl.BlockSpec((1, ifz), full2),                 # LayerNorm bias              f32
    ]

    out = pl.pallas_call(
        kernel,
        out_shape=jax.ShapeDtypeStruct((n_pad, ifz), x1.dtype),
        grid_spec=pltpu.PrefetchScalarGridSpec(
            num_scalar_prefetch=0,
            grid=(n_pad // tm,),
            in_specs=in_specs,
            out_specs=pl.BlockSpec((tm, ifz), row),
        ),
        compiler_params=pltpu.CompilerParams(
            dimension_semantics=("parallel",),
            vmem_limit_bytes=vmem_limit_bytes,
        ),
    )(
        pad(q1r), pad(k1g), pad(v1g), pad(x2.astype(bf16)),
        pad(ptsq), pad(ptsk), pad(v2g), pad(invaff), pad(x1.astype(f32)),
        msum1, m2, wbia, e1, ev, wback,
        params["b_back"].astype(f32), params["ln_g"].astype(f32),
        params["ln_b"].astype(f32),
    )
    return out[:N]


# ----------------------------------------------------------------------------
# Pure-JAX reference (mirrors the PyTorch forward line by line, f32 highest)
# ----------------------------------------------------------------------------
def reference_ipa(x1, x2, affines, pos_emb, edge_index, params, config):
    rot, trans = affines
    cos, sin = pos_emb
    A = config["attention_heads"]
    C = config["c"]
    Q = config["query_points"]
    V = config["point_values"]
    N, K = edge_index.shape
    hi = jax.lax.Precision.HIGHEST

    def lin(x, w):
        return jnp.einsum('ni,io->no', x, w, precision=hi)

    q1 = lin(x1, params["wq1"]).reshape(N, A, C)
    k1 = lin(x1, params["wk1"]).reshape(N, A, C)
    v1 = lin(x1, params["wv1"]).reshape(N, A, C)
    q2 = lin(x1, params["wq2"]).reshape(N, 1, A, Q, 3)
    k2 = lin(x1, params["wk2"]).reshape(N, A, Q, 3)
    v2 = lin(x1, params["wv2"]).reshape(N, A, V, 3)

    key1 = k1[edge_index]                                          # [N, K, A, C]
    query1 = q1 * cos[:, None, :] + _rotate_half(q1) * sin[:, None, :]
    cos_e, sin_e = cos[edge_index], sin[edge_index]
    key1 = key1 * cos_e[:, :, None, :] + _rotate_half(key1) * sin_e[:, :, None, :]

    value1 = v1[edge_index]                                        # [N, K, A, C]
    key2 = k2[edge_index]                                          # [N, K, A, Q, 3]
    bias = jnp.einsum('nkf,fa->nka', x2, params["w_bia"], precision=hi)

    def mul_vecs(r, t, vecs):
        extra = vecs.ndim - 2
        rb = r.reshape((N,) + (1,) * extra + (3, 3))
        tb = t.reshape((N,) + (1,) * extra + (3,))
        return jnp.einsum('...ij,...j->...i', rb, vecs, precision=hi) + tb

    scale = math.sqrt(C)
    wc = math.sqrt(2.0 / (9.0 * Q))
    wl = math.sqrt(1.0 / 3.0)

    score1 = jnp.einsum('nai,nkai->nka', query1, key1, precision=hi) / scale + bias
    pq = mul_vecs(rot, trans, q2)
    pk = mul_vecs(rot, trans, key2)
    score2 = -jnp.sum(jnp.square(pq - pk), axis=-1).sum(axis=-1)   # [N, K, A]
    gamma = params["gamma"].reshape(1, 1, A)
    scores = wl * (score1 + 0.1 * wc * gamma * score2)
    attn = jax.nn.softmax(scores, axis=1)

    out1 = jnp.einsum('nka,nkai->nai', attn, value1, precision=hi)
    out2 = jnp.einsum('nka,nki->nai', attn, x2, precision=hi)
    v2g = mul_vecs(rot, trans, v2)[edge_index]                     # [N, K, A, V, 3]
    out_ipa = jnp.einsum('nka,nkavd->navd', attn, v2g, precision=hi)
    rinv = jnp.swapaxes(rot, 1, 2)
    tinv = -jnp.einsum('nij,nj->ni', rinv, trans, precision=hi)
    out_ipa = mul_vecs(rinv, tinv, out_ipa)
    out_norm = jnp.linalg.norm(out_ipa, axis=-1)

    cat = jnp.concatenate([out1.reshape(N, -1), out2.reshape(N, -1),
                           out_ipa.reshape(N, -1), out_norm.reshape(N, -1)], axis=1)
    back = jnp.dot(cat, params["w_back"], precision=hi) + params["b_back"]
    h = math.sqrt(2.0) * x1 + back
    mu = h.mean(-1, keepdims=True)
    var = ((h - mu) ** 2).mean(-1, keepdims=True)
    return (h - mu) * jax.lax.rsqrt(var + 1e-5) * params["ln_g"] + params["ln_b"]


# ----------------------------------------------------------------------------
# Synthetic parameters / inputs
# ----------------------------------------------------------------------------
def init_params(key, config, dtype=jnp.float32):
    A = config["attention_heads"]
    C = config["c"]
    Q = config["query_points"]
    V = config["point_values"]
    ifz = config["in_features"]
    F2 = ifz // 2
    d_back_in = A * C + A * F2 + A * V * 4
    ks = jax.random.split(key, 9)

    def w(k, fin, fout):
        bound = 1.0 / math.sqrt(fin)
        return jax.random.uniform(k, (fin, fout), dtype, -bound, bound)

    return dict(
        wq1=w(ks[0], ifz, A * C),
        wk1=w(ks[1], ifz, A * C),
        wv1=w(ks[2], ifz, A * C),
        wq2=w(ks[3], ifz, A * Q * 3),
        wk2=w(ks[4], ifz, A * Q * 3),
        wv2=w(ks[5], ifz, A * V * 3),
        w_bia=w(ks[6], F2, A),
        w_back=w(ks[7], d_back_in, ifz),
        b_back=jax.random.uniform(ks[8], (1, ifz), dtype,
                                  -1.0 / math.sqrt(d_back_in), 1.0 / math.sqrt(d_back_in)),
        gamma=1.1 * jnp.ones((1, A), dtype),
        ln_g=jnp.ones((1, ifz), dtype),
        ln_b=jnp.zeros((1, ifz), dtype),
    )


def _random_rotations(key, n):
    q = jax.random.normal(key, (n, 4), jnp.float32)
    q = q / jnp.linalg.norm(q, axis=-1, keepdims=True)
    w, x, y, z = q[:, 0], q[:, 1], q[:, 2], q[:, 3]
    return jnp.stack([
        jnp.stack([1 - 2 * (y * y + z * z), 2 * (x * y - w * z), 2 * (x * z + w * y)], -1),
        jnp.stack([2 * (x * y + w * z), 1 - 2 * (x * x + z * z), 2 * (y * z - w * x)], -1),
        jnp.stack([2 * (x * z - w * y), 2 * (y * z + w * x), 1 - 2 * (x * x + y * y)], -1),
    ], axis=-2)


if __name__ == "__main__":
    config = dict(in_features=256, attention_heads=12, c=48,
                  query_points=4, point_values=8)
    N, K = 256, 16
    C = config["c"]

    key = jax.random.PRNGKey(0)
    k_x1, k_x2, k_e, k_q, k_t, k_p = jax.random.split(key, 6)

    x1 = jax.random.normal(k_x1, (N, config["in_features"]), jnp.float32)
    x2 = jax.random.normal(k_x2, (N, K, config["in_features"] // 2), jnp.float32)
    edge_index = jax.random.randint(k_e, (N, K), 0, N, dtype=jnp.int32)
    rot = _random_rotations(k_q, N)
    trans = jax.random.normal(k_t, (N, 3), jnp.float32)

    # rotary position-embedding table (one angle per channel, halves paired)
    pos = jnp.arange(N, dtype=jnp.float32)
    half = C // 2
    inv_freq = 10000.0 ** (-jnp.arange(half, dtype=jnp.float32) / half)
    ang = pos[:, None] * inv_freq[None, :]
    ang = jnp.concatenate([ang, ang], axis=-1)                     # [N, C]
    pos_emb = (jnp.cos(ang), jnp.sin(ang))

    params = init_params(k_p, config)

    out = invariant_point_attention(x1, x2, (rot, trans), pos_emb, edge_index,
                                    params, config,
                                    proj_row_tile=128, attn_row_tile=64)
    out = jax.block_until_ready(out)

    ref = reference_ipa(x1, x2, (rot, trans), pos_emb, edge_index, params, config)
    assert out.shape == (N, config["in_features"])
    max_err = float(jnp.max(jnp.abs(out - ref)))
    assert jnp.allclose(out, ref, atol=4e-2, rtol=4e-2), (
        f"mismatch vs JAX reference (max abs err {max_err})")

    print("KERNEL_OK")
</pallas_src>

<mosaic_0001>
module attributes {stable_mosaic.version = 11 : i64} {
  func.func @_fused_proj_kernel(%arg0: i32, %arg1: memref<128x256xbf16, #tpu.memory_space<vmem>>, %arg2: memref<256x2304xbf16, #tpu.memory_space<vmem>>, %arg3: memref<128x2304xbf16, #tpu.memory_space<vmem>>) attributes {dimension_semantics = [#tpu.dimension_semantics<parallel>], iteration_bounds = array<i64: 2>, scalar_prefetch = 0 : i64, scratch_operands = 0 : i64, tpu.core_type = #tpu.core_type<tc>, window_params = [{transform_indices = @transform_0, window_bounds = array<i64: 128, 256>}, {pipeline_mode = #tpu.pipeline_mode<synchronous>, transform_indices = @transform_1, window_bounds = array<i64: 256, 2304>}, {transform_indices = @transform_2, window_bounds = array<i64: 128, 2304>}]} {
    %c0 = arith.constant 0 : index
    %c0_0 = arith.constant 0 : index
    %0 = vector.load %arg1[%c0, %c0_0] : memref<128x256xbf16, #tpu.memory_space<vmem>>, vector<128x256xbf16>
    %c0_1 = arith.constant 0 : index
    %c0_2 = arith.constant 0 : index
    %1 = vector.load %arg2[%c0_1, %c0_2] : memref<256x2304xbf16, #tpu.memory_space<vmem>>, vector<256x2304xbf16>
    %cst = arith.constant dense<0.000000e+00> : vector<128x2304xf32>
    %2 = tpu.matmul %0, %1, %cst {dimension_numbers = #tpu.dot_dimension_numbers<[1], [0], [0], [1], [0, 0, 1, 1], [], []>} : vector<128x256xbf16>, vector<256x2304xbf16>, vector<128x2304xf32> -> vector<128x2304xf32>
    %3 = arith.truncf %2 : vector<128x2304xf32> to vector<128x2304xbf16>
    %c0_3 = arith.constant 0 : index
    %c0_4 = arith.constant 0 : index
    %4 = vector.load %arg3[%c0_3, %c0_4] : memref<128x2304xbf16, #tpu.memory_space<vmem>>, vector<128x2304xbf16>
    tpu.vector_store %arg3[%c0_3, %c0_4], %3 {strides = array<i32>} : memref<128x2304xbf16, #tpu.memory_space<vmem>>, vector<128x2304xbf16>,
    return
  }
  func.func @transform_0(%arg0: i32) -> (i32, i32) {
    %c0_i32 = arith.constant 0 : i32
    %c0_i32_0 = arith.constant 0 : i32
    return %arg0, %c0_i32 : i32, i32
  }
  func.func @transform_1(%arg0: i32) -> (i32, i32) {
    %c0_i32 = arith.constant 0 : i32
    %c0_i32_0 = arith.constant 0 : i32
    %c0_i32_1 = arith.constant 0 : i32
    return %c0_i32, %c0_i32_0 : i32, i32
  }
  func.func @transform_2(%arg0: i32) -> (i32, i32) {
    %c0_i32 = arith.constant 0 : i32
    %c0_i32_0 = arith.constant 0 : i32
    return %arg0, %c0_i32 : i32, i32
  }
}

</mosaic_0001>

<llo_original>
// kernel: tpu_custom_call.1
$region0: #{tpu_custom_call.1}
  #allocation0 [shape = 'u32[]', space=smem, size = 0x4, offset = 0x4, fixed_abs, tag = 'smem constant byte address 0x4 - core index']
  #allocation1 [shape = 'u32[144,128]{1,0:T(1,128)}', space=vmem, size = 0x12000, scoped, tag = 'internal scratch']
  %s0 = inlined_call_operand.hbm [shape: bf16[256,256], index: 0, kind: input, shape index: {}]
  %s1 = inlined_call_operand.hbm [shape: bf16[256,2304], index: 1, kind: input, shape index: {}]
  %s2 = inlined_call_operand.hbm [shape: bf16[256,2304], index: 2, kind: output, shape index: {}]
  %s3 = sld [smem:[#allocation0]]
  $region49: #{tpu_custom_call.1} parent=0
    _
  %s5 = ssub.s32 1, %s3
  %s6 = scalar_select 0, %s5, %s3
  $region1: #{tpu_custom_call.1} parent=0
    #allocation2 [shape = 'u8[131072]{0}', space=vmem, size = 0x20000, scoped, tag = 'input window, operand 0']
    #allocation3 [shape = 's32[2]{0}', space=sflag, size = 0x8, scoped, tag = 'scoped memory for tpu_custom_call.1']
    #allocation4 [shape = 's32[2]{0}', space=sflag, size = 0x8, scoped, tag = 'scoped memory for tpu_custom_call.1']
    #allocation5 [shape = 'u8[1179648]{0}', space=vmem, size = 0x120000, scoped, tag = 'input window, operand 1, single buffered']
    #allocation6 [shape = 's32[1]{0}', space=sflag, size = 0x4, scoped, tag = 'scoped memory for tpu_custom_call.1']
    #allocation7 [shape = 'u8[1179648]{0}', space=vmem, size = 0x120000, scoped, tag = 'output window, operand 0']
    %7 = vsyncpa [#allocation3], 0
    %s8 = scalar_lea.sflag [#allocation3], 1
    %9 = vsyncpa %s8, 0
    %10 = vsyncpa [#allocation6], 0
    %11 = vsyncpa [#allocation4], 0
    %s12 = scalar_lea.sflag [#allocation4], 1
    %13 = vsyncpa %s12, 0
    loop: start=0, step=1, limit=4
    $region2: #{tpu_custom_call.1} parent=1 // loop_pre_header
      _
    $region3: #{tpu_custom_call.1} parent=1 // loop_header
      %s15 = sphi 0, %s19
      %p16 = scmp.ge.s32.totalorder %s15, 4
      %s25 = sphi 0, %s27
      %s28 = sphi 0, %s25
      %s29 = sphi 0, %s28
      %s45 = sphi 0, %s29
      %s49 = sphi 0, %s49
      %s51 = sphi 0, %s49
      %s52 = sphi 0, %s51
      %s66 = sphi 0, %s52
      %s72 = sphi 0, %s74
      %s75 = sphi 0, %s72
      %s76 = sphi 0, %s75
      %s92 = sphi 0, %s76
    $region4: #{tpu_custom_call.1} parent=1 // loop_header_branch
      %18 = sbr.rel (%p16) target = $region8
    $region5: #{tpu_custom_call.1} parent=1 // loop_body
      %s20 = ssub.s32 %s15, 1
      %s21 = ssub.s32 %s15, 2
      %s22 = sadd.s32 %s15, 1
      %s23 = ssub.s32 %s15, %s22
      %p24 = scmp.eq.s32.totalorder %s23, 0
      %s26 = sadd.s32 %s25, 1
      %s27 = scalar_select %p24, %s25, %s26
      %p30 = pneg %p24
      %p31 = scmp.eq.s32.totalorder %s15, 1
      %p32 = por %p30, %p31
      %p33 = scmp.ne.s32.totalorder %s25, %s28
      %p34 = scmp.eq.s32.totalorder %s15, 0
      %p35 = por %p33, %p34
      %p36 = scmp.ne.s32.totalorder %s25, %s28
      %p37 = scmp.eq.s32.totalorder %s20, 1
      %p38 = por %p36, %p37
      %p39 = scmp.ne.s32.totalorder %s28, %s29
      %p40 = scmp.eq.s32.totalorder %s20, 0
      %p41 = por %p39, %p40
      %p42 = scmp.ne.s32.totalorder %s28, %s29
      %p43 = scmp.eq.s32.totalorder %s21, 1
      %p44 = por %p42, %p43
      %p46 = scmp.ne.s32.totalorder %s29, %s45
      %p47 = scmp.eq.s32.totalorder %s21, 0
      %p48 = por %p46, %p47
      %s50 = sadd.s32 %s49, 1
      %p53 = scmp.eq.s32.totalorder %s15, 1
      %p54 = scmp.ne.s32.totalorder %s49, %s51
      %p55 = scmp.eq.s32.totalorder %s15, 0
      %p56 = por %p54, %p55
      %p57 = scmp.ne.s32.totalorder %s49, %s51
      %p58 = scmp.eq.s32.totalorder %s20, 1
      %p59 = por %p57, %p58
      %p60 = scmp.ne.s32.totalorder %s51, %s52
      %p61 = scmp.eq.s32.totalorder %s20, 0
      %p62 = por %p60, %p61
      %p63 = scmp.ne.s32.totalorder %s51, %s52
      %p64 = scmp.eq.s32.totalorder %s21, 1
      %p65 = por %p63, %p64
      %p67 = scmp.ne.s32.totalorder %s52, %s66
      %p68 = scmp.eq.s32.totalorder %s21, 0
      %p69 = por %p67, %p68
      %s70 = ssub.s32 %s15, %s22
      %p71 = scmp.eq.s32.totalorder %s70, 0
      %s73 = sadd.s32 %s72, 1
      %s74 = scalar_select %p71, %s72, %s73
      %p77 = pneg %p71
      %p78 = scmp.eq.s32.totalorder %s15, 1
      %p79 = por %p77, %p78
      %p80 = scmp.ne.s32.totalorder %s72, %s75
      %p81 = scmp.eq.s32.totalorder %s15, 0
      %p82 = por %p80, %p81
      %p83 = scmp.ne.s32.totalorder %s72, %s75
      %p84 = scmp.eq.s32.totalorder %s20, 1
      %p85 = por %p83, %p84
      %p86 = scmp.ne.s32.totalorder %s75, %s76
      %p87 = scmp.eq.s32.totalorder %s20, 0
      %p88 = por %p86, %p87
      %p89 = scmp.ne.s32.totalorder %s75, %s76
      %p90 = scmp.eq.s32.totalorder %s21, 1
      %p91 = por %p89, %p90
      %p93 = scmp.ne.s32.totalorder %s76, %s92
      %p94 = scmp.eq.s32.totalorder %s21, 0
      %p95 = por %p93, %p94
      %p96 = scmp.le.s32.totalorder 1, %s15
      %p97 = scmp.lt.s32.totalorder %s15, 3
      %p98 = pnand %p96, %p97
      %p99 = pneg %p98
      // Predicated region
      $region9: #{tpu_custom_call.1} parent=5 // pred_check
        _
      $region10: #{tpu_custom_call.1} parent=5 // pred_check_branch
        %101 = sbr.rel (%p98) target = $region12
      $region11: #{tpu_custom_call.1} parent=5 // pred_region
        %s102 = ssub.s32 %s15, 1
        // Predicated region
        $region13: #{tpu_custom_call.1} parent=11 // pred_check
          %p103 = pneg %p62
        $region14: #{tpu_custom_call.1} parent=11 // pred_check_branch
          %105 = sbr.rel (%p103) target = $region16
        $region15: #{tpu_custom_call.1} parent=11 // pred_region
          %s107 = ssub.s32 36864, 36864
          %108 = vsyncadd [#allocation6], %s107
          %s109 = sshll.u32 [#allocation5], 4
          %s110 = int_to_ptr.vmem [resolvable:$true] %s109
          %115 = dma.hbm_to_vmem [thread:$0]  %s1, 36864, %s110, [#allocation6], 1152, 1152, 72
        $region16: #{tpu_custom_call.1} parent=11 // pred_fallthru
          _
      $region12: #{tpu_custom_call.1} parent=5 // pred_fallthru
        _
      %p116 = scmp.lt.s32.totalorder %s15, 2
      // Predicated region
      $region17: #{tpu_custom_call.1} parent=5 // pred_check
        %p117 = pneg %p116
      $region18: #{tpu_custom_call.1} parent=5 // pred_check_branch
        %119 = sbr.rel (%p117) target = $region20
      $region19: #{tpu_custom_call.1} parent=5 // pred_region
        // Predicated region
        $region21: #{tpu_custom_call.1} parent=19 // pred_check
          %p120 = pneg %p35
        $region22: #{tpu_custom_call.1} parent=19 // pred_check_branch
          %122 = sbr.rel (%p120) target = $region24
        $region23: #{tpu_custom_call.1} parent=19 // pred_region
          %s123 = sand.u32 %s25, 1
          %s124 = scalar_lea.sflag [#allocation3], %s123
          %s125 = sand.u32 %s25, 1
          %s126 = smul.addr %s125, 128
          %s127 = scalar_lea.vmem [#allocation2], %s126
          %s128 = smul.u32 16, %s15
          %s130 = ssub.s32 2048, 2048
          %131 = vsyncadd %s124, %s130
          %s132 = smul.addr %s128, 2
          %s133 = smul.addr %s132, 64
          %s134 = scalar_lea.hbm %s0, %s133
          %s135 = sshll.u32 %s127, 4
          %s136 = int_to_ptr.vmem [resolvable:$true] %s135
          %141 = dma.hbm_to_vmem [thread:$0]  %s134, 2048, %s136, %s124, 128, 128, 8
        $region24: #{tpu_custom_call.1} parent=19 // pred_fallthru
          _
      $region20: #{tpu_custom_call.1} parent=5 // pred_fallthru
        _
      %p142 = scmp.le.s32.totalorder 1, %s15
      %p143 = scmp.lt.s32.totalorder %s15, 3
      %p144 = pnand %p142, %p143
      %p145 = pneg %p144
      // Predicated region
      $region25: #{tpu_custom_call.1} parent=5 // pred_check
        _
      $region26: #{tpu_custom_call.1} parent=5 // pred_check_branch
        %147 = sbr.rel (%p144) target = $region28
      $region27: #{tpu_custom_call.1} parent=5 // pred_region
        %s148 = ssub.s32 %s15, 1
        %s149 = sand.u32 %s28, 1
        %s150 = scalar_lea.sflag [#allocation3], %s149
        %s151 = sand.u32 %s28, 1
        %s152 = smul.addr %s151, 128
        %s153 = scalar_lea.vmem [#allocation2], %s152
        // Predicated region
        $region29: #{tpu_custom_call.1} parent=27 // pred_check
          %p154 = pneg %p41
        $region30: #{tpu_custom_call.1} parent=27 // pred_check_branch
          %156 = sbr.rel (%p154) target = $region32
        $region31: #{tpu_custom_call.1} parent=27 // pred_region
          %157 = dma.done %s150, 2048
        $region32: #{tpu_custom_call.1} parent=27 // pred_fallthru
          _
        // Predicated region
        $region33: #{tpu_custom_call.1} parent=27 // pred_check
          %p158 = pneg %p62
        $region34: #{tpu_custom_call.1} parent=27 // pred_check_branch
          %160 = sbr.rel (%p158) target = $region36
        $region35: #{tpu_custom_call.1} parent=27 // pred_region
          %161 = dma.done [#allocation6], 36864
        $region36: #{tpu_custom_call.1} parent=27 // pred_fallthru
          _
        %s162 = sand.u32 %s28, 1
        %s163 = scalar_lea.sflag [#allocation3], %s162
        %s164 = sand.u32 %s28, 1
        %s165 = smul.addr %s164, 128
        %s166 = scalar_lea.vmem [#allocation2], %s165
        %p167 = pneg %p41
        %p168 = pneg %p38
        %p169 = pneg %p62
        %p170 = pneg %p59
        %p171 = pneg %p88
        %p172 = pneg %p85
        %s173 = sand.u32 %s75, 1
        %s174 = scalar_lea.sflag [#allocation4], %s173
        %s175 = sand.u32 %s75, 1
        %s176 = smul.addr %s175, 1152
        %s177 = scalar_lea.vmem [#allocation7], %s176
        %s178 = smul.u32 16, %s20
        %s179 = smul.u32 16, %s20
        %v180 = vld [vmem:[%s153] sm:$0xff]
        %v181 = vld [vmem:[%s153 + $0x8] sm:$0xff]
        %v182 = vld [vmem:[%s153 + $0x10] sm:$0xff]
        %v183 = vld [vmem:[%s153 + $0x18] sm:$0xff]
        %v184 = vld [vmem:[%s153 + $0x20] sm:$0xff]
        %v185 = vld [vmem:[%s153 + $0x28] sm:$0xff]
        %v186 = vld [vmem:[%s153 + $0x30] sm:$0xff]
        %v187 = vld [vmem:[%s153 + $0x38] sm:$0xff]
        %v188 = vld [vmem:[%s153 + $0x40] sm:$0xff]
        %v189 = vld [vmem:[%s153 + $0x48] sm:$0xff]
        %v190 = vld [vmem:[%s153 + $0x50] sm:$0xff]
        %v191 = vld [vmem:[%s153 + $0x58] sm:$0xff]
        %v192 = vld [vmem:[%s153 + $0x60] sm:$0xff]
        %v193 = vld [vmem:[%s153 + $0x68] sm:$0xff]
        %v194 = vld [vmem:[%s153 + $0x70] sm:$0xff]
        %v195 = vld [vmem:[%s153 + $0x78] sm:$0xff]
        %v196 = vld [vmem:[#allocation5] sm:$0xff]
        %v197 = vld [vmem:[#allocation5 + $0x8] sm:$0xff]
        %v198 = vld [vmem:[#allocation5 + $0x10] sm:$0xff]
        %v199 = vld [vmem:[#allocation5 + $0x18] sm:$0xff]
        %v200 = vld [vmem:[#allocation5 + $0x20] sm:$0xff]
        %v201 = vld [vmem:[#allocation5 + $0x28] sm:$0xff]
        %v202 = vld [vmem:[#allocation5 + $0x30] sm:$0xff]
        %v203 = vld [vmem:[#allocation5 + $0x38] sm:$0xff]
        %v204 = vld [vmem:[#allocation5 + $0x40] sm:$0xff]
        %v205 = vld [vmem:[#allocation5 + $0x48] sm:$0xff]
        %v206 = vld [vmem:[#allocation5 + $0x50] sm:$0xff]
        %v207 = vld [vmem:[#allocation5 + $0x58] sm:$0xff]
        %v208 = vld [vmem:[#allocation5 + $0x60] sm:$0xff]
        %v209 = vld [vmem:[#allocation5 + $0x68] sm:$0xff]
        %v210 = vld [vmem:[#allocation5 + $0x70] sm:$0xff]
        %v211 = vld [vmem:[#allocation5 + $0x78] sm:$0xff]
        %v212 = vld [vmem:[#allocation5 + $0x80] sm:$0xff]
        %v213 = vld [vmem:[#allocation5 + $0x88] sm:$0xff]
        %v214 = vld [vmem:[#allocation5 + $0x90] sm:$0xff]
        %v215 = vld [vmem:[#allocation5 + $0x98] sm:$0xff]
        %v216 = vld [vmem:[#allocation5 + $0xa0] sm:$0xff]
        %v217 = vld [vmem:[#allocation5 + $0xa8] sm:$0xff]
        %v218 = vld [vmem:[#allocation5 + $0xb0] sm:$0xff]
        %v219 = vld [vmem:[#allocation5 + $0xb8] sm:$0xff]
        %v220 = vld [vmem:[#allocation5 + $0xc0] sm:$0xff]
        %v221 = vld [vmem:[#allocation5 + $0xc8] sm:$0xff]
        %v222 = vld [vmem:[#allocation5 + $0xd0] sm:$0xff]
        %v223 = vld [vmem:[#allocation5 + $0xd8] sm:$0xff]
        %v224 = vld [vmem:[#allocation5 + $0xe0] sm:$0xff]
        %v225 = vld [vmem:[#allocation5 + $0xe8] sm:$0xff]
        %v226 = vld [vmem:[#allocation5 + $0xf0] sm:$0xff]
        %v227 = vld [vmem:[#allocation5 + $0xf8] sm:$0xff]
        %v228 = vld [vmem:[#allocation5 + $0x100] sm:$0xff]
        %v229 = vld [vmem:[#allocation5 + $0x108] sm:$0xff]
        %v230 = vld [vmem:[#allocation5 + $0x110] sm:$0xff]
        %v231 = vld [vmem:[#allocation5 + $0x118] sm:$0xff]
        %v232 = vld [vmem:[#allocation5 + $0x120] sm:$0xff]
        %v233 = vld [vmem:[#allocation5 + $0x128] sm:$0xff]
        %v234 = vld [vmem:[#allocation5 + $0x130] sm:$0xff]
        %v235 = vld [vmem:[#allocation5 + $0x138] sm:$0xff]
        %v236 = vld [vmem:[#allocation5 + $0x140] sm:$0xff]
        %v237 = vld [vmem:[#allocation5 + $0x148] sm:$0xff]
        %v238 = vld [vmem:[#allocation5 + $0x150] sm:$0xff]
        %v239 = vld [vmem:[#allocation5 + $0x158] sm:$0xff]
        %v240 = vld [vmem:[#allocation5 + $0x160] sm:$0xff]
        %v241 = vld [vmem:[#allocation5 + $0x168] sm:$0xff]
        %v242 = vld [vmem:[#allocation5 + $0x170] sm:$0xff]
        %v243 = vld [vmem:[#allocation5 + $0x178] sm:$0xff]
        %v244 = vld [vmem:[#allocation5 + $0x180] sm:$0xff]
        %v245 = vld [vmem:[#allocation5 + $0x188] sm:$0xff]
        %v246 = vld [vmem:[#allocation5 + $0x190] sm:$0xff]
        %v247 = vld [vmem:[#allocation5 + $0x198] sm:$0xff]
        %v248 = vld [vmem:[#allocation5 + $0x1a0] sm:$0xff]
        %v249 = vld [vmem:[#allocation5 + $0x1a8] sm:$0xff]
        %v250 = vld [vmem:[#allocation5 + $0x1b0] sm:$0xff]
        %v251 = vld [vmem:[#allocation5 + $0x1b8] sm:$0xff]
        %v252 = vld [vmem:[#allocation5 + $0x1c0] sm:$0xff]
        %v253 = vld [vmem:[#allocation5 + $0x1c8] sm:$0xff]
        %v254 = vld [vmem:[#allocation5 + $0x1d0] sm:$0xff]
        %v255 = vld [vmem:[#allocation5 + $0x1d8] sm:$0xff]
        %v256 = vld [vmem:[#allocation5 + $0x1e0] sm:$0xff]
        %v257 = vld [vmem:[#allocation5 + $0x1e8] sm:$0xff]
        %v258 = vld [vmem:[#allocation5 + $0x1f0] sm:$0xff]
        %v259 = vld [vmem:[#allocation5 + $0x1f8] sm:$0xff]
        %v260 = vld [vmem:[#allocation5 + $0x200] sm:$0xff]
        %v261 = vld [vmem:[#allocation5 + $0x208] sm:$0xff]
        %v262 = vld [vmem:[#allocation5 + $0x210] sm:$0xff]
        %v263 = vld [vmem:[#allocation5 + $0x218] sm:$0xff]
        %v264 = vld [vmem:[#allocation5 + $0x220] sm:$0xff]
        %v265 = vld [vmem:[#allocation5 + $0x228] sm:$0xff]
        %v266 = vld [vmem:[#allocation5 + $0x230] sm:$0xff]
        %v267 = vld [vmem:[#allocation5 + $0x238] sm:$0xff]
        %v268 = vld [vmem:[#allocation5 + $0x240] sm:$0xff]
        %v269 = vld [vmem:[#allocation5 + $0x248] sm:$0xff]
        %v270 = vld [vmem:[#allocation5 + $0x250] sm:$0xff]
        %v271 = vld [vmem:[#allocation5 + $0x258] sm:$0xff]
        %v272 = vld [vmem:[#allocation5 + $0x260] sm:$0xff]
        %v273 = vld [vmem:[#allocation5 + $0x268] sm:$0xff]
        %v274 = vld [vmem:[#allocation5 + $0x270] sm:$0xff]
        %v275 = vld [vmem:[#allocation5 + $0x278] sm:$0xff]
        %v276 = vld [vmem:[#allocation5 + $0x280] sm:$0xff]
        %v277 = vld [vmem:[#allocation5 + $0x288] sm:$0xff]
        %v278 = vld [vmem:[#allocation5 + $0x290] sm:$0xff]
        %v279 = vld [vmem:[#allocation5 + $0x298] sm:$0xff]
        %v280 = vld [vmem:[#allocation5 + $0x2a0] sm:$0xff]
        %v281 = vld [vmem:[#allocation5 + $0x2a8] sm:$0xff]
        %v282 = vld [vmem:[#allocation5 + $0x2b0] sm:$0xff]
        %v283 = vld [vmem:[#allocation5 + $0x2b8] sm:$0xff]
        %v284 = vld [vmem:[#allocation5 + $0x2c0] sm:$0xff]
        %v285 = vld [vmem:[#allocation5 + $0x2c8] sm:$0xff]
        %v286 = vld [vmem:[#allocation5 + $0x2d0] sm:$0xff]
        %v287 = vld [vmem:[#allocation5 + $0x2d8] sm:$0xff]
        %v288 = vld [vmem:[#allocation5 + $0x2e0] sm:$0xff]
        %v289 = vld [vmem:[#allocation5 + $0x2e8] sm:$0xff]
        %v290 = vld [vmem:[#allocation5 + $0x2f0] sm:$0xff]
        %v291 = vld [vmem:[#allocation5 + $0x2f8] sm:$0xff]
        %v292 = vld [vmem:[#allocation5 + $0x300] sm:$0xff]
        %v293 = vld [vmem:[#allocation5 + $0x308] sm:$0xff]
        %v294 = vld [vmem:[#allocation5 + $0x310] sm:$0xff]
        %v295 = vld [vmem:[#allocation5 + $0x318] sm:$0xff]
        %v296 = vld [vmem:[#allocation5 + $0x320] sm:$0xff]
        %v297 = vld [vmem:[#allocation5 + $0x328] sm:$0xff]
        %v298 = vld [vmem:[#allocation5 + $0x330] sm:$0xff]
        %v299 = vld [vmem:[#allocation5 + $0x338] sm:$0xff]
        %v300 = vld [vmem:[#allocation5 + $0x340] sm:$0xff]
        %v301 = vld [vmem:[#allocation5 + $0x348] sm:$0xff]
        %v302 = vld [vmem:[#allocation5 + $0x350] sm:$0xff]
        %v303 = vld [vmem:[#allocation5 + $0x358] sm:$0xff]
        %v304 = vld [vmem:[#allocation5 + $0x360] sm:$0xff]
        %v305 = vld [vmem:[#allocation5 + $0x368] sm:$0xff]
        %v306 = vld [vmem:[#allocation5 + $0x370] sm:$0xff]
        %v307 = vld [vmem:[#allocation5 + $0x378] sm:$0xff]
        %v308 = vld [vmem:[#allocation5 + $0x380] sm:$0xff]
        %v309 = vld [vmem:[#allocation5 + $0x388] sm:$0xff]
        %v310 = vld [vmem:[#allocation5 + $0x390] sm:$0xff]
        %v311 = vld [vmem:[#allocation5 + $0x398] sm:$0xff]
        %v312 = vld [vmem:[#allocation5 + $0x3a0] sm:$0xff]
        %v313 = vld [vmem:[#allocation5 + $0x3a8] sm:$0xff]
        %v314 = vld [vmem:[#allocation5 + $0x3b0] sm:$0xff]
        %v315 = vld [vmem:[#allocation5 + $0x3b8] sm:$0xff]
        %v316 = vld [vmem:[#allocation5 + $0x3c0] sm:$0xff]
        %v317 = vld [vmem:[#allocation5 + $0x3c8] sm:$0xff]
        %v318 = vld [vmem:[#allocation5 + $0x3d0] sm:$0xff]
        %v319 = vld [vmem:[#allocation5 + $0x3d8] sm:$0xff]
        %v320 = vld [vmem:[#allocation5 + $0x3e0] sm:$0xff]
        %v321 = vld [vmem:[#allocation5 + $0x3e8] sm:$0xff]
        %v322 = vld [vmem:[#allocation5 + $0x3f0] sm:$0xff]
        %v323 = vld [vmem:[#allocation5 + $0x3f8] sm:$0xff]
        %v324 = vld [vmem:[#allocation5 + $0x400] sm:$0xff]
        %v325 = vld [vmem:[#allocation5 + $0x408] sm:$0xff]
        %v326 = vld [vmem:[#allocation5 + $0x410] sm:$0xff]
        %v327 = vld [vmem:[#allocation5 + $0x418] sm:$0xff]
        %v328 = vld [vmem:[#allocation5 + $0x420] sm:$0xff]
        %v329 = vld [vmem:[#allocation5 + $0x428] sm:$0xff]
        %v330 = vld [vmem:[#allocation5 + $0x430] sm:$0xff]
        %v331 = vld [vmem:[#allocation5 + $0x438] sm:$0xff]
        %v332 = vld [vmem:[#allocation5 + $0x440] sm:$0xff]
        %v333 = vld [vmem:[#allocation5 + $0x448] sm:$0xff]
        %v334 = vld [vmem:[#allocation5 + $0x450] sm:$0xff]
        %v335 = vld [vmem:[#allocation5 + $0x458] sm:$0xff]
        %v336 = vld [vmem:[#allocation5 + $0x460] sm:$0xff]
        %v337 = vld [vmem:[#allocation5 + $0x468] sm:$0xff]
        %v338 = vld [vmem:[#allocation5 + $0x470] sm:$0xff]
        %v339 = vld [vmem:[#allocation5 + $0x478] sm:$0xff]
        %v340 = vld [vmem:[#allocation5 + $0x480] sm:$0xff]
        %v341 = vld [vmem:[#allocation5 + $0x488] sm:$0xff]
        %v342 = vld [vmem:[#allocation5 + $0x490] sm:$0xff]
        %v343 = vld [vmem:[#allocation5 + $0x498] sm:$0xff]
        %v344 = vld [vmem:[#allocation5 + $0x4a0] sm:$0xff]
        %v345 = vld [vmem:[#allocation5 + $0x4a8] sm:$0xff]
        %v346 = vld [vmem:[#allocation5 + $0x4b0] sm:$0xff]
        %v347 = vld [vmem:[#allocation5 + $0x4b8] sm:$0xff]
        %v348 = vld [vmem:[#allocation5 + $0x4c0] sm:$0xff]
        %v349 = vld [vmem:[#allocation5 + $0x4c8] sm:$0xff]
        %v350 = vld [vmem:[#allocation5 + $0x4d0] sm:$0xff]
        %v351 = vld [vmem:[#allocation5 + $0x4d8] sm:$0xff]
        %v352 = vld [vmem:[#allocation5 + $0x4e0] sm:$0xff]
        %v353 = vld [vmem:[#allocation5 + $0x4e8] sm:$0xff]
        %v354 = vld [vmem:[#allocation5 + $0x4f0] sm:$0xff]
        %v355 = vld [vmem:[#allocation5 + $0x4f8] sm:$0xff]
        %v356 = vld [vmem:[#allocation5 + $0x500] sm:$0xff]
        %v357 = vld [vmem:[#allocation5 + $0x508] sm:$0xff]
        %v358 = vld [vmem:[#allocation5 + $0x510] sm:$0xff]
        %v359 = vld [vmem:[#allocation5 + $0x518] sm:$0xff]
        %v360 = vld [vmem:[#allocation5 + $0x520] sm:$0xff]
        %v361 = vld [vmem:[#allocation5 + $0x528] sm:$0xff]
        %v362 = vld [vmem:[#allocation5 + $0x530] sm:$0xff]
        %v363 = vld [vmem:[#allocation5 + $0x538] sm:$0xff]
        %v364 = vld [vmem:[#allocation5 + $0x540] sm:$0xff]
        %v365 = vld [vmem:[#allocation5 + $0x548] sm:$0xff]
        %v366 = vld [vmem:[#allocation5 + $0x550] sm:$0xff]
        %v367 = vld [vmem:[#allocation5 + $0x558] sm:$0xff]
        %v368 = vld [vmem:[#allocation5 + $0x560] sm:$0xff]
        %v369 = vld [vmem:[#allocation5 + $0x568] sm:$0xff]
        %v370 = vld [vmem:[#allocation5 + $0x570] sm:$0xff]
        %v371 = vld [vmem:[#allocation5 + $0x578] sm:$0xff]
        %v372 = vld [vmem:[#allocation5 + $0x580] sm:$0xff]
        %v373 = vld [vmem:[#allocation5 + $0x588] sm:$0xff]
        %v374 = vld [vmem:[#allocation5 + $0x590] sm:$0xff]
        %v375 = vld [vmem:[#allocation5 + $0x598] sm:$0xff]
        %v376 = vld [vmem:[#allocation5 + $0x5a0] sm:$0xff]
        %v377 = vld [vmem:[#allocation5 + $0x5a8] sm:$0xff]
        %v378 = vld [vmem:[#allocation5 + $0x5b0] sm:$0xff]
        %v379 = vld [vmem:[#allocation5 + $0x5b8] sm:$0xff]
        %v380 = vld [vmem:[#allocation5 + $0x5c0] sm:$0xff]
        %v381 = vld [vmem:[#allocation5 + $0x5c8] sm:$0xff]
        %v382 = vld [vmem:[#allocation5 + $0x5d0] sm:$0xff]
        %v383 = vld [vmem:[#allocation5 + $0x5d8] sm:$0xff]
        %v384 = vld [vmem:[#allocation5 + $0x5e0] sm:$0xff]
        %v385 = vld [vmem:[#allocation5 + $0x5e8] sm:$0xff]
        %v386 = vld [vmem:[#allocation5 + $0x5f0] sm:$0xff]
        %v387 = vld [vmem:[#allocation5 + $0x5f8] sm:$0xff]
        %v388 = vld [vmem:[#allocation5 + $0x600] sm:$0xff]
        %v389 = vld [vmem:[#allocation5 + $0x608] sm:$0xff]
        %v390 = vld [vmem:[#allocation5 + $0x610] sm:$0xff]
        %v391 = vld [vmem:[#allocation5 + $0x618] sm:$0xff]
        %v392 = vld [vmem:[#allocation5 + $0x620] sm:$0xff]
        %v393 = vld [vmem:[#allocation5 + $0x628] sm:$0xff]
        %v394 = vld [vmem:[#allocation5 + $0x630] sm:$0xff]
        %v395 = vld [vmem:[#allocation5 + $0x638] sm:$0xff]
        %v396 = vld [vmem:[#allocation5 + $0x640] sm:$0xff]
        %v397 = vld [vmem:[#allocation5 + $0x648] sm:$0xff]
        %v398 = vld [vmem:[#allocation5 + $0x650] sm:$0xff]
        %v399 = vld [vmem:[#allocation5 + $0x658] sm:$0xff]
        %v400 = vld [vmem:[#allocation5 + $0x660] sm:$0xff]
        %v401 = vld [vmem:[#allocation5 + $0x668] sm:$0xff]
        %v402 = vld [vmem:[#allocation5 + $0x670] sm:$0xff]
        %v403 = vld [vmem:[#allocation5 + $0x678] sm:$0xff]
        %v404 = vld [vmem:[#allocation5 + $0x680] sm:$0xff]
        %v405 = vld [vmem:[#allocation5 + $0x688] sm:$0xff]
        %v406 = vld [vmem:[#allocation5 + $0x690] sm:$0xff]
        %v407 = vld [vmem:[#allocation5 + $0x698] sm:$0xff]
        %v408 = vld [vmem:[#allocation5 + $0x6a0] sm:$0xff]
        %v409 = vld [vmem:[#allocation5 + $0x6a8] sm:$0xff]
        %v410 = vld [vmem:[#allocation5 + $0x6b0] sm:$0xff]
        %v411 = vld [vmem:[#allocation5 + $0x6b8] sm:$0xff]
        %v412 = vld [vmem:[#allocation5 + $0x6c0] sm:$0xff]
        %v413 = vld [vmem:[#allocation5 + $0x6c8] sm:$0xff]
        %v414 = vld [vmem:[#allocation5 + $0x6d0] sm:$0xff]
        %v415 = vld [vmem:[#allocation5 + $0x6d8] sm:$0xff]
        %v416 = vld [vmem:[#allocation5 + $0x6e0] sm:$0xff]
        %v417 = vld [vmem:[#allocation5 + $0x6e8] sm:$0xff]
        %v418 = vld [vmem:[#allocation5 + $0x6f0] sm:$0xff]
        %v419 = vld [vmem:[#allocation5 + $0x6f8] sm:$0xff]
        %v420 = vld [vmem:[#allocation5 + $0x700] sm:$0xff]
        %v421 = vld [vmem:[#allocation5 + $0x708] sm:$0xff]
        %v422 = vld [vmem:[#allocation5 + $0x710] sm:$0xff]
        %v423 = vld [vmem:[#allocation5 + $0x718] sm:$0xff]
        %v424 = vld [vmem:[#allocation5 + $0x720] sm:$0xff]
        %v425 = vld [vmem:[#allocation5 + $0x728] sm:$0xff]
        %v426 = vld [vmem:[#allocation5 + $0x730] sm:$0xff]
        %v427 = vld [vmem:[#allocation5 + $0x738] sm:$0xff]
        %v428 = vld [vmem:[#allocation5 + $0x740] sm:$0xff]
        %v429 = vld [vmem:[#allocation5 + $0x748] sm:$0xff]
        %v430 = vld [vmem:[#allocation5 + $0x750] sm:$0xff]
        %v431 = vld [vmem:[#allocation5 + $0x758] sm:$0xff]
        %v432 = vld [vmem:[#allocation5 + $0x760] sm:$0xff]
        %v433 = vld [vmem:[#allocation5 + $0x768] sm:$0xff]
        %v434 = vld [vmem:[#allocation5 + $0x770] sm:$0xff]
        %v435 = vld [vmem:[#allocation5 + $0x778] sm:$0xff]
        %v436 = vld [vmem:[#allocation5 + $0x780] sm:$0xff]
        %v437 = vld [vmem:[#allocation5 + $0x788] sm:$0xff]
        %v438 = vld [vmem:[#allocation5 + $0x790] sm:$0xff]
        %v439 = vld [vmem:[#allocation5 + $0x798] sm:$0xff]
        %v440 = vld [vmem:[#allocation5 + $0x7a0] sm:$0xff]
        %v441 = vld [vmem:[#allocation5 + $0x7a8] sm:$0xff]
        %v442 = vld [vmem:[#allocation5 + $0x7b0] sm:$0xff]
        %v443 = vld [vmem:[#allocation5 + $0x7b8] sm:$0xff]
        %v444 = vld [vmem:[#allocation5 + $0x7c0] sm:$0xff]
        %v445 = vld [vmem:[#allocation5 + $0x7c8] sm:$0xff]
        %v446 = vld [vmem:[#allocation5 + $0x7d0] sm:$0xff]
        %v447 = vld [vmem:[#allocation5 + $0x7d8] sm:$0xff]
        %v448 = vld [vmem:[#allocation5 + $0x7e0] sm:$0xff]
        %v449 = vld [vmem:[#allocation5 + $0x7e8] sm:$0xff]
        %v450 = vld [vmem:[#allocation5 + $0x7f0] sm:$0xff]
        %v451 = vld [vmem:[#allocation5 + $0x7f8] sm:$0xff]
        %v452 = vld [vmem:[#allocation5 + $0x800] sm:$0xff]
        %v453 = vld [vmem:[#allocation5 + $0x808] sm:$0xff]
        %v454 = vld [vmem:[#allocation5 + $0x810] sm:$0xff]
        %v455 = vld [vmem:[#allocation5 + $0x818] sm:$0xff]
        %v456 = vld [vmem:[#allocation5 + $0x820] sm:$0xff]
        %v457 = vld [vmem:[#allocation5 + $0x828] sm:$0xff]
        %v458 = vld [vmem:[#allocation5 + $0x830] sm:$0xff]
        %v459 = vld [vmem:[#allocation5 + $0x838] sm:$0xff]
        %v460 = vld [vmem:[#allocation5 + $0x840] sm:$0xff]
        %v461 = vld [vmem:[#allocation5 + $0x848] sm:$0xff]
        %v462 = vld [vmem:[#allocation5 + $0x850] sm:$0xff]
        %v463 = vld [vmem:[#allocation5 + $0x858] sm:$0xff]
        %v464 = vld [vmem:[#allocation5 + $0x860] sm:$0xff]
        %v465 = vld [vmem:[#allocation5 + $0x868] sm:$0xff]
        %v466 = vld [vmem:[#allocation5 + $0x870] sm:$0xff]
        %v467 = vld [vmem:[#allocation5 + $0x878] sm:$0xff]
        %v468 = vld [vmem:[#allocation5 + $0x880] sm:$0xff]
        %v469 = vld [vmem:[#allocation5 + $0x888] sm:$0xff]
        %v470 = vld [vmem:[#allocation5 + $0x890] sm:$0xff]
        %v471 = vld [vmem:[#allocation5 + $0x898] sm:$0xff]
        %v472 = vld [vmem:[#allocation5 + $0x8a0] sm:$0xff]
        %v473 = vld [vmem:[#allocation5 + $0x8a8] sm:$0xff]
        %v474 = vld [vmem:[#allocation5 + $0x8b0] sm:$0xff]
        %v475 = vld [vmem:[#allocation5 + $0x8b8] sm:$0xff]
        %v476 = vld [vmem:[#allocation5 + $0x8c0] sm:$0xff]
        %v477 = vld [vmem:[#allocation5 + $0x8c8] sm:$0xff]
        %v478 = vld [vmem:[#allocation5 + $0x8d0] sm:$0xff]
        %v479 = vld [vmem:[#allocation5 + $0x8d8] sm:$0xff]
        %v480 = vld [vmem:[#allocation5 + $0x8e0] sm:$0xff]
        %v481 = vld [vmem:[#allocation5 + $0x8e8] sm:$0xff]
        %v482 = vld [vmem:[#allocation5 + $0x8f0] sm:$0xff]
        %v483 = vld [vmem:[#allocation5 + $0x8f8] sm:$0xff]
        %v500 = vunpack.c.l.b16 %v180
        %v501 = vunpack.c.h.b16 %v180
        %v502 = vunpack.c.l.b16 %v181
        %v503 = vunpack.c.h.b16 %v181
        %v504 = vunpack.c.l.b16 %v182
        %v505 = vunpack.c.h.b16 %v182
        %v506 = vunpack.c.l.b16 %v183
        %v507 = vunpack.c.h.b16 %v183
        %v508 = vunpack.c.l.b16 %v184
        %v509 = vunpack.c.h.b16 %v184
        %v510 = vunpack.c.l.b16 %v185
        %v511 = vunpack.c.h.b16 %v185
        %v512 = vunpack.c.l.b16 %v186
        %v513 = vunpack.c.h.b16 %v186
        %v514 = vunpack.c.l.b16 %v187
        %v515 = vunpack.c.h.b16 %v187
        %v516 = vunpack.c.l.b16 %v188
        %v517 = vunpack.c.h.b16 %v188
        %v518 = vunpack.c.l.b16 %v189
        %v519 = vunpack.c.h.b16 %v189
        %v520 = vunpack.c.l.b16 %v190
        %v521 = vunpack.c.h.b16 %v190
        %v522 = vunpack.c.l.b16 %v191
        %v523 = vunpack.c.h.b16 %v191
        %v524 = vunpack.c.l.b16 %v192
        %v525 = vunpack.c.h.b16 %v192
        %v526 = vunpack.c.l.b16 %v193
        %v527 = vunpack.c.h.b16 %v193
        %v528 = vunpack.c.l.b16 %v194
        %v529 = vunpack.c.h.b16 %v194
        %v530 = vunpack.c.l.b16 %v195
        %v531 = vunpack.c.h.b16 %v195
        %v532 = vpack.c.b16 %v502, %v500
        %v533 = vpack.c.b16 %v503, %v501
        %v534 = vpack.c.b16 %v506, %v504
        %v535 = vpack.c.b16 %v507, %v505
        %v536 = vpack.c.b16 %v510, %v508
        %v537 = vpack.c.b16 %v511, %v509
        %v538 = vpack.c.b16 %v514, %v512
        %v539 = vpack.c.b16 %v515, %v513
        %v540 = vpack.c.b16 %v518, %v516
        %v541 = vpack.c.b16 %v519, %v517
        %v542 = vpack.c.b16 %v522, %v520
        %v543 = vpack.c.b16 %v523, %v521
        %v544 = vpack.c.b16 %v526, %v524
        %v545 = vpack.c.b16 %v527, %v525
        %v546 = vpack.c.b16 %v530, %v528
        %v547 = vpack.c.b16 %v531, %v529
        %v852 = vunpack.c.l.b16 %v196
        %v853 = vunpack.c.h.b16 %v196
        %v854 = vunpack.c.l.b16 %v197
        %v855 = vunpack.c.h.b16 %v197
        %v856 = vunpack.c.l.b16 %v198
        %v857 = vunpack.c.h.b16 %v198
        %v858 = vunpack.c.l.b16 %v199
        %v859 = vunpack.c.h.b16 %v199
        %v860 = vunpack.c.l.b16 %v200
        %v861 = vunpack.c.h.b16 %v200
        %v862 = vunpack.c.l.b16 %v201
        %v863 = vunpack.c.h.b16 %v201
        %v864 = vunpack.c.l.b16 %v202
        %v865 = vunpack.c.h.b16 %v202
        %v866 = vunpack.c.l.b16 %v203
        %v867 = vunpack.c.h.b16 %v203
        %v868 = vunpack.c.l.b16 %v204
        %v869 = vunpack.c.h.b16 %v204
        %v870 = vunpack.c.l.b16 %v205
        %v871 = vunpack.c.h.b16 %v205
        %v872 = vunpack.c.l.b16 %v206
        %v873 = vunpack.c.h.b16 %v206
        %v874 = vunpack.c.l.b16 %v207
        %v875 = vunpack.c.h.b16 %v207
        %v876 = vunpack.c.l.b16 %v208
        %v877 = vunpack.c.h.b16 %v208
        %v878 = vunpack.c.l.b16 %v209
        %v879 = vunpack.c.h.b16 %v209
        %v880 = vunpack.c.l.b16 %v210
        %v881 = vunpack.c.h.b16 %v210
        %v882 = vunpack.c.l.b16 %v211
        %v883 = vunpack.c.h.b16 %v211
        %v884 = vunpack.c.l.b16 %v212
        %v885 = vunpack.c.h.b16 %v212
        %v886 = vunpack.c.l.b16 %v213
        %v887 = vunpack.c.h.b16 %v213
        %v888 = vunpack.c.l.b16 %v214
        %v889 = vunpack.c.h.b16 %v214
        %v890 = vunpack.c.l.b16 %v215
        %v891 = vunpack.c.h.b16 %v215
        %v892 = vunpack.c.l.b16 %v216
        %v893 = vunpack.c.h.b16 %v216
        %v894 = vunpack.c.l.b16 %v217
        %v895 = vunpack.c.h.b16 %v217
        %v896 = vunpack.c.l.b16 %v218
        %v897 = vunpack.c.h.b16 %v218
        %v898 = vunpack.c.l.b16 %v219
        %v899 = vunpack.c.h.b16 %v219
        %v900 = vunpack.c.l.b16 %v220
        %v901 = vunpack.c.h.b16 %v220
        %v902 = vunpack.c.l.b16 %v221
        %v903 = vunpack.c.h.b16 %v221
        %v904 = vunpack.c.l.b16 %v222
        %v905 = vunpack.c.h.b16 %v222
        %v906 = vunpack.c.l.b16 %v223
        %v907 = vunpack.c.h.b16 %v223
        %v908 = vunpack.c.l.b16 %v224
        %v909 = vunpack.c.h.b16 %v224
        %v910 = vunpack.c.l.b16 %v225
        %v911 = vunpack.c.h.b16 %v225
        %v912 = vunpack.c.l.b16 %v226
        %v913 = vunpack.c.h.b16 %v226
        %v914 = vunpack.c.l.b16 %v227
        %v915 = vunpack.c.h.b16 %v227
        %v916 = vunpack.c.l.b16 %v228
        %v917 = vunpack.c.h.b16 %v228
        %v918 = vunpack.c.l.b16 %v229
        %v919 = vunpack.c.h.b16 %v229
        %v920 = vunpack.c.l.b16 %v230
        %v921 = vunpack.c.h.b16 %v230
        %v922 = vunpack.c.l.b16 %v231
        %v923 = vunpack.c.h.b16 %v231
        %v924 = vunpack.c.l.b16 %v232
        %v925 = vunpack.c.h.b16 %v232
        %v926 = vunpack.c.l.b16 %v233
        %v927 = vunpack.c.h.b16 %v233
        %v928 = vunpack.c.l.b16 %v234
        %v929 = vunpack.c.h.b16 %v234
        %v930 = vunpack.c.l.b16 %v235
        %v931 = vunpack.c.h.b16 %v235
        %v932 = vunpack.c.l.b16 %v236
        %v933 = vunpack.c.h.b16 %v236
        %v934 = vunpack.c.l.b16 %v237
        %v935 = vunpack.c.h.b16 %v237
        %v936 = vunpack.c.l.b16 %v238
        %v937 = vunpack.c.h.b16 %v238
        %v938 = vunpack.c.l.b16 %v239
        %v939 = vunpack.c.h.b16 %v239
        %v940 = vunpack.c.l.b16 %v240
        %v941 = vunpack.c.h.b16 %v240
        %v942 = vunpack.c.l.b16 %v241
        %v943 = vunpack.c.h.b16 %v241
        %v944 = vunpack.c.l.b16 %v242
        %v945 = vunpack.c.h.b16 %v242
        %v946 = vunpack.c.l.b16 %v243
        %v947 = vunpack.c.h.b16 %v243
        %v948 = vunpack.c.l.b16 %v244
        %v949 = vunpack.c.h.b16 %v244
        %v950 = vunpack.c.l.b16 %v245
        %v951 = vunpack.c.h.b16 %v245
        %v952 = vunpack.c.l.b16 %v246
        %v953 = vunpack.c.h.b16 %v246
        %v954 = vunpack.c.l.b16 %v247
        %v955 = vunpack.c.h.b16 %v247
        %v956 = vunpack.c.l.b16 %v248
        %v957 = vunpack.c.h.b16 %v248
        %v958 = vunpack.c.l.b16 %v249
        %v959 = vunpack.c.h.b16 %v249
        %v960 = vunpack.c.l.b16 %v250
        %v961 = vunpack.c.h.b16 %v250
        %v962 = vunpack.c.l.b16 %v251
        %v963 = vunpack.c.h.b16 %v251
        %v964 = vunpack.c.l.b16 %v252
        %v965 = vunpack.c.h.b16 %v252
        %v966 = vunpack.c.l.b16 %v253
        %v967 = vunpack.c.h.b16 %v253
        %v968 = vunpack.c.l.b16 %v254
        %v969 = vunpack.c.h.b16 %v254
        %v970 = vunpack.c.l.b16 %v255
        %v971 = vunpack.c.h.b16 %v255
        %v972 = vunpack.c.l.b16 %v256
        %v973 = vunpack.c.h.b16 %v256
        %v974 = vunpack.c.l.b16 %v257
        %v975 = vunpack.c.h.b16 %v257
        %v976 = vunpack.c.l.b16 %v258
        %v977 = vunpack.c.h.b16 %v258
        %v978 = vunpack.c.l.b16 %v259
        %v979 = vunpack.c.h.b16 %v259
        %v980 = vunpack.c.l.b16 %v260
        %v981 = vunpack.c.h.b16 %v260
        %v982 = vunpack.c.l.b16 %v261
        %v983 = vunpack.c.h.b16 %v261
        %v984 = vunpack.c.l.b16 %v262
        %v985 = vunpack.c.h.b16 %v262
        %v986 = vunpack.c.l.b16 %v263
        %v987 = vunpack.c.h.b16 %v263
        %v988 = vunpack.c.l.b16 %v264
        %v989 = vunpack.c.h.b16 %v264
        %v990 = vunpack.c.l.b16 %v265
        %v991 = vunpack.c.h.b16 %v265
        %v992 = vunpack.c.l.b16 %v266
        %v993 = vunpack.c.h.b16 %v266
        %v994 = vunpack.c.l.b16 %v267
        %v995 = vunpack.c.h.b16 %v267
        %v996 = vunpack.c.l.b16 %v268
        %v997 = vunpack.c.h.b16 %v268
        %v998 = vunpack.c.l.b16 %v269
        %v999 = vunpack.c.h.b16 %v269
        %v1000 = vunpack.c.l.b16 %v270
        %v1001 = vunpack.c.h.b16 %v270
        %v1002 = vunpack.c.l.b16 %v271
        %v1003 = vunpack.c.h.b16 %v271
        %v1004 = vunpack.c.l.b16 %v272
        %v1005 = vunpack.c.h.b16 %v272
        %v1006 = vunpack.c.l.b16 %v273
        %v1007 = vunpack.c.h.b16 %v273
        %v1008 = vunpack.c.l.b16 %v274
        %v1009 = vunpack.c.h.b16 %v274
        %v1010 = vunpack.c.l.b16 %v275
        %v1011 = vunpack.c.h.b16 %v275
        %v1012 = vunpack.c.l.b16 %v276
        %v1013 = vunpack.c.h.b16 %v276
        %v1014 = vunpack.c.l.b16 %v277
        %v1015 = vunpack.c.h.b16 %v277
        %v1016 = vunpack.c.l.b16 %v278
        %v1017 = vunpack.c.h.b16 %v278
        %v1018 = vunpack.c.l.b16 %v279
        %v1019 = vunpack.c.h.b16 %v279
        %v1020 = vunpack.c.l.b16 %v280
        %v1021 = vunpack.c.h.b16 %v280
        %v1022 = vunpack.c.l.b16 %v281
        %v1023 = vunpack.c.h.b16 %v281
        %v1024 = vunpack.c.l.b16 %v282
        %v1025 = vunpack.c.h.b16 %v282
        %v1026 = vunpack.c.l.b16 %v283
        %v1027 = vunpack.c.h.b16 %v283
        %v1028 = vunpack.c.l.b16 %v284
        %v1029 = vunpack.c.h.b16 %v284
        %v1030 = vunpack.c.l.b16 %v285
        %v1031 = vunpack.c.h.b16 %v285
        %v1032 = vunpack.c.l.b16 %v286
        %v1033 = vunpack.c.h.b16 %v286
        %v1034 = vunpack.c.l.b16 %v287
        %v1035 = vunpack.c.h.b16 %v287
        %v1036 = vunpack.c.l.b16 %v288
        %v1037 = vunpack.c.h.b16 %v288
        %v1038 = vunpack.c.l.b16 %v289
        %v1039 = vunpack.c.h.b16 %v289
        %v1040 = vunpack.c.l.b16 %v290
        %v1041 = vunpack.c.h.b16 %v290
        %v1042 = vunpack.c.l.b16 %v291
        %v1043 = vunpack.c.h.b16 %v291
        %v1044 = vunpack.c.l.b16 %v292
        %v1045 = vunpack.c.h.b16 %v292
        %v1046 = vunpack.c.l.b16 %v293
        %v1047 = vunpack.c.h.b16 %v293
        %v1048 = vunpack.c.l.b16 %v294
        %v1049 = vunpack.c.h.b16 %v294
        %v1050 = vunpack.c.l.b16 %v295
        %v1051 = vunpack.c.h.b16 %v295
        %v1052 = vunpack.c.l.b16 %v296
        %v1053 = vunpack.c.h.b16 %v296
        %v1054 = vunpack.c.l.b16 %v297
        %v1055 = vunpack.c.h.b16 %v297
        %v1056 = vunpack.c.l.b16 %v298
        %v1057 = vunpack.c.h.b16 %v298
        %v1058 = vunpack.c.l.b16 %v299
        %v1059 = vunpack.c.h.b16 %v299
        %v1060 = vunpack.c.l.b16 %v300
        %v1061 = vunpack.c.h.b16 %v300
        %v1062 = vunpack.c.l.b16 %v301
        %v1063 = vunpack.c.h.b16 %v301
        %v1064 = vunpack.c.l.b16 %v302
        %v1065 = vunpack.c.h.b16 %v302
        %v1066 = vunpack.c.l.b16 %v303
        %v1067 = vunpack.c.h.b16 %v303
        %v1068 = vunpack.c.l.b16 %v304
        %v1069 = vunpack.c.h.b16 %v304
        %v1070 = vunpack.c.l.b16 %v305
        %v1071 = vunpack.c.h.b16 %v305
        %v1072 = vunpack.c.l.b16 %v306
        %v1073 = vunpack.c.h.b16 %v306
        %v1074 = vunpack.c.l.b16 %v307
        %v1075 = vunpack.c.h.b16 %v307
        %v1076 = vunpack.c.l.b16 %v308
        %v1077 = vunpack.c.h.b16 %v308
        %v1078 = vunpack.c.l.b16 %v309
        %v1079 = vunpack.c.h.b16 %v309
        %v1080 = vunpack.c.l.b16 %v310
        %v1081 = vunpack.c.h.b16 %v310
        %v1082 = vunpack.c.l.b16 %v311
        %v1083 = vunpack.c.h.b16 %v311
        %v1084 = vunpack.c.l.b16 %v312
        %v1085 = vunpack.c.h.b16 %v312
        %v1086 = vunpack.c.l.b16 %v313
        %v1087 = vunpack.c.h.b16 %v313
        %v1088 = vunpack.c.l.b16 %v314
        %v1089 = vunpack.c.h.b16 %v314
        %v1090 = vunpack.c.l.b16 %v315
        %v1091 = vunpack.c.h.b16 %v315
        %v1092 = vunpack.c.l.b16 %v316
        %v1093 = vunpack.c.h.b16 %v316
        %v1094 = vunpack.c.l.b16 %v317
        %v1095 = vunpack.c.h.b16 %v317
        %v1096 = vunpack.c.l.b16 %v318
        %v1097 = vunpack.c.h.b16 %v318
        %v1098 = vunpack.c.l.b16 %v319
        %v1099 = vunpack.c.h.b16 %v319
        %v1100 = vunpack.c.l.b16 %v320
        %v1101 = vunpack.c.h.b16 %v320
        %v1102 = vunpack.c.l.b16 %v321
        %v1103 = vunpack.c.h.b16 %v321
        %v1104 = vunpack.c.l.b16 %v322
        %v1105 = vunpack.c.h.b16 %v322
        %v1106 = vunpack.c.l.b16 %v323
        %v1107 = vunpack.c.h.b16 %v323
        %v1108 = vunpack.c.l.b16 %v324
        %v1109 = vunpack.c.h.b16 %v324
        %v1110 = vunpack.c.l.b16 %v325
        %v1111 = vunpack.c.h.b16 %v325
        %v1112 = vunpack.c.l.b16 %v326
        %v1113 = vunpack.c.h.b16 %v326
        %v1114 = vunpack.c.l.b16 %v327
        %v1115 = vunpack.c.h.b16 %v327
        %v1116 = vunpack.c.l.b16 %v328
        %v1117 = vunpack.c.h.b16 %v328
        %v1118 = vunpack.c.l.b16 %v329
        %v1119 = vunpack.c.h.b16 %v329
        %v1120 = vunpack.c.l.b16 %v330
        %v1121 = vunpack.c.h.b16 %v330
        %v1122 = vunpack.c.l.b16 %v331
        %v1123 = vunpack.c.h.b16 %v331
        %v1124 = vunpack.c.l.b16 %v332
        %v1125 = vunpack.c.h.b16 %v332
        %v1126 = vunpack.c.l.b16 %v333
        %v1127 = vunpack.c.h.b16 %v333
        %v1128 = vunpack.c.l.b16 %v334
        %v1129 = vunpack.c.h.b16 %v334
        %v1130 = vunpack.c.l.b16 %v335
        %v1131 = vunpack.c.h.b16 %v335
        %v1132 = vunpack.c.l.b16 %v336
        %v1133 = vunpack.c.h.b16 %v336
        %v1134 = vunpack.c.l.b16 %v337
        %v1135 = vunpack.c.h.b16 %v337
        %v1136 = vunpack.c.l.b16 %v338
        %v1137 = vunpack.c.h.b16 %v338
        %v1138 = vunpack.c.l.b16 %v339
        %v1139 = vunpack.c.h.b16 %v339
        %v1140 = vunpack.c.l.b16 %v340
        %v1141 = vunpack.c.h.b16 %v340
        %v1142 = vunpack.c.l.b16 %v341
        %v1143 = vunpack.c.h.b16 %v341
        %v1144 = vunpack.c.l.b16 %v342
        %v1145 = vunpack.c.h.b16 %v342
        %v1146 = vunpack.c.l.b16 %v343
        %v1147 = vunpack.c.h.b16 %v343
        %v1148 = vunpack.c.l.b16 %v344
        %v1149 = vunpack.c.h.b16 %v344
        %v1150 = vunpack.c.l.b16 %v345
        %v1151 = vunpack.c.h.b16 %v345
        %v1152 = vunpack.c.l.b16 %v346
        %v1153 = vunpack.c.h.b16 %v346
        %v1154 = vunpack.c.l.b16 %v347
        %v1155 = vunpack.c.h.b16 %v347
        %v1156 = vunpack.c.l.b16 %v348
        %v1157 = vunpack.c.h.b16 %v348
        %v1158 = vunpack.c.l.b16 %v349
        %v1159 = vunpack.c.h.b16 %v349
        %v1160 = vunpack.c.l.b16 %v350
        %v1161 = vunpack.c.h.b16 %v350
        %v1162 = vunpack.c.l.b16 %v351
        %v1163 = vunpack.c.h.b16 %v351
        %v1164 = vunpack.c.l.b16 %v352
        %v1165 = vunpack.c.h.b16 %v352
        %v1166 = vunpack.c.l.b16 %v353
        %v1167 = vunpack.c.h.b16 %v353
        %v1168 = vunpack.c.l.b16 %v354
        %v1169 = vunpack.c.h.b16 %v354
        %v1170 = vunpack.c.l.b16 %v355
        %v1171 = vunpack.c.h.b16 %v355
        %v1172 = vunpack.c.l.b16 %v356
        %v1173 = vunpack.c.h.b16 %v356
        %v1174 = vunpack.c.l.b16 %v357
        %v1175 = vunpack.c.h.b16 %v357
        %v1176 = vunpack.c.l.b16 %v358
        %v1177 = vunpack.c.h.b16 %v358
        %v1178 = vunpack.c.l.b16 %v359
        %v1179 = vunpack.c.h.b16 %v359
        %v1180 = vunpack.c.l.b16 %v360
        %v1181 = vunpack.c.h.b16 %v360
        %v1182 = vunpack.c.l.b16 %v361
        %v1183 = vunpack.c.h.b16 %v361
        %v1184 = vunpack.c.l.b16 %v362
        %v1185 = vunpack.c.h.b16 %v362
        %v1186 = vunpack.c.l.b16 %v363
        %v1187 = vunpack.c.h.b16 %v363
        %v1188 = vunpack.c.l.b16 %v364
        %v1189 = vunpack.c.h.b16 %v364
        %v1190 = vunpack.c.l.b16 %v365
        %v1191 = vunpack.c.h.b16 %v365
        %v1192 = vunpack.c.l.b16 %v366
        %v1193 = vunpack.c.h.b16 %v366
        %v1194 = vunpack.c.l.b16 %v367
        %v1195 = vunpack.c.h.b16 %v367
        %v1196 = vunpack.c.l.b16 %v368
        %v1197 = vunpack.c.h.b16 %v368
        %v1198 = vunpack.c.l.b16 %v369
        %v1199 = vunpack.c.h.b16 %v369
        %v1200 = vunpack.c.l.b16 %v370
        %v1201 = vunpack.c.h.b16 %v370
        %v1202 = vunpack.c.l.b16 %v371
        %v1203 = vunpack.c.h.b16 %v371
        %v1204 = vunpack.c.l.b16 %v372
        %v1205 = vunpack.c.h.b16 %v372
        %v1206 = vunpack.c.l.b16 %v373
        %v1207 = vunpack.c.h.b16 %v373
        %v1208 = vunpack.c.l.b16 %v374
        %v1209 = vunpack.c.h.b16 %v374
        %v1210 = vunpack.c.l.b16 %v375
        %v1211 = vunpack.c.h.b16 %v375
        %v1212 = vunpack.c.l.b16 %v376
        %v1213 = vunpack.c.h.b16 %v376
        %v1214 = vunpack.c.l.b16 %v377
        %v1215 = vunpack.c.h.b16 %v377
        %v1216 = vunpack.c.l.b16 %v378
        %v1217 = vunpack.c.h.b16 %v378
        %v1218 = vunpack.c.l.b16 %v379
        %v1219 = vunpack.c.h.b16 %v379
        %v1220 = vunpack.c.l.b16 %v380
        %v1221 = vunpack.c.h.b16 %v380
        %v1222 = vunpack.c.l.b16 %v381
        %v1223 = vunpack.c.h.b16 %v381
        %v1224 = vunpack.c.l.b16 %v382
        %v1225 = vunpack.c.h.b16 %v382
        %v1226 = vunpack.c.l.b16 %v383
        %v1227 = vunpack.c.h.b16 %v383
        %v1228 = vunpack.c.l.b16 %v384
        %v1229 = vunpack.c.h.b16 %v384
        %v1230 = vunpack.c.l.b16 %v385
        %v1231 = vunpack.c.h.b16 %v385
        %v1232 = vunpack.c.l.b16 %v386
        %v1233 = vunpack.c.h.b16 %v386
        %v1234 = vunpack.c.l.b16 %v387
        %v1235 = vunpack.c.h.b16 %v387
        %v1236 = vunpack.c.l.b16 %v388
        %v1237 = vunpack.c.h.b16 %v388
        %v1238 = vunpack.c.l.b16 %v389
        %v1239 = vunpack.c.h.b16 %v389
        %v1240 = vunpack.c.l.b16 %v390
        %v1241 = vunpack.c.h.b16 %v390
        %v1242 = vunpack.c.l.b16 %v391
        %v1243 = vunpack.c.h.b16 %v391
        %v1244 = vunpack.c.l.b16 %v392
        %v1245 = vunpack.c.h.b16 %v392
        %v1246 = vunpack.c.l.b16 %v393
        %v1247 = vunpack.c.h.b16 %v393
        %v1248 = vunpack.c.l.b16 %v394
        %v1249 = vunpack.c.h.b16 %v394
        %v1250 = vunpack.c.l.b16 %v395
        %v1251 = vunpack.c.h.b16 %v395
        %v1252 = vunpack.c.l.b16 %v396
        %v1253 = vunpack.c.h.b16 %v396
        %v1254 = vunpack.c.l.b16 %v397
        %v1255 = vunpack.c.h.b16 %v397
        %v1256 = vunpack.c.l.b16 %v398
        %v1257 = vunpack.c.h.b16 %v398
        %v1258 = vunpack.c.l.b16 %v399
        %v1259 = vunpack.c.h.b16 %v399
        %v1260 = vunpack.c.l.b16 %v400
        %v1261 = vunpack.c.h.b16 %v400
        %v1262 = vunpack.c.l.b16 %v401
        %v1263 = vunpack.c.h.b16 %v401
        %v1264 = vunpack.c.l.b16 %v402
        %v1265 = vunpack.c.h.b16 %v402
        %v1266 = vunpack.c.l.b16 %v403
        %v1267 = vunpack.c.h.b16 %v403
        %v1268 = vunpack.c.l.b16 %v404
        %v1269 = vunpack.c.h.b16 %v404
        %v1270 = vunpack.c.l.b16 %v405
        %v1271 = vunpack.c.h.b16 %v405
        %v1272 = vunpack.c.l.b16 %v406
        %v1273 = vunpack.c.h.b16 %v406
        %v1274 = vunpack.c.l.b16 %v407
        %v1275 = vunpack.c.h.b16 %v407
        %v1276 = vunpack.c.l.b16 %v408
        %v1277 = vunpack.c.h.b16 %v408
        %v1278 = vunpack.c.l.b16 %v409
        %v1279 = vunpack.c.h.b16 %v409
        %v1280 = vunpack.c.l.b16 %v410
        %v1281 = vunpack.c.h.b16 %v410
        %v1282 = vunpack.c.l.b16 %v411
        %v1283 = vunpack.c.h.b16 %v411
        %v1284 = vunpack.c.l.b16 %v412
        %v1285 = vunpack.c.h.b16 %v412
        %v1286 = vunpack.c.l.b16 %v413
        %v1287 = vunpack.c.h.b16 %v413
        %v1288 = vunpack.c.l.b16 %v414
        %v1289 = vunpack.c.h.b16 %v414
        %v1290 = vunpack.c.l.b16 %v415
        %v1291 = vunpack.c.h.b16 %v415
        %v1292 = vunpack.c.l.b16 %v416
        %v1293 = vunpack.c.h.b16 %v416
        %v1294 = vunpack.c.l.b16 %v417
        %v1295 = vunpack.c.h.b16 %v417
        %v1296 = vunpack.c.l.b16 %v418
        %v1297 = vunpack.c.h.b16 %v418
        %v1298 = vunpack.c.l.b16 %v419
        %v1299 = vunpack.c.h.b16 %v419
        %v1300 = vunpack.c.l.b16 %v420
        %v1301 = vunpack.c.h.b16 %v420
        %v1302 = vunpack.c.l.b16 %v421
        %v1303 = vunpack.c.h.b16 %v421
        %v1304 = vunpack.c.l.b16 %v422
        %v1305 = vunpack.c.h.b16 %v422
        %v1306 = vunpack.c.l.b16 %v423
        %v1307 = vunpack.c.h.b16 %v423
        %v1308 = vunpack.c.l.b16 %v424
        %v1309 = vunpack.c.h.b16 %v424
        %v1310 = vunpack.c.l.b16 %v425
        %v1311 = vunpack.c.h.b16 %v425
        %v1312 = vunpack.c.l.b16 %v426
        %v1313 = vunpack.c.h.b16 %v426
        %v1314 = vunpack.c.l.b16 %v427
        %v1315 = vunpack.c.h.b16 %v427
        %v1316 = vunpack.c.l.b16 %v428
        %v1317 = vunpack.c.h.b16 %v428
        %v1318 = vunpack.c.l.b16 %v429
        %v1319 = vunpack.c.h.b16 %v429
        %v1320 = vunpack.c.l.b16 %v430
        %v1321 = vunpack.c.h.b16 %v430
        %v1322 = vunpack.c.l.b16 %v431
        %v1323 = vunpack.c.h.b16 %v431
        %v1324 = vunpack.c.l.b16 %v432
        %v1325 = vunpack.c.h.b16 %v432
        %v1326 = vunpack.c.l.b16 %v433
        %v1327 = vunpack.c.h.b16 %v433
        %v1328 = vunpack.c.l.b16 %v434
        %v1329 = vunpack.c.h.b16 %v434
        %v1330 = vunpack.c.l.b16 %v435
        %v1331 = vunpack.c.h.b16 %v435
        %v1332 = vunpack.c.l.b16 %v436
        %v1333 = vunpack.c.h.b16 %v436
        %v1334 = vunpack.c.l.b16 %v437
        %v1335 = vunpack.c.h.b16 %v437
        %v1336 = vunpack.c.l.b16 %v438
        %v1337 = vunpack.c.h.b16 %v438
        %v1338 = vunpack.c.l.b16 %v439
        %v1339 = vunpack.c.h.b16 %v439
        %v1340 = vunpack.c.l.b16 %v440
        %v1341 = vunpack.c.h.b16 %v440
        %v1342 = vunpack.c.l.b16 %v441
        %v1343 = vunpack.c.h.b16 %v441
        %v1344 = vunpack.c.l.b16 %v442
        %v1345 = vunpack.c.h.b16 %v442
        %v1346 = vunpack.c.l.b16 %v443
        %v1347 = vunpack.c.h.b16 %v443
        %v1348 = vunpack.c.l.b16 %v444
        %v1349 = vunpack.c.h.b16 %v444
        %v1350 = vunpack.c.l.b16 %v445
        %v1351 = vunpack.c.h.b16 %v445
        %v1352 = vunpack.c.l.b16 %v446
        %v1353 = vunpack.c.h.b16 %v446
        %v1354 = vunpack.c.l.b16 %v447
        %v1355 = vunpack.c.h.b16 %v447
        %v1356 = vunpack.c.l.b16 %v448
        %v1357 = vunpack.c.h.b16 %v448
        %v1358 = vunpack.c.l.b16 %v449
        %v1359 = vunpack.c.h.b16 %v449
        %v1360 = vunpack.c.l.b16 %v450
        %v1361 = vunpack.c.h.b16 %v450
        %v1362 = vunpack.c.l.b16 %v451
        %v1363 = vunpack.c.h.b16 %v451
        %v1364 = vunpack.c.l.b16 %v452
        %v1365 = vunpack.c.h.b16 %v452
        %v1366 = vunpack.c.l.b16 %v453
        %v1367 = vunpack.c.h.b16 %v453
        %v1368 = vunpack.c.l.b16 %v454
        %v1369 = vunpack.c.h.b16 %v454
        %v1370 = vunpack.c.l.b16 %v455
        %v1371 = vunpack.c.h.b16 %v455
        %v1372 = vunpack.c.l.b16 %v456
        %v1373 = vunpack.c.h.b16 %v456
        %v1374 = vunpack.c.l.b16 %v457
        %v1375 = vunpack.c.h.b16 %v457
        %v1376 = vunpack.c.l.b16 %v458
        %v1377 = vunpack.c.h.b16 %v458
        %v1378 = vunpack.c.l.b16 %v459
        %v1379 = vunpack.c.h.b16 %v459
        %v1380 = vunpack.c.l.b16 %v460
        %v1381 = vunpack.c.h.b16 %v460
        %v1382 = vunpack.c.l.b16 %v461
        %v1383 = vunpack.c.h.b16 %v461
        %v1384 = vunpack.c.l.b16 %v462
        %v1385 = vunpack.c.h.b16 %v462
        %v1386 = vunpack.c.l.b16 %v463
        %v1387 = vunpack.c.h.b16 %v463
        %v1388 = vunpack.c.l.b16 %v464
        %v1389 = vunpack.c.h.b16 %v464
        %v1390 = vunpack.c.l.b16 %v465
        %v1391 = vunpack.c.h.b16 %v465
        %v1392 = vunpack.c.l.b16 %v466
        %v1393 = vunpack.c.h.b16 %v466
        %v1394 = vunpack.c.l.b16 %v467
        %v1395 = vunpack.c.h.b16 %v467
        %v1396 = vunpack.c.l.b16 %v468
        %v1397 = vunpack.c.h.b16 %v468
        %v1398 = vunpack.c.l.b16 %v469
        %v1399 = vunpack.c.h.b16 %v469
        %v1400 = vunpack.c.l.b16 %v470
        %v1401 = vunpack.c.h.b16 %v470
        %v1402 = vunpack.c.l.b16 %v471
        %v1403 = vunpack.c.h.b16 %v471
        %v1404 = vunpack.c.l.b16 %v472
        %v1405 = vunpack.c.h.b16 %v472
        %v1406 = vunpack.c.l.b16 %v473
        %v1407 = vunpack.c.h.b16 %v473
        %v1408 = vunpack.c.l.b16 %v474
        %v1409 = vunpack.c.h.b16 %v474
        %v1410 = vunpack.c.l.b16 %v475
        %v1411 = vunpack.c.h.b16 %v475
        %v1412 = vunpack.c.l.b16 %v476
        %v1413 = vunpack.c.h.b16 %v476
        %v1414 = vunpack.c.l.b16 %v477
        %v1415 = vunpack.c.h.b16 %v477
        %v1416 = vunpack.c.l.b16 %v478
        %v1417 = vunpack.c.h.b16 %v478
        %v1418 = vunpack.c.l.b16 %v479
        %v1419 = vunpack.c.h.b16 %v479
        %v1420 = vunpack.c.l.b16 %v480
        %v1421 = vunpack.c.h.b16 %v480
        %v1422 = vunpack.c.l.b16 %v481
        %v1423 = vunpack.c.h.b16 %v481
        %v1424 = vunpack.c.l.b16 %v482
        %v1425 = vunpack.c.h.b16 %v482
        %v1426 = vunpack.c.l.b16 %v483
        %v1427 = vunpack.c.h.b16 %v483
        %v1428 = vpack.c.b16 %v870, %v852
        %v1429 = vpack.c.b16 %v871, %v853
        %v1430 = vpack.c.b16 %v872, %v854
        %v1431 = vpack.c.b16 %v873, %v855
        %v1432 = vpack.c.b16 %v874, %v856
        %v1433 = vpack.c.b16 %v875, %v857
        %v1434 = vpack.c.b16 %v876, %v858
        %v1435 = vpack.c.b16 %v877, %v859
        %v1436 = vpack.c.b16 %v878, %v860
        %v1437 = vpack.c.b16 %v879, %v861
        %v1438 = vpack.c.b16 %v880, %v862
        %v1439 = vpack.c.b16 %v881, %v863
        %v1440 = vpack.c.b16 %v882, %v864
        %v1441 = vpack.c.b16 %v883, %v865
        %v1442 = vpack.c.b16 %v884, %v866
        %v1443 = vpack.c.b16 %v885, %v867
        %v1444 = vpack.c.b16 %v886, %v868
        %v1445 = vpack.c.b16 %v887, %v869
        %v1446 = vpack.c.b16 %v906, %v888
        %v1447 = vpack.c.b16 %v907, %v889
        %v1448 = vpack.c.b16 %v908, %v890
        %v1449 = vpack.c.b16 %v909, %v891
        %v1450 = vpack.c.b16 %v910, %v892
        %v1451 = vpack.c.b16 %v911, %v893
        %v1452 = vpack.c.b16 %v912, %v894
        %v1453 = vpack.c.b16 %v913, %v895
        %v1454 = vpack.c.b16 %v914, %v896
        %v1455 = vpack.c.b16 %v915, %v897
        %v1456 = vpack.c.b16 %v916, %v898
        %v1457 = vpack.c.b16 %v917, %v899
        %v1458 = vpack.c.b16 %v918, %v900
        %v1459 = vpack.c.b16 %v919, %v901
        %v1460 = vpack.c.b16 %v920, %v902
        %v1461 = vpack.c.b16 %v921, %v903
        %v1462 = vpack.c.b16 %v922, %v904
        %v1463 = vpack.c.b16 %v923, %v905
        %v1464 = vpack.c.b16 %v942, %v924
        %v1465 = vpack.c.b16 %v943, %v925
        %v1466 = vpack.c.b16 %v944, %v926
        %v1467 = vpack.c.b16 %v945, %v927
        %v1468 = vpack.c.b16 %v946, %v928
        %v1469 = vpack.c.b16 %v947, %v929
        %v1470 = vpack.c.b16 %v948, %v930
        %v1471 = vpack.c.b16 %v949, %v931
        %v1472 = vpack.c.b16 %v950, %v932
        %v1473 = vpack.c.b16 %v951, %v933
        %v1474 = vpack.c.b16 %v952, %v934
        %v1475 = vpack.c.b16 %v953, %v935
        %v1476 = vpack.c.b16 %v954, %v936
        %v1477 = vpack.c.b16 %v955, %v937
        %v1478 = vpack.c.b16 %v956, %v938
        %v1479 = vpack.c.b16 %v957, %v939
        %v1480 = vpack.c.b16 %v958, %v940
        %v1481 = vpack.c.b16 %v959, %v941
        %v1482 = vpack.c.b16 %v978, %v960
        %v1483 = vpack.c.b16 %v979, %v961
        %v1484 = vpack.c.b16 %v980, %v962
        %v1485 = vpack.c.b16 %v981, %v963
        %v1486 = vpack.c.b16 %v982, %v964
        %v1487 = vpack.c.b16 %v983, %v965
        %v1488 = vpack.c.b16 %v984, %v966
        %v1489 = vpack.c.b16 %v985, %v967
        %v1490 = vpack.c.b16 %v986, %v968
        %v1491 = vpack.c.b16 %v987, %v969
        %v1492 = vpack.c.b16 %v988, %v970
        %v1493 = vpack.c.b16 %v989, %v971
        %v1494 = vpack.c.b16 %v990, %v972
        %v1495 = vpack.c.b16 %v991, %v973
        %v1496 = vpack.c.b16 %v992, %v974
        %v1497 = vpack.c.b16 %v993, %v975
        %v1498 = vpack.c.b16 %v994, %v976
        %v1499 = vpack.c.b16 %v995, %v977
        %v1500 = vpack.c.b16 %v1014, %v996
        %v1501 = vpack.c.b16 %v1015, %v997
        %v1502 = vpack.c.b16 %v1016, %v998
        %v1503 = vpack.c.b16 %v1017, %v999
        %v1504 = vpack.c.b16 %v1018, %v1000
        %v1505 = vpack.c.b16 %v1019, %v1001
        %v1506 = vpack.c.b16 %v1020, %v1002
        %v1507 = vpack.c.b16 %v1021, %v1003
        %v1508 = vpack.c.b16 %v1022, %v1004
        %v1509 = vpack.c.b16 %v1023, %v1005
        %v1510 = vpack.c.b16 %v1024, %v1006
        %v1511 = vpack.c.b16 %v1025, %v1007
        %v1512 = vpack.c.b16 %v1026, %v1008
        %v1513 = vpack.c.b16 %v1027, %v1009
        %v1514 = vpack.c.b16 %v1028, %v1010
        %v1515 = vpack.c.b16 %v1029, %v1011
        %v1516 = vpack.c.b16 %v1030, %v1012
        %v1517 = vpack.c.b16 %v1031, %v1013
        %v1518 = vpack.c.b16 %v1050, %v1032
        %v1519 = vpack.c.b16 %v1051, %v1033
        %v1520 = vpack.c.b16 %v1052, %v1034
        %v1521 = vpack.c.b16 %v1053, %v1035
        %v1522 = vpack.c.b16 %v1054, %v1036
        %v1523 = vpack.c.b16 %v1055, %v1037
        %v1524 = vpack.c.b16 %v1056, %v1038
        %v1525 = vpack.c.b16 %v1057, %v1039
        %v1526 = vpack.c.b16 %v1058, %v1040
        %v1527 = vpack.c.b16 %v1059, %v1041
        %v1528 = vpack.c.b16 %v1060, %v1042
        %v1529 = vpack.c.b16 %v1061, %v1043
        %v1530 = vpack.c.b16 %v1062, %v1044
        %v1531 = vpack.c.b16 %v1063, %v1045
        %v1532 = vpack.c.b16 %v1064, %v1046
        %v1533 = vpack.c.b16 %v1065, %v1047
        %v1534 = vpack.c.b16 %v1066, %v1048
        %v1535 = vpack.c.b16 %v1067, %v1049
        %v1536 = vpack.c.b16 %v1086, %v1068
        %v1537 = vpack.c.b16 %v1087, %v1069
        %v1538 = vpack.c.b16 %v1088, %v1070
        %v1539 = vpack.c.b16 %v1089, %v1071
        %v1540 = vpack.c.b16 %v1090, %v1072
        %v1541 = vpack.c.b16 %v1091, %v1073
        %v1542 = vpack.c.b16 %v1092, %v1074
        %v1543 = vpack.c.b16 %v1093, %v1075
        %v1544 = vpack.c.b16 %v1094, %v1076
        %v1545 = vpack.c.b16 %v1095, %v1077
        %v1546 = vpack.c.b16 %v1096, %v1078
        %v1547 = vpack.c.b16 %v1097, %v1079
        %v1548 = vpack.c.b16 %v1098, %v1080
        %v1549 = vpack.c.b16 %v1099, %v1081
        %v1550 = vpack.c.b16 %v1100, %v1082
        %v1551 = vpack.c.b16 %v1101, %v1083
        %v1552 = vpack.c.b16 %v1102, %v1084
        %v1553 = vpack.c.b16 %v1103, %v1085
        %v1554 = vpack.c.b16 %v1122, %v1104
        %v1555 = vpack.c.b16 %v1123, %v1105
        %v1556 = vpack.c.b16 %v1124, %v1106
        %v1557 = vpack.c.b16 %v1125, %v1107
        %v1558 = vpack.c.b16 %v1126, %v1108
        %v1559 = vpack.c.b16 %v1127, %v1109
        %v1560 = vpack.c.b16 %v1128, %v1110
        %v1561 = vpack.c.b16 %v1129, %v1111
        %v1562 = vpack.c.b16 %v1130, %v1112
        %v1563 = vpack.c.b16 %v1131, %v1113
        %v1564 = vpack.c.b16 %v1132, %v1114
        %v1565 = vpack.c.b16 %v1133, %v1115
        %v1566 = vpack.c.b16 %v1134, %v1116
        %v1567 = vpack.c.b16 %v1135, %v1117
        %v1568 = vpack.c.b16 %v1136, %v1118
        %v1569 = vpack.c.b16 %v1137, %v1119
        %v1570 = vpack.c.b16 %v1138, %v1120
        %v1571 = vpack.c.b16 %v1139, %v1121
        %v1572 = vpack.c.b16 %v1158, %v1140
        %v1573 = vpack.c.b16 %v1159, %v1141
        %v1574 = vpack.c.b16 %v1160, %v1142
        %v1575 = vpack.c.b16 %v1161, %v1143
        %v1576 = vpack.c.b16 %v1162, %v1144
        %v1577 = vpack.c.b16 %v1163, %v1145
        %v1578 = vpack.c.b16 %v1164, %v1146
        %v1579 = vpack.c.b16 %v1165, %v1147
        %v1580 = vpack.c.b16 %v1166, %v1148
        %v1581 = vpack.c.b16 %v1167, %v1149
        %v1582 = vpack.c.b16 %v1168, %v1150
        %v1583 = vpack.c.b16 %v1169, %v1151
        %v1584 = vpack.c.b16 %v1170, %v1152
        %v1585 = vpack.c.b16 %v1171, %v1153
        %v1586 = vpack.c.b16 %v1172, %v1154
        %v1587 = vpack.c.b16 %v1173, %v1155
        %v1588 = vpack.c.b16 %v1174, %v1156
        %v1589 = vpack.c.b16 %v1175, %v1157
        %v1590 = vpack.c.b16 %v1194, %v1176
        %v1591 = vpack.c.b16 %v1195, %v1177
        %v1592 = vpack.c.b16 %v1196, %v1178
        %v1593 = vpack.c.b16 %v1197, %v1179
        %v1594 = vpack.c.b16 %v1198, %v1180
        %v1595 = vpack.c.b16 %v1199, %v1181
        %v1596 = vpack.c.b16 %v1200, %v1182
        %v1597 = vpack.c.b16 %v1201, %v1183
        %v1598 = vpack.c.b16 %v1202, %v1184
        %v1599 = vpack.c.b16 %v1203, %v1185
        %v1600 = vpack.c.b16 %v1204, %v1186
        %v1601 = vpack.c.b16 %v1205, %v1187
        %v1602 = vpack.c.b16 %v1206, %v1188
        %v1603 = vpack.c.b16 %v1207, %v1189
        %v1604 = vpack.c.b16 %v1208, %v1190
        %v1605 = vpack.c.b16 %v1209, %v1191
        %v1606 = vpack.c.b16 %v1210, %v1192
        %v1607 = vpack.c.b16 %v1211, %v1193
        %v1608 = vpack.c.b16 %v1230, %v1212
        %v1609 = vpack.c.b16 %v1231, %v1213
        %v1610 = vpack.c.b16 %v1232, %v1214
        %v1611 = vpack.c.b16 %v1233, %v1215
        %v1612 = vpack.c.b16 %v1234, %v1216
        %v1613 = vpack.c.b16 %v1235, %v1217
        %v1614 = vpack.c.b16 %v1236, %v1218
        %v1615 = vpack.c.b16 %v1237, %v1219
        %v1616 = vpack.c.b16 %v1238, %v1220
        %v1617 = vpack.c.b16 %v1239, %v1221
        %v1618 = vpack.c.b16 %v1240, %v1222
        %v1619 = vpack.c.b16 %v1241, %v1223
        %v1620 = vpack.c.b16 %v1242, %v1224
        %v1621 = vpack.c.b16 %v1243, %v1225
        %v1622 = vpack.c.b16 %v1244, %v1226
        %v1623 = vpack.c.b16 %v1245, %v1227
        %v1624 = vpack.c.b16 %v1246, %v1228
        %v1625 = vpack.c.b16 %v1247, %v1229
        %v1626 = vpack.c.b16 %v1266, %v1248
        %v1627 = vpack.c.b16 %v1267, %v1249
        %v1628 = vpack.c.b16 %v1268, %v1250
        %v1629 = vpack.c.b16 %v1269, %v1251
        %v1630 = vpack.c.b16 %v1270, %v1252
        %v1631 = vpack.c.b16 %v1271, %v1253
        %v1632 = vpack.c.b16 %v1272, %v1254
        %v1633 = vpack.c.b16 %v1273, %v1255
        %v1634 = vpack.c.b16 %v1274, %v1256
        %v1635 = vpack.c.b16 %v1275, %v1257
        %v1636 = vpack.c.b16 %v1276, %v1258
        %v1637 = vpack.c.b16 %v1277, %v1259
        %v1638 = vpack.c.b16 %v1278, %v1260
        %v1639 = vpack.c.b16 %v1279, %v1261
        %v1640 = vpack.c.b16 %v1280, %v1262
        %v1641 = vpack.c.b16 %v1281, %v1263
        %v1642 = vpack.c.b16 %v1282, %v1264
        %v1643 = vpack.c.b16 %v1283, %v1265
        %v1644 = vpack.c.b16 %v1302, %v1284
        %v1645 = vpack.c.b16 %v1303, %v1285
        %v1646 = vpack.c.b16 %v1304, %v1286
        %v1647 = vpack.c.b16 %v1305, %v1287
        %v1648 = vpack.c.b16 %v1306, %v1288
        %v1649 = vpack.c.b16 %v1307, %v1289
        %v1650 = vpack.c.b16 %v1308, %v1290
        %v1651 = vpack.c.b16 %v1309, %v1291
        %v1652 = vpack.c.b16 %v1310, %v1292
        %v1653 = vpack.c.b16 %v1311, %v1293
        %v1654 = vpack.c.b16 %v1312, %v1294
        %v1655 = vpack.c.b16 %v1313, %v1295
        %v1656 = vpack.c.b16 %v1314, %v1296
        %v1657 = vpack.c.b16 %v1315, %v1297
        %v1658 = vpack.c.b16 %v1316, %v1298
        %v1659 = vpack.c.b16 %v1317, %v1299
        %v1660 = vpack.c.b16 %v1318, %v1300
        %v1661 = vpack.c.b16 %v1319, %v1301
        %v1662 = vpack.c.b16 %v1338, %v1320
        %v1663 = vpack.c.b16 %v1339, %v1321
        %v1664 = vpack.c.b16 %v1340, %v1322
        %v1665 = vpack.c.b16 %v1341, %v1323
        %v1666 = vpack.c.b16 %v1342, %v1324
        %v1667 = vpack.c.b16 %v1343, %v1325
        %v1668 = vpack.c.b16 %v1344, %v1326
        %v1669 = vpack.c.b16 %v1345, %v1327
        %v1670 = vpack.c.b16 %v1346, %v1328
        %v1671 = vpack.c.b16 %v1347, %v1329
        %v1672 = vpack.c.b16 %v1348, %v1330
        %v1673 = vpack.c.b16 %v1349, %v1331
        %v1674 = vpack.c.b16 %v1350, %v1332
        %v1675 = vpack.c.b16 %v1351, %v1333
        %v1676 = vpack.c.b16 %v1352, %v1334
        %v1677 = vpack.c.b16 %v1353, %v1335
        %v1678 = vpack.c.b16 %v1354, %v1336
        %v1679 = vpack.c.b16 %v1355, %v1337
        %v1680 = vpack.c.b16 %v1374, %v1356
        %v1681 = vpack.c.b16 %v1375, %v1357
        %v1682 = vpack.c.b16 %v1376, %v1358
        %v1683 = vpack.c.b16 %v1377, %v1359
        %v1684 = vpack.c.b16 %v1378, %v1360
        %v1685 = vpack.c.b16 %v1379, %v1361
        %v1686 = vpack.c.b16 %v1380, %v1362
        %v1687 = vpack.c.b16 %v1381, %v1363
        %v1688 = vpack.c.b16 %v1382, %v1364
        %v1689 = vpack.c.b16 %v1383, %v1365
        %v1690 = vpack.c.b16 %v1384, %v1366
        %v1691 = vpack.c.b16 %v1385, %v1367
        %v1692 = vpack.c.b16 %v1386, %v1368
        %v1693 = vpack.c.b16 %v1387, %v1369
        %v1694 = vpack.c.b16 %v1388, %v1370
        %v1695 = vpack.c.b16 %v1389, %v1371
        %v1696 = vpack.c.b16 %v1390, %v1372
        %v1697 = vpack.c.b16 %v1391, %v1373
        %v1698 = vpack.c.b16 %v1410, %v1392
        %v1699 = vpack.c.b16 %v1411, %v1393
        %v1700 = vpack.c.b16 %v1412, %v1394
        %v1701 = vpack.c.b16 %v1413, %v1395
        %v1702 = vpack.c.b16 %v1414, %v1396
        %v1703 = vpack.c.b16 %v1415, %v1397
        %v1704 = vpack.c.b16 %v1416, %v1398
        %v1705 = vpack.c.b16 %v1417, %v1399
        %v1706 = vpack.c.b16 %v1418, %v1400
        %v1707 = vpack.c.b16 %v1419, %v1401
        %v1708 = vpack.c.b16 %v1420, %v1402
        %v1709 = vpack.c.b16 %v1421, %v1403
        %v1710 = vpack.c.b16 %v1422, %v1404
        %v1711 = vpack.c.b16 %v1423, %v1405
        %v1712 = vpack.c.b16 %v1424, %v1406
        %v1713 = vpack.c.b16 %v1425, %v1407
        %v1714 = vpack.c.b16 %v1426, %v1408
        %v1715 = vpack.c.b16 %v1427, %v1409
        %2004 = vmatprep.subr.bf16.mxu0 %v1429
        %2005 = vmatpush1.bf16.msra.mxu0 %v1428
        %2006 = vmatprep.subr.bf16.mxu0 %v1447
        %2007 = vmatpush1.bf16.msra.mxu0 %v1446
        %2008 = vmatprep.subr.bf16.mxu0 %v1465
        %2009 = vmatpush1.bf16.msra.mxu0 %v1464
        %2010 = vmatprep.subr.bf16.mxu0 %v1483
        %2011 = vmatpush1.bf16.msra.mxu0 %v1482
        %2012 = vmatprep.subr.bf16.mxu0 %v1501
        %2013 = vmatpush1.bf16.msra.mxu0 %v1500
        %2014 = vmatprep.subr.bf16.mxu0 %v1519
        %2015 = vmatpush1.bf16.msra.mxu0 %v1518
        %2016 = vmatprep.subr.bf16.mxu0 %v1537
        %2017 = vmatpush1.bf16.msra.mxu0 %v1536
        %2018 = vmatprep.subr.bf16.mxu0 %v1555
        %2019 = vmatpush1.bf16.msra.mxu0 %v1554
        %2020 = vmatprep.subr.bf16.mxu0 %v1573
        %2021 = vmatpush1.bf16.msra.mxu0 %v1572
        %2022 = vmatprep.subr.bf16.mxu0 %v1591
        %2023 = vmatpush1.bf16.msra.mxu0 %v1590
        %2024 = vmatprep.subr.bf16.mxu0 %v1609
        %2025 = vmatpush1.bf16.msra.mxu0 %v1608
        %2026 = vmatprep.subr.bf16.mxu0 %v1627
        %2027 = vmatpush1.bf16.msra.mxu0 %v1626
        %2028 = vmatprep.subr.bf16.mxu0 %v1645
        %2029 = vmatpush1.bf16.msra.mxu0 %v1644
        %2030 = vmatprep.subr.bf16.mxu0 %v1663
        %2031 = vmatpush1.bf16.msra.mxu0 %v1662
        %2032 = vmatprep.subr.bf16.mxu0 %v1681
        %2033 = vmatpush1.bf16.msra.mxu0 %v1680
        %2034 = vmatprep.subr.bf16.mxu0 %v1699
        %2035 = vmatpush1.bf16.msra.mxu0 %v1698
        %2036 = vmatprep.mubr.bf16.mxu0 %v533
        %2037 = vmatmul.mubr.bf16.gmra.mrb[0].mxu0 %v532
        %v2038 = vpop.f32.mrb[0].mxu0
        %v2039 = vadd.f32 0.0, %v2038
        %v2040 = vpop.f32.mrb[0].mxu0
        %v2041 = vadd.f32 0.0, %v2040
        %v2042 = vpop.f32.mrb[0].mxu0
        %v2043 = vadd.f32 0.0, %v2042
        %v2044 = vpop.f32.mrb[0].mxu0
        %v2045 = vadd.f32 0.0, %v2044
        %2046 = vmatprep.mubr.bf16.mxu0 %v535
        %2047 = vmatmul.mubr.bf16.gmra.mrb[0].mxu0 %v534
        %v2048 = vpop.f32.mrb[0].mxu0
        %v2049 = vadd.f32 0.0, %v2048
        %v2050 = vpop.f32.mrb[0].mxu0
        %v2051 = vadd.f32 0.0, %v2050
        %v2052 = vpop.f32.mrb[0].mxu0
        %v2053 = vadd.f32 0.0, %v2052
        %v2054 = vpop.f32.mrb[0].mxu0
        %v2055 = vadd.f32 0.0, %v2054
        %2056 = vmatprep.mubr.bf16.mxu0 %v537
        %2057 = vmatmul.mubr.bf16.gmra.mrb[0].mxu0 %v536
        %v2058 = vpop.f32.mrb[0].mxu0
        %v2059 = vadd.f32 0.0, %v2058
        %v2060 = vpop.f32.mrb[0].mxu0
        %v2061 = vadd.f32 0.0, %v2060
        %v2062 = vpop.f32.mrb[0].mxu0
        %v2063 = vadd.f32 0.0, %v2062
        %v2064 = vpop.f32.mrb[0].mxu0
        %v2065 = vadd.f32 0.0, %v2064
        %2066 = vmatprep.mubr.bf16.mxu0 %v539
        %2067 = vmatmul.mubr.bf16.gmra.mrb[0].mxu0 %v538
        %v2068 = vpop.f32.mrb[0].mxu0
        %v2069 = vadd.f32 0.0, %v2068
        %v2070 = vpop.f32.mrb[0].mxu0
        %v2071 = vadd.f32 0.0, %v2070
        %v2072 = vpop.f32.mrb[0].mxu0
        %v2073 = vadd.f32 0.0, %v2072
        %v2074 = vpop.f32.mrb[0].mxu0
        %v2075 = vadd.f32 0.0, %v2074
        %2076 = vmatprep.mubr.bf16.mxu0 %v541
        %2077 = vmatmul.mubr.bf16.gmra.mrb[0].mxu0 %v540
        %v2078 = vpop.f32.mrb[0].mxu0
        %v2079 = vadd.f32 0.0, %v2078
        %v2080 = vpop.f32.mrb[0].mxu0
        %v2081 = vadd.f32 0.0, %v2080
        %v2082 = vpop.f32.mrb[0].mxu0
        %v2083 = vadd.f32 0.0, %v2082
        %v2084 = vpop.f32.mrb[0].mxu0
        %v2085 = vadd.f32 0.0, %v2084
        %2086 = vmatprep.mubr.bf16.mxu0 %v543
        %2087 = vmatmul.mubr.bf16.gmra.mrb[0].mxu0 %v542
        %v2088 = vpop.f32.mrb[0].mxu0
        %v2089 = vadd.f32 0.0, %v2088
        %v2090 = vpop.f32.mrb[0].mxu0
        %v2091 = vadd.f32 0.0, %v2090
        %v2092 = vpop.f32.mrb[0].mxu0
        %v2093 = vadd.f32 0.0, %v2092
        %v2094 = vpop.f32.mrb[0].mxu0
        %v2095 = vadd.f32 0.0, %v2094
        %2096 = vmatprep.mubr.bf16.mxu0 %v545
        %2097 = vmatmul.mubr.bf16.gmra.mrb[0].mxu0 %v544
        %v2098 = vpop.f32.mrb[0].mxu0
        %v2099 = vadd.f32 0.0, %v2098
        %v2100 = vpop.f32.mrb[0].mxu0
        %v2101 = vadd.f32 0.0, %v2100
        %v2102 = vpop.f32.mrb[0].mxu0
        %v2103 = vadd.f32 0.0, %v2102
        %v2104 = vpop.f32.mrb[0].mxu0
        %v2105 = vadd.f32 0.0, %v2104
        %2106 = vmatprep.mubr.bf16.mxu0 %v547
        %2107 = vmatmul.mubr.bf16.gmra.mrb[0].mxu0 %v546
        %v2108 = vpop.f32.mrb[0].mxu0
        %v2109 = vadd.f32 0.0, %v2108
        %v2110 = vpop.f32.mrb[0].mxu0
        %v2111 = vadd.f32 0.0, %v2110
        %v2112 = vpop.f32.mrb[0].mxu0
        %v2113 = vadd.f32 0.0, %v2112
        %v2114 = vpop.f32.mrb[0].mxu0
        %v2115 = vadd.f32 0.0, %v2114
        %2116 = vdwg.mxu0
        %2117 = vmatprep.subr.bf16.mxu0 %v1431
        %2118 = vmatpush1.bf16.msra.mxu0 %v1430
        %2119 = vmatprep.subr.bf16.mxu0 %v1449
        %2120 = vmatpush1.bf16.msra.mxu0 %v1448
        %2121 = vmatprep.subr.bf16.mxu0 %v1467
        %2122 = vmatpush1.bf16.msra.mxu0 %v1466
        %2123 = vmatprep.subr.bf16.mxu0 %v1485
        %2124 = vmatpush1.bf16.msra.mxu0 %v1484
        %2125 = vmatprep.subr.bf16.mxu0 %v1503
        %2126 = vmatpush1.bf16.msra.mxu0 %v1502
        %2127 = vmatprep.subr.bf16.mxu0 %v1521
        %2128 = vmatpush1.bf16.msra.mxu0 %v1520
        %2129 = vmatprep.subr.bf16.mxu0 %v1539
        %2130 = vmatpush1.bf16.msra.mxu0 %v1538
        %2131 = vmatprep.subr.bf16.mxu0 %v1557
        %2132 = vmatpush1.bf16.msra.mxu0 %v1556
        %2133 = vmatprep.subr.bf16.mxu0 %v1575
        %2134 = vmatpush1.bf16.msra.mxu0 %v1574
        %2135 = vmatprep.subr.bf16.mxu0 %v1593
        %2136 = vmatpush1.bf16.msra.mxu0 %v1592
        %2137 = vmatprep.subr.bf16.mxu0 %v1611
        %2138 = vmatpush1.bf16.msra.mxu0 %v1610
        %2139 = vmatprep.subr.bf16.mxu0 %v1629
        %2140 = vmatpush1.bf16.msra.mxu0 %v1628
        %2141 = vmatprep.subr.bf16.mxu0 %v1647
        %2142 = vmatpush1.bf16.msra.mxu0 %v1646
        %2143 = vmatprep.subr.bf16.mxu0 %v1665
        %2144 = vmatpush1.bf16.msra.mxu0 %v1664
        %2145 = vmatprep.subr.bf16.mxu0 %v1683
        %2146 = vmatpush1.bf16.msra.mxu0 %v1682
        %2147 = vmatprep.subr.bf16.mxu0 %v1701
        %2148 = vmatpush1.bf16.msra.mxu0 %v1700
        %2149 = vmatprep.mubr.bf16.mxu0 %v533
        %2150 = vmatmul.mubr.bf16.gmra.mrb[0].mxu0 %v532
        %v2151 = vpop.f32.mrb[0].mxu0
        %v2152 = vadd.f32 0.0, %v2151
        %v2153 = vpop.f32.mrb[0].mxu0
        %v2154 = vadd.f32 0.0, %v2153
        %v2155 = vpop.f32.mrb[0].mxu0
        %v2156 = vadd.f32 0.0, %v2155
        %v2157 = vpop.f32.mrb[0].mxu0
        %v2158 = vadd.f32 0.0, %v2157
        %2159 = vmatprep.mubr.bf16.mxu0 %v535
        %2160 = vmatmul.mubr.bf16.gmra.mrb[0].mxu0 %v534
        %v2161 = vpop.f32.mrb[0].mxu0
        %v2162 = vadd.f32 0.0, %v2161
        %v2163 = vpop.f32.mrb[0].mxu0
        %v2164 = vadd.f32 0.0, %v2163
        %v2165 = vpop.f32.mrb[0].mxu0
        %v2166 = vadd.f32 0.0, %v2165
        %v2167 = vpop.f32.mrb[0].mxu0
        %v2168 = vadd.f32 0.0, %v2167
        %2169 = vmatprep.mubr.bf16.mxu0 %v537
        %2170 = vmatmul.mubr.bf16.gmra.mrb[0].mxu0 %v536
        %v2171 = vpop.f32.mrb[0].mxu0
        %v2172 = vadd.f32 0.0, %v2171
        %v2173 = vpop.f32.mrb[0].mxu0
        %v2174 = vadd.f32 0.0, %v2173
        %v2175 = vpop.f32.mrb[0].mxu0
        %v2176 = vadd.f32 0.0, %v2175
        %v2177 = vpop.f32.mrb[0].mxu0
        %v2178 = vadd.f32 0.0, %v2177
        %2179 = vmatprep.mubr.bf16.mxu0 %v539
        %2180 = vmatmul.mubr.bf16.gmra.mrb[0].mxu0 %v538
        %v2181 = vpop.f32.mrb[0].mxu0
        %v2182 = vadd.f32 0.0, %v2181
        %v2183 = vpop.f32.mrb[0].mxu0
        %v2184 = vadd.f32 0.0, %v2183
        %v2185 = vpop.f32.mrb[0].mxu0
        %v2186 = vadd.f32 0.0, %v2185
        %v2187 = vpop.f32.mrb[0].mxu0
        %v2188 = vadd.f32 0.0, %v2187
        %2189 = vmatprep.mubr.bf16.mxu0 %v541
        %2190 = vmatmul.mubr.bf16.gmra.mrb[0].mxu0 %v540
        %v2191 = vpop.f32.mrb[0].mxu0
        %v2192 = vadd.f32 0.0, %v2191
        %v2193 = vpop.f32.mrb[0].mxu0
        %v2194 = vadd.f32 0.0, %v2193
        %v2195 = vpop.f32.mrb[0].mxu0
        %v2196 = vadd.f32 0.0, %v2195
        %v2197 = vpop.f32.mrb[0].mxu0
        %v2198 = vadd.f32 0.0, %v2197
        %2199 = vmatprep.mubr.bf16.mxu0 %v543
        %2200 = vmatmul.mubr.bf16.gmra.mrb[0].mxu0 %v542
        %v2201 = vpop.f32.mrb[0].mxu0
        %v2202 = vadd.f32 0.0, %v2201
        %v2203 = vpop.f32.mrb[0].mxu0
        %v2204 = vadd.f32 0.0, %v2203
        %v2205 = vpop.f32.mrb[0].mxu0
        %v2206 = vadd.f32 0.0, %v2205
        %v2207 = vpop.f32.mrb[0].mxu0
        %v2208 = vadd.f32 0.0, %v2207
        %2209 = vmatprep.mubr.bf16.mxu0 %v545
        %2210 = vmatmul.mubr.bf16.gmra.mrb[0].mxu0 %v544
        %v2211 = vpop.f32.mrb[0].mxu0
        %v2212 = vadd.f32 0.0, %v2211
        %v2213 = vpop.f32.mrb[0].mxu0
        %v2214 = vadd.f32 0.0, %v2213
        %v2215 = vpop.f32.mrb[0].mxu0
        %v2216 = vadd.f32 0.0, %v2215
        %v2217 = vpop.f32.mrb[0].mxu0
        %v2218 = vadd.f32 0.0, %v2217
        %2219 = vmatprep.mubr.bf16.mxu0 %v547
        %2220 = vmatmul.mubr.bf16.gmra.mrb[0].mxu0 %v546
        %v2221 = vpop.f32.mrb[0].mxu0
        %v2222 = vadd.f32 0.0, %v2221
        %v2223 = vpop.f32.mrb[0].mxu0
        %v2224 = vadd.f32 0.0, %v2223
        %v2225 = vpop.f32.mrb[0].mxu0
        %v2226 = vadd.f32 0.0, %v2225
        %v2227 = vpop.f32.mrb[0].mxu0
        %v2228 = vadd.f32 0.0, %v2227
        %2229 = vdwg.mxu0
        %2230 = vmatprep.subr.bf16.mxu0 %v1433
        %2231 = vmatpush1.bf16.msra.mxu0 %v1432
        %2232 = vmatprep.subr.bf16.mxu0 %v1451
        %2233 = vmatpush1.bf16.msra.mxu0 %v1450
        %2234 = vmatprep.subr.bf16.mxu0 %v1469
        %2235 = vmatpush1.bf16.msra.mxu0 %v1468
        %2236 = vmatprep.subr.bf16.mxu0 %v1487
        %2237 = vmatpush1.bf16.msra.mxu0 %v1486
        %2238 = vmatprep.subr.bf16.mxu0 %v1505
        %2239 = vmatpush1.bf16.msra.mxu0 %v1504
        %2240 = vmatprep.subr.bf16.mxu0 %v1523
        %2241 = vmatpush1.bf16.msra.mxu0 %v1522
        %2242 = vmatprep.subr.bf16.mxu0 %v1541
        %2243 = vmatpush1.bf16.msra.mxu0 %v1540
        %2244 = vmatprep.subr.bf16.mxu0 %v1559
        %2245 = vmatpush1.bf16.msra.mxu0 %v1558
        %2246 = vmatprep.subr.bf16.mxu0 %v1577
        %2247 = vmatpush1.bf16.msra.mxu0 %v1576
        %2248 = vmatprep.subr.bf16.mxu0 %v1595
        %2249 = vmatpush1.bf16.msra.mxu0 %v1594
        %2250 = vmatprep.subr.bf16.mxu0 %v1613
        %2251 = vmatpush1.bf16.msra.mxu0 %v1612
        %2252 = vmatprep.subr.bf16.mxu0 %v1631
        %2253 = vmatpush1.bf16.msra.mxu0 %v1630
        %2254 = vmatprep.subr.bf16.mxu0 %v1649
        %2255 = vmatpush1.bf16.msra.mxu0 %v1648
        %2256 = vmatprep.subr.bf16.mxu0 %v1667
        %2257 = vmatpush1.bf16.msra.mxu0 %v1666
        %2258 = vmatprep.subr.bf16.mxu0 %v1685
        %2259 = vmatpush1.bf16.msra.mxu0 %v1684
        %2260 = vmatprep.subr.bf16.mxu0 %v1703
        %2261 = vmatpush1.bf16.msra.mxu0 %v1702
        %2262 = vmatprep.mubr.bf16.mxu0 %v533
        %2263 = vmatmul.mubr.bf16.gmra.mrb[0].mxu0 %v532
        %v2264 = vpop.f32.mrb[0].mxu0
        %v2265 = vadd.f32 0.0, %v2264
        %v2266 = vpop.f32.mrb[0].mxu0
        %v2267 = vadd.f32 0.0, %v2266
        %v2268 = vpop.f32.mrb[0].mxu0
        %v2269 = vadd.f32 0.0, %v2268
        %v2270 = vpop.f32.mrb[0].mxu0
        %v2271 = vadd.f32 0.0, %v2270
        %2272 = vmatprep.mubr.bf16.mxu0 %v535
        %2273 = vmatmul.mubr.bf16.gmra.mrb[0].mxu0 %v534
        %v2274 = vpop.f32.mrb[0].mxu0
        %v2275 = vadd.f32 0.0, %v2274
        %v2276 = vpop.f32.mrb[0].mxu0
        %v2277 = vadd.f32 0.0, %v2276
        %v2278 = vpop.f32.mrb[0].mxu0
        %v2279 = vadd.f32 0.0, %v2278
        %v2280 = vpop.f32.mrb[0].mxu0
        %v2281 = vadd.f32 0.0, %v2280
        %2282 = vmatprep.mubr.bf16.mxu0 %v537
        %2283 = vmatmul.mubr.bf16.gmra.mrb[0].mxu0 %v536
        %v2284 = vpop.f32.mrb[0].mxu0
        %v2285 = vadd.f32 0.0, %v2284
        %v2286 = vpop.f32.mrb[0].mxu0
        %v2287 = vadd.f32 0.0, %v2286
        %v2288 = vpop.f32.mrb[0].mxu0
        %v2289 = vadd.f32 0.0, %v2288
        %v2290 = vpop.f32.mrb[0].mxu0
        %v2291 = vadd.f32 0.0, %v2290
        %2292 = vmatprep.mubr.bf16.mxu0 %v539
        %2293 = vmatmul.mubr.bf16.gmra.mrb[0].mxu0 %v538
        %v2294 = vpop.f32.mrb[0].mxu0
        %v2295 = vadd.f32 0.0, %v2294
        %v2296 = vpop.f32.mrb[0].mxu0
        %v2297 = vadd.f32 0.0, %v2296
        %v2298 = vpop.f32.mrb[0].mxu0
        %v2299 = vadd.f32 0.0, %v2298
        %v2300 = vpop.f32.mrb[0].mxu0
        %v2301 = vadd.f32 0.0, %v2300
        %2302 = vmatprep.mubr.bf16.mxu0 %v541
        %2303 = vmatmul.mubr.bf16.gmra.mrb[0].mxu0 %v540
        %v2304 = vpop.f32.mrb[0].mxu0
        %v2305 = vadd.f32 0.0, %v2304
        %v2306 = vpop.f32.mrb[0].mxu0
        %v2307 = vadd.f32 0.0, %v2306
        %v2308 = vpop.f32.mrb[0].mxu0
        %v2309 = vadd.f32 0.0, %v2308
        %v2310 = vpop.f32.mrb[0].mxu0
        %v2311 = vadd.f32 0.0, %v2310
        %2312 = vmatprep.mubr.bf16.mxu0 %v543
        %2313 = vmatmul.mubr.bf16.gmra.mrb[0].mxu0 %v542
        %v2314 = vpop.f32.mrb[0].mxu0
        %v2315 = vadd.f32 0.0, %v2314
        %v2316 = vpop.f32.mrb[0].mxu0
        %v2317 = vadd.f32 0.0, %v2316
        %v2318 = vpop.f32.mrb[0].mxu0
        %v2319 = vadd.f32 0.0, %v2318
        %v2320 = vpop.f32.mrb[0].mxu0
        %v2321 = vadd.f32 0.0, %v2320
        %2322 = vmatprep.mubr.bf16.mxu0 %v545
        %2323 = vmatmul.mubr.bf16.gmra.mrb[0].mxu0 %v544
        %v2324 = vpop.f32.mrb[0].mxu0
        %v2325 = vadd.f32 0.0, %v2324
        %v2326 = vpop.f32.mrb[0].mxu0
        %v2327 = vadd.f32 0.0, %v2326
        %v2328 = vpop.f32.mrb[0].mxu0
        %v2329 = vadd.f32 0.0, %v2328
        %v2330 = vpop.f32.mrb[0].mxu0
        %v2331 = vadd.f32 0.0, %v2330
        %2332 = vmatprep.mubr.bf16.mxu0 %v547
        %2333 = vmatmul.mubr.bf16.gmra.mrb[0].mxu0 %v546
        %v2334 = vpop.f32.mrb[0].mxu0
        %v2335 = vadd.f32 0.0, %v2334
        %v2336 = vpop.f32.mrb[0].mxu0
        %v2337 = vadd.f32 0.0, %v2336
        %v2338 = vpop.f32.mrb[0].mxu0
        %v2339 = vadd.f32 0.0, %v2338
        %v2340 = vpop.f32.mrb[0].mxu0
        %v2341 = vadd.f32 0.0, %v2340
        %2342 = vdwg.mxu0
        %2343 = vmatprep.subr.bf16.mxu0 %v1435
        %2344 = vmatpush1.bf16.msra.mxu0 %v1434
        %2345 = vmatprep.subr.bf16.mxu0 %v1453
        %2346 = vmatpush1.bf16.msra.mxu0 %v1452
        %2347 = vmatprep.subr.bf16.mxu0 %v1471
        %2348 = vmatpush1.bf16.msra.mxu0 %v1470
        %2349 = vmatprep.subr.bf16.mxu0 %v1489
        %2350 = vmatpush1.bf16.msra.mxu0 %v1488
        %2351 = vmatprep.subr.bf16.mxu0 %v1507
        %2352 = vmatpush1.bf16.msra.mxu0 %v1506
        %2353 = vmatprep.subr.bf16.mxu0 %v1525
        %2354 = vmatpush1.bf16.msra.mxu0 %v1524
        %2355 = vmatprep.subr.bf16.mxu0 %v1543
        %2356 = vmatpush1.bf16.msra.mxu0 %v1542
        %2357 = vmatprep.subr.bf16.mxu0 %v1561
        %2358 = vmatpush1.bf16.msra.mxu0 %v1560
        %2359 = vmatprep.subr.bf16.mxu0 %v1579
        %2360 = vmatpush1.bf16.msra.mxu0 %v1578
        %2361 = vmatprep.subr.bf16.mxu0 %v1597
        %2362 = vmatpush1.bf16.msra.mxu0 %v1596
        %2363 = vmatprep.subr.bf16.mxu0 %v1615
        %2364 = vmatpush1.bf16.msra.mxu0 %v1614
        %2365 = vmatprep.subr.bf16.mxu0 %v1633
        %2366 = vmatpush1.bf16.msra.mxu0 %v1632
        %2367 = vmatprep.subr.bf16.mxu0 %v1651
        %2368 = vmatpush1.bf16.msra.mxu0 %v1650
        %2369 = vmatprep.subr.bf16.mxu0 %v1669
        %2370 = vmatpush1.bf16.msra.mxu0 %v1668
        %2371 = vmatprep.subr.bf16.mxu0 %v1687
        %2372 = vmatpush1.bf16.msra.mxu0 %v1686
        %2373 = vmatprep.subr.bf16.mxu0 %v1705
        %2374 = vmatpush1.bf16.msra.mxu0 %v1704
        %2375 = vmatprep.mubr.bf16.mxu0 %v533
        %2376 = vmatmul.mubr.bf16.gmra.mrb[0].mxu0 %v532
        %v2377 = vpop.f32.mrb[0].mxu0
        %v2378 = vadd.f32 0.0, %v2377
        %v2379 = vpop.f32.mrb[0].mxu0
        %v2380 = vadd.f32 0.0, %v2379
        %v2381 = vpop.f32.mrb[0].mxu0
        %v2382 = vadd.f32 0.0, %v2381
        %v2383 = vpop.f32.mrb[0].mxu0
        %v2384 = vadd.f32 0.0, %v2383
        %2385 = vmatprep.mubr.bf16.mxu0 %v535
        %2386 = vmatmul.mubr.bf16.gmra.mrb[0].mxu0 %v534
        %v2387 = vpop.f32.mrb[0].mxu0
        %v2388 = vadd.f32 0.0, %v2387
        %v2389 = vpop.f32.mrb[0].mxu0
        %v2390 = vadd.f32 0.0, %v2389
        %v2391 = vpop.f32.mrb[0].mxu0
        %v2392 = vadd.f32 0.0, %v2391
        %v2393 = vpop.f32.mrb[0].mxu0
        %v2394 = vadd.f32 0.0, %v2393
        %2395 = vmatprep.mubr.bf16.mxu0 %v537
        %2396 = vmatmul.mubr.bf16.gmra.mrb[0].mxu0 %v536
        %v2397 = vpop.f32.mrb[0].mxu0
        %v2398 = vadd.f32 0.0, %v2397
        %v2399 = vpop.f32.mrb[0].mxu0
        %v2400 = vadd.f32 0.0, %v2399
        %v2401 = vpop.f32.mrb[0].mxu0
        %v2402 = vadd.f32 0.0, %v2401
        %v2403 = vpop.f32.mrb[0].mxu0
        %v2404 = vadd.f32 0.0, %v2403
        %2405 = vmatprep.mubr.bf16.mxu0 %v539
        %2406 = vmatmul.mubr.bf16.gmra.mrb[0].mxu0 %v538
        %v2407 = vpop.f32.mrb[0].mxu0
        %v2408 = vadd.f32 0.0, %v2407
        %v2409 = vpop.f32.mrb[0].mxu0
        %v2410 = vadd.f32 0.0, %v2409
        %v2411 = vpop.f32.mrb[0].mxu0
        %v2412 = vadd.f32 0.0, %v2411
        %v2413 = vpop.f32.mrb[0].mxu0
        %v2414 = vadd.f32 0.0, %v2413
        %2415 = vmatprep.mubr.bf16.mxu0 %v541
        %2416 = vmatmul.mubr.bf16.gmra.mrb[0].mxu0 %v540
        %v2417 = vpop.f32.mrb[0].mxu0
        %v2418 = vadd.f32 0.0, %v2417
        %v2419 = vpop.f32.mrb[0].mxu0
        %v2420 = vadd.f32 0.0, %v2419
        %v2421 = vpop.f32.mrb[0].mxu0
        %v2422 = vadd.f32 0.0, %v2421
        %v2423 = vpop.f32.mrb[0].mxu0
        %v2424 = vadd.f32 0.0, %v2423
        %2425 = vmatprep.mubr.bf16.mxu0 %v543
        %2426 = vmatmul.mubr.bf16.gmra.mrb[0].mxu0 %v542
        %v2427 = vpop.f32.mrb[0].mxu0
        %v2428 = vadd.f32 0.0, %v2427
        %v2429 = vpop.f32.mrb[0].mxu0
        %v2430 = vadd.f32 0.0, %v2429
        %v2431 = vpop.f32.mrb[0].mxu0
        %v2432 = vadd.f32 0.0, %v2431
        %v2433 = vpop.f32.mrb[0].mxu0
        %v2434 = vadd.f32 0.0, %v2433
        %2435 = vmatprep.mubr.bf16.mxu0 %v545
        %2436 = vmatmul.mubr.bf16.gmra.mrb[0].mxu0 %v544
        %v2437 = vpop.f32.mrb[0].mxu0
        %v2438 = vadd.f32 0.0, %v2437
        %v2439 = vpop.f32.mrb[0].mxu0
        %v2440 = vadd.f32 0.0, %v2439
        %v2441 = vpop.f32.mrb[0].mxu0
        %v2442 = vadd.f32 0.0, %v2441
        %v2443 = vpop.f32.mrb[0].mxu0
        %v2444 = vadd.f32 0.0, %v2443
        %2445 = vmatprep.mubr.bf16.mxu0 %v547
        %2446 = vmatmul.mubr.bf16.gmra.mrb[0].mxu0 %v546
        %v2447 = vpop.f32.mrb[0].mxu0
        %v2448 = vadd.f32 0.0, %v2447
        %v2449 = vpop.f32.mrb[0].mxu0
        %v2450 = vadd.f32 0.0, %v2449
        %v2451 = vpop.f32.mrb[0].mxu0
        %v2452 = vadd.f32 0.0, %v2451
        %v2453 = vpop.f32.mrb[0].mxu0
        %v2454 = vadd.f32 0.0, %v2453
        %2455 = vdwg.mxu0
        %2456 = vmatprep.subr.bf16.mxu0 %v1437
        %2457 = vmatpush1.bf16.msra.mxu0 %v1436
        %2458 = vmatprep.subr.bf16.mxu0 %v1455
        %2459 = vmatpush1.bf16.msra.mxu0 %v1454
        %2460 = vmatprep.subr.bf16.mxu0 %v1473
        %2461 = vmatpush1.bf16.msra.mxu0 %v1472
        %2462 = vmatprep.subr.bf16.mxu0 %v1491
        %2463 = vmatpush1.bf16.msra.mxu0 %v1490
        %2464 = vmatprep.subr.bf16.mxu0 %v1509
        %2465 = vmatpush1.bf16.msra.mxu0 %v1508
        %2466 = vmatprep.subr.bf16.mxu0 %v1527
        %2467 = vmatpush1.bf16.msra.mxu0 %v1526
        %2468 = vmatprep.subr.bf16.mxu0 %v1545
        %2469 = vmatpush1.bf16.msra.mxu0 %v1544
        %2470 = vmatprep.subr.bf16.mxu0 %v1563
        %2471 = vmatpush1.bf16.msra.mxu0 %v1562
        %2472 = vmatprep.subr.bf16.mxu0 %v1581
        %2473 = vmatpush1.bf16.msra.mxu0 %v1580
        %2474 = vmatprep.subr.bf16.mxu0 %v1599
        %2475 = vmatpush1.bf16.msra.mxu0 %v1598
        %2476 = vmatprep.subr.bf16.mxu0 %v1617
        %2477 = vmatpush1.bf16.msra.mxu0 %v1616
        %2478 = vmatprep.subr.bf16.mxu0 %v1635
        %2479 = vmatpush1.bf16.msra.mxu0 %v1634
        %2480 = vmatprep.subr.bf16.mxu0 %v1653
        %2481 = vmatpush1.bf16.msra.mxu0 %v1652
        %2482 = vmatprep.subr.bf16.mxu0 %v1671
        %2483 = vmatpush1.bf16.msra.mxu0 %v1670
        %2484 = vmatprep.subr.bf16.mxu0 %v1689
        %2485 = vmatpush1.bf16.msra.mxu0 %v1688
        %2486 = vmatprep.subr.bf16.mxu0 %v1707
        %2487 = vmatpush1.bf16.msra.mxu0 %v1706
        %2488 = vmatprep.mubr.bf16.mxu0 %v533
        %2489 = vmatmul.mubr.bf16.gmra.mrb[0].mxu0 %v532
        %v2490 = vpop.f32.mrb[0].mxu0
        %v2491 = vadd.f32 0.0, %v2490
        %v2492 = vpop.f32.mrb[0].mxu0
        %v2493 = vadd.f32 0.0, %v2492
        %v2494 = vpop.f32.mrb[0].mxu0
        %v2495 = vadd.f32 0.0, %v2494
        %v2496 = vpop.f32.mrb[0].mxu0
        %v2497 = vadd.f32 0.0, %v2496
        %2498 = vmatprep.mubr.bf16.mxu0 %v535
        %2499 = vmatmul.mubr.bf16.gmra.mrb[0].mxu0 %v534
        %v2500 = vpop.f32.mrb[0].mxu0
        %v2501 = vadd.f32 0.0, %v2500
        %v2502 = vpop.f32.mrb[0].mxu0
        %v2503 = vadd.f32 0.0, %v2502
        %v2504 = vpop.f32.mrb[0].mxu0
        %v2505 = vadd.f32 0.0, %v2504
        %v2506 = vpop.f32.mrb[0].mxu0
        %v2507 = vadd.f32 0.0, %v2506
        %2508 = vmatprep.mubr.bf16.mxu0 %v537
        %2509 = vmatmul.mubr.bf16.gmra.mrb[0].mxu0 %v536
        %v2510 = vpop.f32.mrb[0].mxu0
        %v2511 = vadd.f32 0.0, %v2510
        %v2512 = vpop.f32.mrb[0].mxu0
        %v2513 = vadd.f32 0.0, %v2512
        %v2514 = vpop.f32.mrb[0].mxu0
        %v2515 = vadd.f32 0.0, %v2514
        %v2516 = vpop.f32.mrb[0].mxu0
        %v2517 = vadd.f32 0.0, %v2516
        %2518 = vmatprep.mubr.bf16.mxu0 %v539
        %2519 = vmatmul.mubr.bf16.gmra.mrb[0].mxu0 %v538
        %v2520 = vpop.f32.mrb[0].mxu0
        %v2521 = vadd.f32 0.0, %v2520
        %v2522 = vpop.f32.mrb[0].mxu0
        %v2523 = vadd.f32 0.0, %v2522
        %v2524 = vpop.f32.mrb[0].mxu0
        %v2525 = vadd.f32 0.0, %v2524
        %v2526 = vpop.f32.mrb[0].mxu0
        %v2527 = vadd.f32 0.0, %v2526
        %2528 = vmatprep.mubr.bf16.mxu0 %v541
        %2529 = vmatmul.mubr.bf16.gmra.mrb[0].mxu0 %v540
        %v2530 = vpop.f32.mrb[0].mxu0
        %v2531 = vadd.f32 0.0, %v2530
        %v2532 = vpop.f32.mrb[0].mxu0
        %v2533 = vadd.f32 0.0, %v2532
        %v2534 = vpop.f32.mrb[0].mxu0
        %v2535 = vadd.f32 0.0, %v2534
        %v2536 = vpop.f32.mrb[0].mxu0
        %v2537 = vadd.f32 0.0, %v2536
        %2538 = vmatprep.mubr.bf16.mxu0 %v543
        %2539 = vmatmul.mubr.bf16.gmra.mrb[0].mxu0 %v542
        %v2540 = vpop.f32.mrb[0].mxu0
        %v2541 = vadd.f32 0.0, %v2540
        %v2542 = vpop.f32.mrb[0].mxu0
        %v2543 = vadd.f32 0.0, %v2542
        %v2544 = vpop.f32.mrb[0].mxu0
        %v2545 = vadd.f32 0.0, %v2544
        %v2546 = vpop.f32.mrb[0].mxu0
        %v2547 = vadd.f32 0.0, %v2546
        %2548 = vmatprep.mubr.bf16.mxu0 %v545
        %2549 = vmatmul.mubr.bf16.gmra.mrb[0].mxu0 %v544
        %v2550 = vpop.f32.mrb[0].mxu0
        %v2551 = vadd.f32 0.0, %v2550
        %v2552 = vpop.f32.mrb[0].mxu0
        %v2553 = vadd.f32 0.0, %v2552
        %v2554 = vpop.f32.mrb[0].mxu0
        %v2555 = vadd.f32 0.0, %v2554
        %v2556 = vpop.f32.mrb[0].mxu0
        %v2557 = vadd.f32 0.0, %v2556
        %2558 = vmatprep.mubr.bf16.mxu0 %v547
        %2559 = vmatmul.mubr.bf16.gmra.mrb[0].mxu0 %v546
        %v2560 = vpop.f32.mrb[0].mxu0
        %v2561 = vadd.f32 0.0, %v2560
        %v2562 = vpop.f32.mrb[0].mxu0
        %v2563 = vadd.f32 0.0, %v2562
        %v2564 = vpop.f32.mrb[0].mxu0
        %v2565 = vadd.f32 0.0, %v2564
        %v2566 = vpop.f32.mrb[0].mxu0
        %v2567 = vadd.f32 0.0, %v2566
        %2568 = vdwg.mxu0
        %2569 = vmatprep.subr.bf16.mxu0 %v1439
        %2570 = vmatpush1.bf16.msra.mxu0 %v1438
        %2571 = vmatprep.subr.bf16.mxu0 %v1457
        %2572 = vmatpush1.bf16.msra.mxu0 %v1456
        %2573 = vmatprep.subr.bf16.mxu0 %v1475
        %2574 = vmatpush1.bf16.msra.mxu0 %v1474
        %2575 = vmatprep.subr.bf16.mxu0 %v1493
        %2576 = vmatpush1.bf16.msra.mxu0 %v1492
        %2577 = vmatprep.subr.bf16.mxu0 %v1511
        %2578 = vmatpush1.bf16.msra.mxu0 %v1510
        %2579 = vmatprep.subr.bf16.mxu0 %v1529
        %2580 = vmatpush1.bf16.msra.mxu0 %v1528
        %2581 = vmatprep.subr.bf16.mxu0 %v1547
        %2582 = vmatpush1.bf16.msra.mxu0 %v1546
        %2583 = vmatprep.subr.bf16.mxu0 %v1565
        %2584 = vmatpush1.bf16.msra.mxu0 %v1564
        %2585 = vmatprep.subr.bf16.mxu0 %v1583
        %2586 = vmatpush1.bf16.msra.mxu0 %v1582
        %2587 = vmatprep.subr.bf16.mxu0 %v1601
        %2588 = vmatpush1.bf16.msra.mxu0 %v1600
        %2589 = vmatprep.subr.bf16.mxu0 %v1619
        %2590 = vmatpush1.bf16.msra.mxu0 %v1618
        %2591 = vmatprep.subr.bf16.mxu0 %v1637
        %2592 = vmatpush1.bf16.msra.mxu0 %v1636
        %2593 = vmatprep.subr.bf16.mxu0 %v1655
        %2594 = vmatpush1.bf16.msra.mxu0 %v1654
        %2595 = vmatprep.subr.bf16.mxu0 %v1673
        %2596 = vmatpush1.bf16.msra.mxu0 %v1672
        %2597 = vmatprep.subr.bf16.mxu0 %v1691
        %2598 = vmatpush1.bf16.msra.mxu0 %v1690
        %2599 = vmatprep.subr.bf16.mxu0 %v1709
        %2600 = vmatpush1.bf16.msra.mxu0 %v1708
        %2601 = vmatprep.mubr.bf16.mxu0 %v533
        %2602 = vmatmul.mubr.bf16.gmra.mrb[0].mxu0 %v532
        %v2603 = vpop.f32.mrb[0].mxu0
        %v2604 = vadd.f32 0.0, %v2603
        %v2605 = vpop.f32.mrb[0].mxu0
        %v2606 = vadd.f32 0.0, %v2605
        %v2607 = vpop.f32.mrb[0].mxu0
        %v2608 = vadd.f32 0.0, %v2607
        %v2609 = vpop.f32.mrb[0].mxu0
        %v2610 = vadd.f32 0.0, %v2609
        %2611 = vmatprep.mubr.bf16.mxu0 %v535
        %2612 = vmatmul.mubr.bf16.gmra.mrb[0].mxu0 %v534
        %v2613 = vpop.f32.mrb[0].mxu0
        %v2614 = vadd.f32 0.0, %v2613
        %v2615 = vpop.f32.mrb[0].mxu0
        %v2616 = vadd.f32 0.0, %v2615
        %v2617 = vpop.f32.mrb[0].mxu0
        %v2618 = vadd.f32 0.0, %v2617
        %v2619 = vpop.f32.mrb[0].mxu0
        %v2620 = vadd.f32 0.0, %v2619
        %2621 = vmatprep.mubr.bf16.mxu0 %v537
        %2622 = vmatmul.mubr.bf16.gmra.mrb[0].mxu0 %v536
        %v2623 = vpop.f32.mrb[0].mxu0
        %v2624 = vadd.f32 0.0, %v2623
        %v2625 = vpop.f32.mrb[0].mxu0
        %v2626 = vadd.f32 0.0, %v2625
        %v2627 = vpop.f32.mrb[0].mxu0
        %v2628 = vadd.f32 0.0, %v2627
        %v2629 = vpop.f32.mrb[0].mxu0
        %v2630 = vadd.f32 0.0, %v2629
        %2631 = vmatprep.mubr.bf16.mxu0 %v539
        %2632 = vmatmul.mubr.bf16.gmra.mrb[0].mxu0 %v538
        %v2633 = vpop.f32.mrb[0].mxu0
        %v2634 = vadd.f32 0.0, %v2633
        %v2635 = vpop.f32.mrb[0].mxu0
        %v2636 = vadd.f32 0.0, %v2635
        %v2637 = vpop.f32.mrb[0].mxu0
        %v2638 = vadd.f32 0.0, %v2637
        %v2639 = vpop.f32.mrb[0].mxu0
        %v2640 = vadd.f32 0.0, %v2639
        %2641 = vmatprep.mubr.bf16.mxu0 %v541
        %2642 = vmatmul.mubr.bf16.gmra.mrb[0].mxu0 %v540
        %v2643 = vpop.f32.mrb[0].mxu0
        %v2644 = vadd.f32 0.0, %v2643
        %v2645 = vpop.f32.mrb[0].mxu0
        %v2646 = vadd.f32 0.0, %v2645
        %v2647 = vpop.f32.mrb[0].mxu0
        %v2648 = vadd.f32 0.0, %v2647
        %v2649 = vpop.f32.mrb[0].mxu0
        %v2650 = vadd.f32 0.0, %v2649
        %2651 = vmatprep.mubr.bf16.mxu0 %v543
        %2652 = vmatmul.mubr.bf16.gmra.mrb[0].mxu0 %v542
        %v2653 = vpop.f32.mrb[0].mxu0
        %v2654 = vadd.f32 0.0, %v2653
        %v2655 = vpop.f32.mrb[0].mxu0
        %v2656 = vadd.f32 0.0, %v2655
        %v2657 = vpop.f32.mrb[0].mxu0
        %v2658 = vadd.f32 0.0, %v2657
        %v2659 = vpop.f32.mrb[0].mxu0
        %v2660 = vadd.f32 0.0, %v2659
        %2661 = vmatprep.mubr.bf16.mxu0 %v545
        %2662 = vmatmul.mubr.bf16.gmra.mrb[0].mxu0 %v544
        %v2663 = vpop.f32.mrb[0].mxu0
        %v2664 = vadd.f32 0.0, %v2663
        %v2665 = vpop.f32.mrb[0].mxu0
        %v2666 = vadd.f32 0.0, %v2665
        %v2667 = vpop.f32.mrb[0].mxu0
        %v2668 = vadd.f32 0.0, %v2667
        %v2669 = vpop.f32.mrb[0].mxu0
        %v2670 = vadd.f32 0.0, %v2669
        %2671 = vmatprep.mubr.bf16.mxu0 %v547
        %2672 = vmatmul.mubr.bf16.gmra.mrb[0].mxu0 %v546
        %v2673 = vpop.f32.mrb[0].mxu0
        %v2674 = vadd.f32 0.0, %v2673
        %v2675 = vpop.f32.mrb[0].mxu0
        %v2676 = vadd.f32 0.0, %v2675
        %v2677 = vpop.f32.mrb[0].mxu0
        %v2678 = vadd.f32 0.0, %v2677
        %v2679 = vpop.f32.mrb[0].mxu0
        %v2680 = vadd.f32 0.0, %v2679
        %2681 = vdwg.mxu0
        %2682 = vmatprep.subr.bf16.mxu0 %v1441
        %2683 = vmatpush1.bf16.msra.mxu0 %v1440
        %2684 = vmatprep.subr.bf16.mxu0 %v1459
        %2685 = vmatpush1.bf16.msra.mxu0 %v1458
        %2686 = vmatprep.subr.bf16.mxu0 %v1477
        %2687 = vmatpush1.bf16.msra.mxu0 %v1476
        %2688 = vmatprep.subr.bf16.mxu0 %v1495
        %2689 = vmatpush1.bf16.msra.mxu0 %v1494
        %2690 = vmatprep.subr.bf16.mxu0 %v1513
        %2691 = vmatpush1.bf16.msra.mxu0 %v1512
        %2692 = vmatprep.subr.bf16.mxu0 %v1531
        %2693 = vmatpush1.bf16.msra.mxu0 %v1530
        %2694 = vmatprep.subr.bf16.mxu0 %v1549
        %2695 = vmatpush1.bf16.msra.mxu0 %v1548
        %2696 = vmatprep.subr.bf16.mxu0 %v1567
        %2697 = vmatpush1.bf16.msra.mxu0 %v1566
        %2698 = vmatprep.subr.bf16.mxu0 %v1585
        %2699 = vmatpush1.bf16.msra.mxu0 %v1584
        %2700 = vmatprep.subr.bf16.mxu0 %v1603
        %2701 = vmatpush1.bf16.msra.mxu0 %v1602
        %2702 = vmatprep.subr.bf16.mxu0 %v1621
        %2703 = vmatpush1.bf16.msra.mxu0 %v1620
        %2704 = vmatprep.subr.bf16.mxu0 %v1639
        %2705 = vmatpush1.bf16.msra.mxu0 %v1638
        %2706 = vmatprep.subr.bf16.mxu0 %v1657
        %2707 = vmatpush1.bf16.msra.mxu0 %v1656
        %2708 = vmatprep.subr.bf16.mxu0 %v1675
        %2709 = vmatpush1.bf16.msra.mxu0 %v1674
        %2710 = vmatprep.subr.bf16.mxu0 %v1693
        %2711 = vmatpush1.bf16.msra.mxu0 %v1692
        %2712 = vmatprep.subr.bf16.mxu0 %v1711
        %2713 = vmatpush1.bf16.msra.mxu0 %v1710
        %2714 = vmatprep.mubr.bf16.mxu0 %v533
        %2715 = vmatmul.mubr.bf16.gmra.mrb[0].mxu0 %v532
        %v2716 = vpop.f32.mrb[0].mxu0
        %v2717 = vadd.f32 0.0, %v2716
        %v2718 = vpop.f32.mrb[0].mxu0
        %v2719 = vadd.f32 0.0, %v2718
        %v2720 = vpop.f32.mrb[0].mxu0
        %v2721 = vadd.f32 0.0, %v2720
        %v2722 = vpop.f32.mrb[0].mxu0
        %v2723 = vadd.f32 0.0, %v2722
        %2724 = vmatprep.mubr.bf16.mxu0 %v535
        %2725 = vmatmul.mubr.bf16.gmra.mrb[0].mxu0 %v534
        %v2726 = vpop.f32.mrb[0].mxu0
        %v2727 = vadd.f32 0.0, %v2726
        %v2728 = vpop.f32.mrb[0].mxu0
        %v2729 = vadd.f32 0.0, %v2728
        %v2730 = vpop.f32.mrb[0].mxu0
        %v2731 = vadd.f32 0.0, %v2730
        %v2732 = vpop.f32.mrb[0].mxu0
        %v2733 = vadd.f32 0.0, %v2732
        %2734 = vmatprep.mubr.bf16.mxu0 %v537
        %2735 = vmatmul.mubr.bf16.gmra.mrb[0].mxu0 %v536
        %v2736 = vpop.f32.mrb[0].mxu0
        %v2737 = vadd.f32 0.0, %v2736
        %v2738 = vpop.f32.mrb[0].mxu0
        %v2739 = vadd.f32 0.0, %v2738
        %v2740 = vpop.f32.mrb[0].mxu0
        %v2741 = vadd.f32 0.0, %v2740
        %v2742 = vpop.f32.mrb[0].mxu0
        %v2743 = vadd.f32 0.0, %v2742
        %2744 = vmatprep.mubr.bf16.mxu0 %v539
        %2745 = vmatmul.mubr.bf16.gmra.mrb[0].mxu0 %v538
        %v2746 = vpop.f32.mrb[0].mxu0
        %v2747 = vadd.f32 0.0, %v2746
        %v2748 = vpop.f32.mrb[0].mxu0
        %v2749 = vadd.f32 0.0, %v2748
        %v2750 = vpop.f32.mrb[0].mxu0
        %v2751 = vadd.f32 0.0, %v2750
        %v2752 = vpop.f32.mrb[0].mxu0
        %v2753 = vadd.f32 0.0, %v2752
        %2754 = vmatprep.mubr.bf16.mxu0 %v541
        %2755 = vmatmul.mubr.bf16.gmra.mrb[0].mxu0 %v540
        %v2756 = vpop.f32.mrb[0].mxu0
        %v2757 = vadd.f32 0.0, %v2756
        %v2758 = vpop.f32.mrb[0].mxu0
        %v2759 = vadd.f32 0.0, %v2758
        %v2760 = vpop.f32.mrb[0].mxu0
        %v2761 = vadd.f32 0.0, %v2760
        %v2762 = vpop.f32.mrb[0].mxu0
        %v2763 = vadd.f32 0.0, %v2762
        %2764 = vmatprep.mubr.bf16.mxu0 %v543
        %2765 = vmatmul.mubr.bf16.gmra.mrb[0].mxu0 %v542
        %v2766 = vpop.f32.mrb[0].mxu0
        %v2767 = vadd.f32 0.0, %v2766
        %v2768 = vpop.f32.mrb[0].mxu0
        %v2769 = vadd.f32 0.0, %v2768
        %v2770 = vpop.f32.mrb[0].mxu0
        %v2771 = vadd.f32 0.0, %v2770
        %v2772 = vpop.f32.mrb[0].mxu0
        %v2773 = vadd.f32 0.0, %v2772
        %2774 = vmatprep.mubr.bf16.mxu0 %v545
        %2775 = vmatmul.mubr.bf16.gmra.mrb[0].mxu0 %v544
        %v2776 = vpop.f32.mrb[0].mxu0
        %v2777 = vadd.f32 0.0, %v2776
        %v2778 = vpop.f32.mrb[0].mxu0
        %v2779 = vadd.f32 0.0, %v2778
        %v2780 = vpop.f32.mrb[0].mxu0
        %v2781 = vadd.f32 0.0, %v2780
        %v2782 = vpop.f32.mrb[0].mxu0
        %v2783 = vadd.f32 0.0, %v2782
        %2784 = vmatprep.mubr.bf16.mxu0 %v547
        %2785 = vmatmul.mubr.bf16.gmra.mrb[0].mxu0 %v546
        %v2786 = vpop.f32.mrb[0].mxu0
        %v2787 = vadd.f32 0.0, %v2786
        %v2788 = vpop.f32.mrb[0].mxu0
        %v2789 = vadd.f32 0.0, %v2788
        %v2790 = vpop.f32.mrb[0].mxu0
        %v2791 = vadd.f32 0.0, %v2790
        %v2792 = vpop.f32.mrb[0].mxu0
        %v2793 = vadd.f32 0.0, %v2792
        %2794 = vdwg.mxu0
        %2795 = vmatprep.subr.bf16.mxu0 %v1443
        %2796 = vmatpush1.bf16.msra.mxu0 %v1442
        %2797 = vmatprep.subr.bf16.mxu0 %v1461
        %2798 = vmatpush1.bf16.msra.mxu0 %v1460
        %2799 = vmatprep.subr.bf16.mxu0 %v1479
        %2800 = vmatpush1.bf16.msra.mxu0 %v1478
        %2801 = vmatprep.subr.bf16.mxu0 %v1497
        %2802 = vmatpush1.bf16.msra.mxu0 %v1496
        %2803 = vmatprep.subr.bf16.mxu0 %v1515
        %2804 = vmatpush1.bf16.msra.mxu0 %v1514
        %2805 = vmatprep.subr.bf16.mxu0 %v1533
        %2806 = vmatpush1.bf16.msra.mxu0 %v1532
        %2807 = vmatprep.subr.bf16.mxu0 %v1551
        %2808 = vmatpush1.bf16.msra.mxu0 %v1550
        %2809 = vmatprep.subr.bf16.mxu0 %v1569
        %2810 = vmatpush1.bf16.msra.mxu0 %v1568
        %2811 = vmatprep.subr.bf16.mxu0 %v1587
        %2812 = vmatpush1.bf16.msra.mxu0 %v1586
        %2813 = vmatprep.subr.bf16.mxu0 %v1605
        %2814 = vmatpush1.bf16.msra.mxu0 %v1604
        %2815 = vmatprep.subr.bf16.mxu0 %v1623
        %2816 = vmatpush1.bf16.msra.mxu0 %v1622
        %2817 = vmatprep.subr.bf16.mxu0 %v1641
        %2818 = vmatpush1.bf16.msra.mxu0 %v1640
        %2819 = vmatprep.subr.bf16.mxu0 %v1659
        %2820 = vmatpush1.bf16.msra.mxu0 %v1658
        %2821 = vmatprep.subr.bf16.mxu0 %v1677
        %2822 = vmatpush1.bf16.msra.mxu0 %v1676
        %2823 = vmatprep.subr.bf16.mxu0 %v1695
        %2824 = vmatpush1.bf16.msra.mxu0 %v1694
        %2825 = vmatprep.subr.bf16.mxu0 %v1713
        %2826 = vmatpush1.bf16.msra.mxu0 %v1712
        %2827 = vmatprep.mubr.bf16.mxu0 %v533
        %2828 = vmatmul.mubr.bf16.gmra.mrb[0].mxu0 %v532
        %v2829 = vpop.f32.mrb[0].mxu0
        %v2830 = vadd.f32 0.0, %v2829
        %v2831 = vpop.f32.mrb[0].mxu0
        %v2832 = vadd.f32 0.0, %v2831
        %v2833 = vpop.f32.mrb[0].mxu0
        %v2834 = vadd.f32 0.0, %v2833
        %v2835 = vpop.f32.mrb[0].mxu0
        %v2836 = vadd.f32 0.0, %v2835
        %2837 = vmatprep.mubr.bf16.mxu0 %v535
        %2838 = vmatmul.mubr.bf16.gmra.mrb[0].mxu0 %v534
        %v2839 = vpop.f32.mrb[0].mxu0
        %v2840 = vadd.f32 0.0, %v2839
        %v2841 = vpop.f32.mrb[0].mxu0
        %v2842 = vadd.f32 0.0, %v2841
        %v2843 = vpop.f32.mrb[0].mxu0
        %v2844 = vadd.f32 0.0, %v2843
        %v2845 = vpop.f32.mrb[0].mxu0
        %v2846 = vadd.f32 0.0, %v2845
        %2847 = vmatprep.mubr.bf16.mxu0 %v537
        %2848 = vmatmul.mubr.bf16.gmra.mrb[0].mxu0 %v536
        %v2849 = vpop.f32.mrb[0].mxu0
        %v2850 = vadd.f32 0.0, %v2849
        %v2851 = vpop.f32.mrb[0].mxu0
        %v2852 = vadd.f32 0.0, %v2851
        %v2853 = vpop.f32.mrb[0].mxu0
        %v2854 = vadd.f32 0.0, %v2853
        %v2855 = vpop.f32.mrb[0].mxu0
        %v2856 = vadd.f32 0.0, %v2855
        %2857 = vmatprep.mubr.bf16.mxu0 %v539
        %2858 = vmatmul.mubr.bf16.gmra.mrb[0].mxu0 %v538
        %v2859 = vpop.f32.mrb[0].mxu0
        %v2860 = vadd.f32 0.0, %v2859
        %v2861 = vpop.f32.mrb[0].mxu0
        %v2862 = vadd.f32 0.0, %v2861
        %v2863 = vpop.f32.mrb[0].mxu0
        %v2864 = vadd.f32 0.0, %v2863
        %v2865 = vpop.f32.mrb[0].mxu0
        %v2866 = vadd.f32 0.0, %v2865
        %2867 = vmatprep.mubr.bf16.mxu0 %v541
        %2868 = vmatmul.mubr.bf16.gmra.mrb[0].mxu0 %v540
        %v2869 = vpop.f32.mrb[0].mxu0
        %v2870 = vadd.f32 0.0, %v2869
        %v2871 = vpop.f32.mrb[0].mxu0
        %v2872 = vadd.f32 0.0, %v2871
        %v2873 = vpop.f32.mrb[0].mxu0
        %v2874 = vadd.f32 0.0, %v2873
        %v2875 = vpop.f32.mrb[0].mxu0
        %v2876 = vadd.f32 0.0, %v2875
        %2877 = vmatprep.mubr.bf16.mxu0 %v543
        %2878 = vmatmul.mubr.bf16.gmra.mrb[0].mxu0 %v542
        %v2879 = vpop.f32.mrb[0].mxu0
        %v2880 = vadd.f32 0.0, %v2879
        %v2881 = vpop.f32.mrb[0].mxu0
        %v2882 = vadd.f32 0.0, %v2881
        %v2883 = vpop.f32.mrb[0].mxu0
        %v2884 = vadd.f32 0.0, %v2883
        %v2885 = vpop.f32.mrb[0].mxu0
        %v2886 = vadd.f32 0.0, %v2885
        %2887 = vmatprep.mubr.bf16.mxu0 %v545
        %2888 = vmatmul.mubr.bf16.gmra.mrb[0].mxu0 %v544
        %v2889 = vpop.f32.mrb[0].mxu0
        %v2890 = vadd.f32 0.0, %v2889
        %v2891 = vpop.f32.mrb[0].mxu0
        %v2892 = vadd.f32 0.0, %v2891
        %v2893 = vpop.f32.mrb[0].mxu0
        %v2894 = vadd.f32 0.0, %v2893
        %v2895 = vpop.f32.mrb[0].mxu0
        %v2896 = vadd.f32 0.0, %v2895
        %2897 = vmatprep.mubr.bf16.mxu0 %v547
        %2898 = vmatmul.mubr.bf16.gmra.mrb[0].mxu0 %v546
        %v2899 = vpop.f32.mrb[0].mxu0
        %v2900 = vadd.f32 0.0, %v2899
        %v2901 = vpop.f32.mrb[0].mxu0
        %v2902 = vadd.f32 0.0, %v2901
        %v2903 = vpop.f32.mrb[0].mxu0
        %v2904 = vadd.f32 0.0, %v2903
        %v2905 = vpop.f32.mrb[0].mxu0
        %v2906 = vadd.f32 0.0, %v2905
        %2907 = vdwg.mxu0
        %2908 = vmatprep.subr.bf16.mxu0 %v1445
        %2909 = vmatpush1.bf16.msra.mxu0 %v1444
        %2910 = vmatprep.subr.bf16.mxu0 %v1463
        %2911 = vmatpush1.bf16.msra.mxu0 %v1462
        %2912 = vmatprep.subr.bf16.mxu0 %v1481
        %2913 = vmatpush1.bf16.msra.mxu0 %v1480
        %2914 = vmatprep.subr.bf16.mxu0 %v1499
        %2915 = vmatpush1.bf16.msra.mxu0 %v1498
        %2916 = vmatprep.subr.bf16.mxu0 %v1517
        %2917 = vmatpush1.bf16.msra.mxu0 %v1516
        %2918 = vmatprep.subr.bf16.mxu0 %v1535
        %2919 = vmatpush1.bf16.msra.mxu0 %v1534
        %2920 = vmatprep.subr.bf16.mxu0 %v1553
        %2921 = vmatpush1.bf16.msra.mxu0 %v1552
        %2922 = vmatprep.subr.bf16.mxu0 %v1571
        %2923 = vmatpush1.bf16.msra.mxu0 %v1570
        %2924 = vmatprep.subr.bf16.mxu0 %v1589
        %2925 = vmatpush1.bf16.msra.mxu0 %v1588
        %2926 = vmatprep.subr.bf16.mxu0 %v1607
        %2927 = vmatpush1.bf16.msra.mxu0 %v1606
        %2928 = vmatprep.subr.bf16.mxu0 %v1625
        %2929 = vmatpush1.bf16.msra.mxu0 %v1624
        %2930 = vmatprep.subr.bf16.mxu0 %v1643
        %2931 = vmatpush1.bf16.msra.mxu0 %v1642
        %2932 = vmatprep.subr.bf16.mxu0 %v1661
        %2933 = vmatpush1.bf16.msra.mxu0 %v1660
        %2934 = vmatprep.subr.bf16.mxu0 %v1679
        %2935 = vmatpush1.bf16.msra.mxu0 %v1678
        %2936 = vmatprep.subr.bf16.mxu0 %v1697
        %2937 = vmatpush1.bf16.msra.mxu0 %v1696
        %2938 = vmatprep.subr.bf16.mxu0 %v1715
        %2939 = vmatpush1.bf16.msra.mxu0 %v1714
        %2940 = vmatprep.mubr.bf16.mxu0 %v533
        %2941 = vmatmul.mubr.bf16.gmra.mrb[0].mxu0 %v532
        %v2942 = vpop.f32.mrb[0].mxu0
        %v2943 = vadd.f32 0.0, %v2942
        %v2944 = vpop.f32.mrb[0].mxu0
        %v2945 = vadd.f32 0.0, %v2944
        %v2946 = vpop.f32.mrb[0].mxu0
        %v2947 = vadd.f32 0.0, %v2946
        %v2948 = vpop.f32.mrb[0].mxu0
        %v2949 = vadd.f32 0.0, %v2948
        %2950 = vmatprep.mubr.bf16.mxu0 %v535
        %2951 = vmatmul.mubr.bf16.gmra.mrb[0].mxu0 %v534
        %v2952 = vpop.f32.mrb[0].mxu0
        %v2953 = vadd.f32 0.0, %v2952
        %v2954 = vpop.f32.mrb[0].mxu0
        %v2955 = vadd.f32 0.0, %v2954
        %v2956 = vpop.f32.mrb[0].mxu0
        %v2957 = vadd.f32 0.0, %v2956
        %v2958 = vpop.f32.mrb[0].mxu0
        %v2959 = vadd.f32 0.0, %v2958
        %2960 = vmatprep.mubr.bf16.mxu0 %v537
        %2961 = vmatmul.mubr.bf16.gmra.mrb[0].mxu0 %v536
        %v2962 = vpop.f32.mrb[0].mxu0
        %v2963 = vadd.f32 0.0, %v2962
        %v2964 = vpop.f32.mrb[0].mxu0
        %v2965 = vadd.f32 0.0, %v2964
        %v2966 = vpop.f32.mrb[0].mxu0
        %v2967 = vadd.f32 0.0, %v2966
        %v2968 = vpop.f32.mrb[0].mxu0
        %v2969 = vadd.f32 0.0, %v2968
        %2970 = vmatprep.mubr.bf16.mxu0 %v539
        %2971 = vmatmul.mubr.bf16.gmra.mrb[0].mxu0 %v538
        %v2972 = vpop.f32.mrb[0].mxu0
        %v2973 = vadd.f32 0.0, %v2972
        %v2974 = vpop.f32.mrb[0].mxu0
        %v2975 = vadd.f32 0.0, %v2974
        %v2976 = vpop.f32.mrb[0].mxu0
        %v2977 = vadd.f32 0.0, %v2976
        %v2978 = vpop.f32.mrb[0].mxu0
        %v2979 = vadd.f32 0.0, %v2978
        %2980 = vmatprep.mubr.bf16.mxu0 %v541
        %2981 = vmatmul.mubr.bf16.gmra.mrb[0].mxu0 %v540
        %v2982 = vpop.f32.mrb[0].mxu0
        %v2983 = vadd.f32 0.0, %v2982
        %v2984 = vpop.f32.mrb[0].mxu0
        %v2985 = vadd.f32 0.0, %v2984
        %v2986 = vpop.f32.mrb[0].mxu0
        %v2987 = vadd.f32 0.0, %v2986
        %v2988 = vpop.f32.mrb[0].mxu0
        %v2989 = vadd.f32 0.0, %v2988
        %2990 = vmatprep.mubr.bf16.mxu0 %v543
        %2991 = vmatmul.mubr.bf16.gmra.mrb[0].mxu0 %v542
        %v2992 = vpop.f32.mrb[0].mxu0
        %v2993 = vadd.f32 0.0, %v2992
        %v2994 = vpop.f32.mrb[0].mxu0
        %v2995 = vadd.f32 0.0, %v2994
        %v2996 = vpop.f32.mrb[0].mxu0
        %v2997 = vadd.f32 0.0, %v2996
        %v2998 = vpop.f32.mrb[0].mxu0
        %v2999 = vadd.f32 0.0, %v2998
        %3000 = vmatprep.mubr.bf16.mxu0 %v545
        %3001 = vmatmul.mubr.bf16.gmra.mrb[0].mxu0 %v544
        %v3002 = vpop.f32.mrb[0].mxu0
        %v3003 = vadd.f32 0.0, %v3002
        %v3004 = vpop.f32.mrb[0].mxu0
        %v3005 = vadd.f32 0.0, %v3004
        %v3006 = vpop.f32.mrb[0].mxu0
        %v3007 = vadd.f32 0.0, %v3006
        %v3008 = vpop.f32.mrb[0].mxu0
        %v3009 = vadd.f32 0.0, %v3008
        %3010 = vmatprep.mubr.bf16.mxu0 %v547
        %3011 = vmatmul.mubr.bf16.gmra.mrb[0].mxu0 %v546
        %v3012 = vpop.f32.mrb[0].mxu0
        %v3013 = vadd.f32 0.0, %v3012
        %v3014 = vpop.f32.mrb[0].mxu0
        %v3015 = vadd.f32 0.0, %v3014
        %v3016 = vpop.f32.mrb[0].mxu0
        %v3017 = vadd.f32 0.0, %v3016
        %v3018 = vpop.f32.mrb[0].mxu0
        %v3019 = vadd.f32 0.0, %v3018
        %3020 = vdwg.mxu0
        %v3021 = vpack.c.bf16 %v2043, %v2039
        %v3022 = vpack.c.bf16 %v2045, %v2041
        %v3023 = vpack.c.bf16 %v2156, %v2152
        %v3024 = vpack.c.bf16 %v2158, %v2154
        %v3025 = vpack.c.bf16 %v2269, %v2265
        %v3026 = vpack.c.bf16 %v2271, %v2267
        %v3027 = vpack.c.bf16 %v2382, %v2378
        %v3028 = vpack.c.bf16 %v2384, %v2380
        %v3029 = vpack.c.bf16 %v2495, %v2491
        %v3030 = vpack.c.bf16 %v2497, %v2493
        %v3031 = vpack.c.bf16 %v2608, %v2604
        %v3032 = vpack.c.bf16 %v2610, %v2606
        %v3033 = vpack.c.bf16 %v2721, %v2717
        %v3034 = vpack.c.bf16 %v2723, %v2719
        %v3035 = vpack.c.bf16 %v2834, %v2830
        %v3036 = vpack.c.bf16 %v2836, %v2832
        %v3037 = vpack.c.bf16 %v2947, %v2943
        %v3038 = vpack.c.bf16 %v2949, %v2945
        %v3039 = vpack.c.bf16 %v2053, %v2049
        %v3040 = vpack.c.bf16 %v2055, %v2051
        %v3041 = vpack.c.bf16 %v2166, %v2162
        %v3042 = vpack.c.bf16 %v2168, %v2164
        %v3043 = vpack.c.bf16 %v2279, %v2275
        %v3044 = vpack.c.bf16 %v2281, %v2277
        %v3045 = vpack.c.bf16 %v2392, %v2388
        %v3046 = vpack.c.bf16 %v2394, %v2390
        %v3047 = vpack.c.bf16 %v2505, %v2501
        %v3048 = vpack.c.bf16 %v2507, %v2503
        %v3049 = vpack.c.bf16 %v2618, %v2614
        %v3050 = vpack.c.bf16 %v2620, %v2616
        %v3051 = vpack.c.bf16 %v2731, %v2727
        %v3052 = vpack.c.bf16 %v2733, %v2729
        %v3053 = vpack.c.bf16 %v2844, %v2840
        %v3054 = vpack.c.bf16 %v2846, %v2842
        %v3055 = vpack.c.bf16 %v2957, %v2953
        %v3056 = vpack.c.bf16 %v2959, %v2955
        %v3057 = vpack.c.bf16 %v2063, %v2059
        %v3058 = vpack.c.bf16 %v2065, %v2061
        %v3059 = vpack.c.bf16 %v2176, %v2172
        %v3060 = vpack.c.bf16 %v2178, %v2174
        %v3061 = vpack.c.bf16 %v2289, %v2285
        %v3062 = vpack.c.bf16 %v2291, %v2287
        %v3063 = vpack.c.bf16 %v2402, %v2398
        %v3064 = vpack.c.bf16 %v2404, %v2400
        %v3065 = vpack.c.bf16 %v2515, %v2511
        %v3066 = vpack.c.bf16 %v2517, %v2513
        %v3067 = vpack.c.bf16 %v2628, %v2624
        %v3068 = vpack.c.bf16 %v2630, %v2626
        %v3069 = vpack.c.bf16 %v2741, %v2737
        %v3070 = vpack.c.bf16 %v2743, %v2739
        %v3071 = vpack.c.bf16 %v2854, %v2850
        %v3072 = vpack.c.bf16 %v2856, %v2852
        %v3073 = vpack.c.bf16 %v2967, %v2963
        %v3074 = vpack.c.bf16 %v2969, %v2965
        %v3075 = vpack.c.bf16 %v2073, %v2069
        %v3076 = vpack.c.bf16 %v2075, %v2071
        %v3077 = vpack.c.bf16 %v2186, %v2182
        %v3078 = vpack.c.bf16 %v2188, %v2184
        %v3079 = vpack.c.bf16 %v2299, %v2295
        %v3080 = vpack.c.bf16 %v2301, %v2297
        %v3081 = vpack.c.bf16 %v2412, %v2408
        %v3082 = vpack.c.bf16 %v2414, %v2410
        %v3083 = vpack.c.bf16 %v2525, %v2521
        %v3084 = vpack.c.bf16 %v2527, %v2523
        %v3085 = vpack.c.bf16 %v2638, %v2634
        %v3086 = vpack.c.bf16 %v2640, %v2636
        %v3087 = vpack.c.bf16 %v2751, %v2747
        %v3088 = vpack.c.bf16 %v2753, %v2749
        %v3089 = vpack.c.bf16 %v2864, %v2860
        %v3090 = vpack.c.bf16 %v2866, %v2862
        %v3091 = vpack.c.bf16 %v2977, %v2973
        %v3092 = vpack.c.bf16 %v2979, %v2975
        %v3093 = vpack.c.bf16 %v2083, %v2079
        %v3094 = vpack.c.bf16 %v2085, %v2081
        %v3095 = vpack.c.bf16 %v2196, %v2192
        %v3096 = vpack.c.bf16 %v2198, %v2194
        %v3097 = vpack.c.bf16 %v2309, %v2305
        %v3098 = vpack.c.bf16 %v2311, %v2307
        %v3099 = vpack.c.bf16 %v2422, %v2418
        %v3100 = vpack.c.bf16 %v2424, %v2420
        %v3101 = vpack.c.bf16 %v2535, %v2531
        %v3102 = vpack.c.bf16 %v2537, %v2533
        %v3103 = vpack.c.bf16 %v2648, %v2644
        %v3104 = vpack.c.bf16 %v2650, %v2646
        %v3105 = vpack.c.bf16 %v2761, %v2757
        %v3106 = vpack.c.bf16 %v2763, %v2759
        %v3107 = vpack.c.bf16 %v2874, %v2870
        %v3108 = vpack.c.bf16 %v2876, %v2872
        %v3109 = vpack.c.bf16 %v2987, %v2983
        %v3110 = vpack.c.bf16 %v2989, %v2985
        %v3111 = vpack.c.bf16 %v2093, %v2089
        %v3112 = vpack.c.bf16 %v2095, %v2091
        %v3113 = vpack.c.bf16 %v2206, %v2202
        %v3114 = vpack.c.bf16 %v2208, %v2204
        %v3115 = vpack.c.bf16 %v2319, %v2315
        %v3116 = vpack.c.bf16 %v2321, %v2317
        %v3117 = vpack.c.bf16 %v2432, %v2428
        %v3118 = vpack.c.bf16 %v2434, %v2430
        %v3119 = vpack.c.bf16 %v2545, %v2541
        %v3120 = vpack.c.bf16 %v2547, %v2543
        %v3121 = vpack.c.bf16 %v2658, %v2654
        %v3122 = vpack.c.bf16 %v2660, %v2656
        %v3123 = vpack.c.bf16 %v2771, %v2767
        %v3124 = vpack.c.bf16 %v2773, %v2769
        %v3125 = vpack.c.bf16 %v2884, %v2880
        %v3126 = vpack.c.bf16 %v2886, %v2882
        %v3127 = vpack.c.bf16 %v2997, %v2993
        %v3128 = vpack.c.bf16 %v2999, %v2995
        %v3129 = vpack.c.bf16 %v2103, %v2099
        %v3130 = vpack.c.bf16 %v2105, %v2101
        %v3131 = vpack.c.bf16 %v2216, %v2212
        %v3132 = vpack.c.bf16 %v2218, %v2214
        %v3133 = vpack.c.bf16 %v2329, %v2325
        %v3134 = vpack.c.bf16 %v2331, %v2327
        %v3135 = vpack.c.bf16 %v2442, %v2438
        %v3136 = vpack.c.bf16 %v2444, %v2440
        %v3137 = vpack.c.bf16 %v2555, %v2551
        %v3138 = vpack.c.bf16 %v2557, %v2553
        %v3139 = vpack.c.bf16 %v2668, %v2664
        %v3140 = vpack.c.bf16 %v2670, %v2666
        %v3141 = vpack.c.bf16 %v2781, %v2777
        %v3142 = vpack.c.bf16 %v2783, %v2779
        %v3143 = vpack.c.bf16 %v2894, %v2890
        %v3144 = vpack.c.bf16 %v2896, %v2892
        %v3145 = vpack.c.bf16 %v3007, %v3003
        %v3146 = vpack.c.bf16 %v3009, %v3005
        %v3147 = vpack.c.bf16 %v2113, %v2109
        %v3148 = vpack.c.bf16 %v2115, %v2111
        %v3149 = vpack.c.bf16 %v2226, %v2222
        %v3150 = vpack.c.bf16 %v2228, %v2224
        %v3151 = vpack.c.bf16 %v2339, %v2335
        %v3152 = vpack.c.bf16 %v2341, %v2337
        %v3153 = vpack.c.bf16 %v2452, %v2448
        %v3154 = vpack.c.bf16 %v2454, %v2450
        %v3155 = vpack.c.bf16 %v2565, %v2561
        %v3156 = vpack.c.bf16 %v2567, %v2563
        %v3157 = vpack.c.bf16 %v2678, %v2674
        %v3158 = vpack.c.bf16 %v2680, %v2676
        %v3159 = vpack.c.bf16 %v2791, %v2787
        %v3160 = vpack.c.bf16 %v2793, %v2789
        %v3161 = vpack.c.bf16 %v2904, %v2900
        %v3162 = vpack.c.bf16 %v2906, %v2902
        %v3163 = vpack.c.bf16 %v3017, %v3013
        %v3164 = vpack.c.bf16 %v3019, %v3015
        %v3309 = vunpack.c.l.b16 %v3021
        %v3310 = vunpack.c.l.b16 %v3022
        %v3311 = vunpack.c.l.b16 %v3023
        %v3312 = vunpack.c.l.b16 %v3024
        %v3313 = vunpack.c.l.b16 %v3025
        %v3314 = vunpack.c.l.b16 %v3026
        %v3315 = vunpack.c.l.b16 %v3027
        %v3316 = vunpack.c.l.b16 %v3028
        %v3317 = vunpack.c.l.b16 %v3029
        %v3318 = vunpack.c.l.b16 %v3030
        %v3319 = vunpack.c.l.b16 %v3031
        %v3320 = vunpack.c.l.b16 %v3032
        %v3321 = vunpack.c.l.b16 %v3033
        %v3322 = vunpack.c.l.b16 %v3034
        %v3323 = vunpack.c.l.b16 %v3035
        %v3324 = vunpack.c.l.b16 %v3036
        %v3325 = vunpack.c.l.b16 %v3037
        %v3326 = vunpack.c.l.b16 %v3038
        %v3327 = vunpack.c.h.b16 %v3021
        %v3328 = vunpack.c.h.b16 %v3022
        %v3329 = vunpack.c.h.b16 %v3023
        %v3330 = vunpack.c.h.b16 %v3024
        %v3331 = vunpack.c.h.b16 %v3025
        %v3332 = vunpack.c.h.b16 %v3026
        %v3333 = vunpack.c.h.b16 %v3027
        %v3334 = vunpack.c.h.b16 %v3028
        %v3335 = vunpack.c.h.b16 %v3029
        %v3336 = vunpack.c.h.b16 %v3030
        %v3337 = vunpack.c.h.b16 %v3031
        %v3338 = vunpack.c.h.b16 %v3032
        %v3339 = vunpack.c.h.b16 %v3033
        %v3340 = vunpack.c.h.b16 %v3034
        %v3341 = vunpack.c.h.b16 %v3035
        %v3342 = vunpack.c.h.b16 %v3036
        %v3343 = vunpack.c.h.b16 %v3037
        %v3344 = vunpack.c.h.b16 %v3038
        %v3345 = vunpack.c.l.b16 %v3039
        %v3346 = vunpack.c.l.b16 %v3040
        %v3347 = vunpack.c.l.b16 %v3041
        %v3348 = vunpack.c.l.b16 %v3042
        %v3349 = vunpack.c.l.b16 %v3043
        %v3350 = vunpack.c.l.b16 %v3044
        %v3351 = vunpack.c.l.b16 %v3045
        %v3352 = vunpack.c.l.b16 %v3046
        %v3353 = vunpack.c.l.b16 %v3047
        %v3354 = vunpack.c.l.b16 %v3048
        %v3355 = vunpack.c.l.b16 %v3049
        %v3356 = vunpack.c.l.b16 %v3050
        %v3357 = vunpack.c.l.b16 %v3051
        %v3358 = vunpack.c.l.b16 %v3052
        %v3359 = vunpack.c.l.b16 %v3053
        %v3360 = vunpack.c.l.b16 %v3054
        %v3361 = vunpack.c.l.b16 %v3055
        %v3362 = vunpack.c.l.b16 %v3056
        %v3363 = vunpack.c.h.b16 %v3039
        %v3364 = vunpack.c.h.b16 %v3040
        %v3365 = vunpack.c.h.b16 %v3041
        %v3366 = vunpack.c.h.b16 %v3042
        %v3367 = vunpack.c.h.b16 %v3043
        %v3368 = vunpack.c.h.b16 %v3044
        %v3369 = vunpack.c.h.b16 %v3045
        %v3370 = vunpack.c.h.b16 %v3046
        %v3371 = vunpack.c.h.b16 %v3047
        %v3372 = vunpack.c.h.b16 %v3048
        %v3373 = vunpack.c.h.b16 %v3049
        %v3374 = vunpack.c.h.b16 %v3050
        %v3375 = vunpack.c.h.b16 %v3051
        %v3376 = vunpack.c.h.b16 %v3052
        %v3377 = vunpack.c.h.b16 %v3053
        %v3378 = vunpack.c.h.b16 %v3054
        %v3379 = vunpack.c.h.b16 %v3055
        %v3380 = vunpack.c.h.b16 %v3056
        %v3381 = vunpack.c.l.b16 %v3057
        %v3382 = vunpack.c.l.b16 %v3058
        %v3383 = vunpack.c.l.b16 %v3059
        %v3384 = vunpack.c.l.b16 %v3060
        %v3385 = vunpack.c.l.b16 %v3061
        %v3386 = vunpack.c.l.b16 %v3062
        %v3387 = vunpack.c.l.b16 %v3063
        %v3388 = vunpack.c.l.b16 %v3064
        %v3389 = vunpack.c.l.b16 %v3065
        %v3390 = vunpack.c.l.b16 %v3066
        %v3391 = vunpack.c.l.b16 %v3067
        %v3392 = vunpack.c.l.b16 %v3068
        %v3393 = vunpack.c.l.b16 %v3069
        %v3394 = vunpack.c.l.b16 %v3070
        %v3395 = vunpack.c.l.b16 %v3071
        %v3396 = vunpack.c.l.b16 %v3072
        %v3397 = vunpack.c.l.b16 %v3073
        %v3398 = vunpack.c.l.b16 %v3074
        %v3399 = vunpack.c.h.b16 %v3057
        %v3400 = vunpack.c.h.b16 %v3058
        %v3401 = vunpack.c.h.b16 %v3059
        %v3402 = vunpack.c.h.b16 %v3060
        %v3403 = vunpack.c.h.b16 %v3061
        %v3404 = vunpack.c.h.b16 %v3062
        %v3405 = vunpack.c.h.b16 %v3063
        %v3406 = vunpack.c.h.b16 %v3064
        %v3407 = vunpack.c.h.b16 %v3065
        %v3408 = vunpack.c.h.b16 %v3066
        %v3409 = vunpack.c.h.b16 %v3067
        %v3410 = vunpack.c.h.b16 %v3068
        %v3411 = vunpack.c.h.b16 %v3069
        %v3412 = vunpack.c.h.b16 %v3070
        %v3413 = vunpack.c.h.b16 %v3071
        %v3414 = vunpack.c.h.b16 %v3072
        %v3415 = vunpack.c.h.b16 %v3073
        %v3416 = vunpack.c.h.b16 %v3074
        %v3417 = vunpack.c.l.b16 %v3075
        %v3418 = vunpack.c.l.b16 %v3076
        %v3419 = vunpack.c.l.b16 %v3077
        %v3420 = vunpack.c.l.b16 %v3078
        %v3421 = vunpack.c.l.b16 %v3079
        %v3422 = vunpack.c.l.b16 %v3080
        %v3423 = vunpack.c.l.b16 %v3081
        %v3424 = vunpack.c.l.b16 %v3082
        %v3425 = vunpack.c.l.b16 %v3083
        %v3426 = vunpack.c.l.b16 %v3084
        %v3427 = vunpack.c.l.b16 %v3085
        %v3428 = vunpack.c.l.b16 %v3086
        %v3429 = vunpack.c.l.b16 %v3087
        %v3430 = vunpack.c.l.b16 %v3088
        %v3431 = vunpack.c.l.b16 %v3089
        %v3432 = vunpack.c.l.b16 %v3090
        %v3433 = vunpack.c.l.b16 %v3091
        %v3434 = vunpack.c.l.b16 %v3092
        %v3435 = vunpack.c.h.b16 %v3075
        %v3436 = vunpack.c.h.b16 %v3076
        %v3437 = vunpack.c.h.b16 %v3077
        %v3438 = vunpack.c.h.b16 %v3078
        %v3439 = vunpack.c.h.b16 %v3079
        %v3440 = vunpack.c.h.b16 %v3080
        %v3441 = vunpack.c.h.b16 %v3081
        %v3442 = vunpack.c.h.b16 %v3082
        %v3443 = vunpack.c.h.b16 %v3083
        %v3444 = vunpack.c.h.b16 %v3084
        %v3445 = vunpack.c.h.b16 %v3085
        %v3446 = vunpack.c.h.b16 %v3086
        %v3447 = vunpack.c.h.b16 %v3087
        %v3448 = vunpack.c.h.b16 %v3088
        %v3449 = vunpack.c.h.b16 %v3089
        %v3450 = vunpack.c.h.b16 %v3090
        %v3451 = vunpack.c.h.b16 %v3091
        %v3452 = vunpack.c.h.b16 %v3092
        %v3453 = vunpack.c.l.b16 %v3093
        %v3454 = vunpack.c.l.b16 %v3094
        %v3455 = vunpack.c.l.b16 %v3095
        %v3456 = vunpack.c.l.b16 %v3096
        %v3457 = vunpack.c.l.b16 %v3097
        %v3458 = vunpack.c.l.b16 %v3098
        %v3459 = vunpack.c.l.b16 %v3099
        %v3460 = vunpack.c.l.b16 %v3100
        %v3461 = vunpack.c.l.b16 %v3101
        %v3462 = vunpack.c.l.b16 %v3102
        %v3463 = vunpack.c.l.b16 %v3103
        %v3464 = vunpack.c.l.b16 %v3104
        %v3465 = vunpack.c.l.b16 %v3105
        %v3466 = vunpack.c.l.b16 %v3106
        %v3467 = vunpack.c.l.b16 %v3107
        %v3468 = vunpack.c.l.b16 %v3108
        %v3469 = vunpack.c.l.b16 %v3109
        %v3470 = vunpack.c.l.b16 %v3110
        %v3471 = vunpack.c.h.b16 %v3093
        %v3472 = vunpack.c.h.b16 %v3094
        %v3473 = vunpack.c.h.b16 %v3095
        %v3474 = vunpack.c.h.b16 %v3096
        %v3475 = vunpack.c.h.b16 %v3097
        %v3476 = vunpack.c.h.b16 %v3098
        %v3477 = vunpack.c.h.b16 %v3099
        %v3478 = vunpack.c.h.b16 %v3100
        %v3479 = vunpack.c.h.b16 %v3101
        %v3480 = vunpack.c.h.b16 %v3102
        %v3481 = vunpack.c.h.b16 %v3103
        %v3482 = vunpack.c.h.b16 %v3104
        %v3483 = vunpack.c.h.b16 %v3105
        %v3484 = vunpack.c.h.b16 %v3106
        %v3485 = vunpack.c.h.b16 %v3107
        %v3486 = vunpack.c.h.b16 %v3108
        %v3487 = vunpack.c.h.b16 %v3109
        %v3488 = vunpack.c.h.b16 %v3110
        %v3489 = vunpack.c.l.b16 %v3111
        %v3490 = vunpack.c.l.b16 %v3112
        %v3491 = vunpack.c.l.b16 %v3113
        %v3492 = vunpack.c.l.b16 %v3114
        %v3493 = vunpack.c.l.b16 %v3115
        %v3494 = vunpack.c.l.b16 %v3116
        %v3495 = vunpack.c.l.b16 %v3117
        %v3496 = vunpack.c.l.b16 %v3118
        %v3497 = vunpack.c.l.b16 %v3119
        %v3498 = vunpack.c.l.b16 %v3120
        %v3499 = vunpack.c.l.b16 %v3121
        %v3500 = vunpack.c.l.b16 %v3122
        %v3501 = vunpack.c.l.b16 %v3123
        %v3502 = vunpack.c.l.b16 %v3124
        %v3503 = vunpack.c.l.b16 %v3125
        %v3504 = vunpack.c.l.b16 %v3126
        %v3505 = vunpack.c.l.b16 %v3127
        %v3506 = vunpack.c.l.b16 %v3128
        %v3507 = vunpack.c.h.b16 %v3111
        %v3508 = vunpack.c.h.b16 %v3112
        %v3509 = vunpack.c.h.b16 %v3113
        %v3510 = vunpack.c.h.b16 %v3114
        %v3511 = vunpack.c.h.b16 %v3115
        %v3512 = vunpack.c.h.b16 %v3116
        %v3513 = vunpack.c.h.b16 %v3117
        %v3514 = vunpack.c.h.b16 %v3118
        %v3515 = vunpack.c.h.b16 %v3119
        %v3516 = vunpack.c.h.b16 %v3120
        %v3517 = vunpack.c.h.b16 %v3121
        %v3518 = vunpack.c.h.b16 %v3122
        %v3519 = vunpack.c.h.b16 %v3123
        %v3520 = vunpack.c.h.b16 %v3124
        %v3521 = vunpack.c.h.b16 %v3125
        %v3522 = vunpack.c.h.b16 %v3126
        %v3523 = vunpack.c.h.b16 %v3127
        %v3524 = vunpack.c.h.b16 %v3128
        %v3525 = vunpack.c.l.b16 %v3129
        %v3526 = vunpack.c.l.b16 %v3130
        %v3527 = vunpack.c.l.b16 %v3131
        %v3528 = vunpack.c.l.b16 %v3132
        %v3529 = vunpack.c.l.b16 %v3133
        %v3530 = vunpack.c.l.b16 %v3134
        %v3531 = vunpack.c.l.b16 %v3135
        %v3532 = vunpack.c.l.b16 %v3136
        %v3533 = vunpack.c.l.b16 %v3137
        %v3534 = vunpack.c.l.b16 %v3138
        %v3535 = vunpack.c.l.b16 %v3139
        %v3536 = vunpack.c.l.b16 %v3140
        %v3537 = vunpack.c.l.b16 %v3141
        %v3538 = vunpack.c.l.b16 %v3142
        %v3539 = vunpack.c.l.b16 %v3143
        %v3540 = vunpack.c.l.b16 %v3144
        %v3541 = vunpack.c.l.b16 %v3145
        %v3542 = vunpack.c.l.b16 %v3146
        %v3543 = vunpack.c.h.b16 %v3129
        %v3544 = vunpack.c.h.b16 %v3130
        %v3545 = vunpack.c.h.b16 %v3131
        %v3546 = vunpack.c.h.b16 %v3132
        %v3547 = vunpack.c.h.b16 %v3133
        %v3548 = vunpack.c.h.b16 %v3134
        %v3549 = vunpack.c.h.b16 %v3135
        %v3550 = vunpack.c.h.b16 %v3136
        %v3551 = vunpack.c.h.b16 %v3137
        %v3552 = vunpack.c.h.b16 %v3138
        %v3553 = vunpack.c.h.b16 %v3139
        %v3554 = vunpack.c.h.b16 %v3140
        %v3555 = vunpack.c.h.b16 %v3141
        %v3556 = vunpack.c.h.b16 %v3142
        %v3557 = vunpack.c.h.b16 %v3143
        %v3558 = vunpack.c.h.b16 %v3144
        %v3559 = vunpack.c.h.b16 %v3145
        %v3560 = vunpack.c.h.b16 %v3146
        %v3561 = vunpack.c.l.b16 %v3147
        %v3562 = vunpack.c.l.b16 %v3148
        %v3563 = vunpack.c.l.b16 %v3149
        %v3564 = vunpack.c.l.b16 %v3150
        %v3565 = vunpack.c.l.b16 %v3151
        %v3566 = vunpack.c.l.b16 %v3152
        %v3567 = vunpack.c.l.b16 %v3153
        %v3568 = vunpack.c.l.b16 %v3154
        %v3569 = vunpack.c.l.b16 %v3155
        %v3570 = vunpack.c.l.b16 %v3156
        %v3571 = vunpack.c.l.b16 %v3157
        %v3572 = vunpack.c.l.b16 %v3158
        %v3573 = vunpack.c.l.b16 %v3159
        %v3574 = vunpack.c.l.b16 %v3160
        %v3575 = vunpack.c.l.b16 %v3161
        %v3576 = vunpack.c.l.b16 %v3162
        %v3577 = vunpack.c.l.b16 %v3163
        %v3578 = vunpack.c.l.b16 %v3164
        %v3579 = vunpack.c.h.b16 %v3147
        %v3580 = vunpack.c.h.b16 %v3148
        %v3581 = vunpack.c.h.b16 %v3149
        %v3582 = vunpack.c.h.b16 %v3150
        %v3583 = vunpack.c.h.b16 %v3151
        %v3584 = vunpack.c.h.b16 %v3152
        %v3585 = vunpack.c.h.b16 %v3153
        %v3586 = vunpack.c.h.b16 %v3154
        %v3587 = vunpack.c.h.b16 %v3155
        %v3588 = vunpack.c.h.b16 %v3156
        %v3589 = vunpack.c.h.b16 %v3157
        %v3590 = vunpack.c.h.b16 %v3158
        %v3591 = vunpack.c.h.b16 %v3159
        %v3592 = vunpack.c.h.b16 %v3160
        %v3593 = vunpack.c.h.b16 %v3161
        %v3594 = vunpack.c.h.b16 %v3162
        %v3595 = vunpack.c.h.b16 %v3163
        %v3596 = vunpack.c.h.b16 %v3164
        %v3597 = vpack.c.b16 %v3310, %v3309
        %v3598 = vpack.c.b16 %v3312, %v3311
        %v3599 = vpack.c.b16 %v3314, %v3313
        %v3600 = vpack.c.b16 %v3316, %v3315
        %v3601 = vpack.c.b16 %v3318, %v3317
        %v3602 = vpack.c.b16 %v3320, %v3319
        %v3603 = vpack.c.b16 %v3322, %v3321
        %v3604 = vpack.c.b16 %v3324, %v3323
        %v3605 = vpack.c.b16 %v3326, %v3325
        %v3606 = vpack.c.b16 %v3328, %v3327
        %v3607 = vpack.c.b16 %v3330, %v3329
        %v3608 = vpack.c.b16 %v3332, %v3331
        %v3609 = vpack.c.b16 %v3334, %v3333
        %v3610 = vpack.c.b16 %v3336, %v3335
        %v3611 = vpack.c.b16 %v3338, %v3337
        %v3612 = vpack.c.b16 %v3340, %v3339
        %v3613 = vpack.c.b16 %v3342, %v3341
        %v3614 = vpack.c.b16 %v3344, %v3343
        %v3615 = vpack.c.b16 %v3346, %v3345
        %v3616 = vpack.c.b16 %v3348, %v3347
        %v3617 = vpack.c.b16 %v3350, %v3349
        %v3618 = vpack.c.b16 %v3352, %v3351
        %v3619 = vpack.c.b16 %v3354, %v3353
        %v3620 = vpack.c.b16 %v3356, %v3355
        %v3621 = vpack.c.b16 %v3358, %v3357
        %v3622 = vpack.c.b16 %v3360, %v3359
        %v3623 = vpack.c.b16 %v3362, %v3361
        %v3624 = vpack.c.b16 %v3364, %v3363
        %v3625 = vpack.c.b16 %v3366, %v3365
        %v3626 = vpack.c.b16 %v3368, %v3367
        %v3627 = vpack.c.b16 %v3370, %v3369
        %v3628 = vpack.c.b16 %v3372, %v3371
        %v3629 = vpack.c.b16 %v3374, %v3373
        %v3630 = vpack.c.b16 %v3376, %v3375
        %v3631 = vpack.c.b16 %v3378, %v3377
        %v3632 = vpack.c.b16 %v3380, %v3379
        %v3633 = vpack.c.b16 %v3382, %v3381
        %v3634 = vpack.c.b16 %v3384, %v3383
        %v3635 = vpack.c.b16 %v3386, %v3385
        %v3636 = vpack.c.b16 %v3388, %v3387
        %v3637 = vpack.c.b16 %v3390, %v3389
        %v3638 = vpack.c.b16 %v3392, %v3391
        %v3639 = vpack.c.b16 %v3394, %v3393
        %v3640 = vpack.c.b16 %v3396, %v3395
        %v3641 = vpack.c.b16 %v3398, %v3397
        %v3642 = vpack.c.b16 %v3400, %v3399
        %v3643 = vpack.c.b16 %v3402, %v3401
        %v3644 = vpack.c.b16 %v3404, %v3403
        %v3645 = vpack.c.b16 %v3406, %v3405
        %v3646 = vpack.c.b16 %v3408, %v3407
        %v3647 = vpack.c.b16 %v3410, %v3409
        %v3648 = vpack.c.b16 %v3412, %v3411
        %v3649 = vpack.c.b16 %v3414, %v3413
        %v3650 = vpack.c.b16 %v3416, %v3415
        %v3651 = vpack.c.b16 %v3418, %v3417
        %v3652 = vpack.c.b16 %v3420, %v3419
        %v3653 = vpack.c.b16 %v3422, %v3421
        %v3654 = vpack.c.b16 %v3424, %v3423
        %v3655 = vpack.c.b16 %v3426, %v3425
        %v3656 = vpack.c.b16 %v3428, %v3427
        %v3657 = vpack.c.b16 %v3430, %v3429
        %v3658 = vpack.c.b16 %v3432, %v3431
        %v3659 = vpack.c.b16 %v3434, %v3433
        %v3660 = vpack.c.b16 %v3436, %v3435
        %v3661 = vpack.c.b16 %v3438, %v3437
        %v3662 = vpack.c.b16 %v3440, %v3439
        %v3663 = vpack.c.b16 %v3442, %v3441
        %v3664 = vpack.c.b16 %v3444, %v3443
        %v3665 = vpack.c.b16 %v3446, %v3445
        %v3666 = vpack.c.b16 %v3448, %v3447
        %v3667 = vpack.c.b16 %v3450, %v3449
        %v3668 = vpack.c.b16 %v3452, %v3451
        %v3669 = vpack.c.b16 %v3454, %v3453
        %v3670 = vpack.c.b16 %v3456, %v3455
        %v3671 = vpack.c.b16 %v3458, %v3457
        %v3672 = vpack.c.b16 %v3460, %v3459
        %v3673 = vpack.c.b16 %v3462, %v3461
        %v3674 = vpack.c.b16 %v3464, %v3463
        %v3675 = vpack.c.b16 %v3466, %v3465
        %v3676 = vpack.c.b16 %v3468, %v3467
        %v3677 = vpack.c.b16 %v3470, %v3469
        %v3678 = vpack.c.b16 %v3472, %v3471
        %v3679 = vpack.c.b16 %v3474, %v3473
        %v3680 = vpack.c.b16 %v3476, %v3475
        %v3681 = vpack.c.b16 %v3478, %v3477
        %v3682 = vpack.c.b16 %v3480, %v3479
        %v3683 = vpack.c.b16 %v3482, %v3481
        %v3684 = vpack.c.b16 %v3484, %v3483
        %v3685 = vpack.c.b16 %v3486, %v3485
        %v3686 = vpack.c.b16 %v3488, %v3487
        %v3687 = vpack.c.b16 %v3490, %v3489
        %v3688 = vpack.c.b16 %v3492, %v3491
        %v3689 = vpack.c.b16 %v3494, %v3493
        %v3690 = vpack.c.b16 %v3496, %v3495
        %v3691 = vpack.c.b16 %v3498, %v3497
        %v3692 = vpack.c.b16 %v3500, %v3499
        %v3693 = vpack.c.b16 %v3502, %v3501
        %v3694 = vpack.c.b16 %v3504, %v3503
        %v3695 = vpack.c.b16 %v3506, %v3505
        %v3696 = vpack.c.b16 %v3508, %v3507
        %v3697 = vpack.c.b16 %v3510, %v3509
        %v3698 = vpack.c.b16 %v3512, %v3511
        %v3699 = vpack.c.b16 %v3514, %v3513
        %v3700 = vpack.c.b16 %v3516, %v3515
        %v3701 = vpack.c.b16 %v3518, %v3517
        %v3702 = vpack.c.b16 %v3520, %v3519
        %v3703 = vpack.c.b16 %v3522, %v3521
        %v3704 = vpack.c.b16 %v3524, %v3523
        %v3705 = vpack.c.b16 %v3526, %v3525
        %v3706 = vpack.c.b16 %v3528, %v3527
        %v3707 = vpack.c.b16 %v3530, %v3529
        %v3708 = vpack.c.b16 %v3532, %v3531
        %v3709 = vpack.c.b16 %v3534, %v3533
        %v3710 = vpack.c.b16 %v3536, %v3535
        %v3711 = vpack.c.b16 %v3538, %v3537
        %v3712 = vpack.c.b16 %v3540, %v3539
        %v3713 = vpack.c.b16 %v3542, %v3541
        %v3714 = vpack.c.b16 %v3544, %v3543
        %v3715 = vpack.c.b16 %v3546, %v3545
        %v3716 = vpack.c.b16 %v3548, %v3547
        %v3717 = vpack.c.b16 %v3550, %v3549
        %v3718 = vpack.c.b16 %v3552, %v3551
        %v3719 = vpack.c.b16 %v3554, %v3553
        %v3720 = vpack.c.b16 %v3556, %v3555
        %v3721 = vpack.c.b16 %v3558, %v3557
        %v3722 = vpack.c.b16 %v3560, %v3559
        %v3723 = vpack.c.b16 %v3562, %v3561
        %v3724 = vpack.c.b16 %v3564, %v3563
        %v3725 = vpack.c.b16 %v3566, %v3565
        %v3726 = vpack.c.b16 %v3568, %v3567
        %v3727 = vpack.c.b16 %v3570, %v3569
        %v3728 = vpack.c.b16 %v3572, %v3571
        %v3729 = vpack.c.b16 %v3574, %v3573
        %v3730 = vpack.c.b16 %v3576, %v3575
        %v3731 = vpack.c.b16 %v3578, %v3577
        %v3732 = vpack.c.b16 %v3580, %v3579
        %v3733 = vpack.c.b16 %v3582, %v3581
        %v3734 = vpack.c.b16 %v3584, %v3583
        %v3735 = vpack.c.b16 %v3586, %v3585
        %v3736 = vpack.c.b16 %v3588, %v3587
        %v3737 = vpack.c.b16 %v3590, %v3589
        %v3738 = vpack.c.b16 %v3592, %v3591
        %v3739 = vpack.c.b16 %v3594, %v3593
        %v3740 = vpack.c.b16 %v3596, %v3595
        %3885 = vst [vmem:[%s177] sm:$0xff] %v3597
        %3886 = vst [vmem:[%s177 + $0x8] sm:$0xff] %v3598
        %3887 = vst [vmem:[%s177 + $0x10] sm:$0xff] %v3599
        %3888 = vst [vmem:[%s177 + $0x18] sm:$0xff] %v3600
        %3889 = vst [vmem:[%s177 + $0x20] sm:$0xff] %v3601
        %3890 = vst [vmem:[%s177 + $0x28] sm:$0xff] %v3602
        %3891 = vst [vmem:[%s177 + $0x30] sm:$0xff] %v3603
        %3892 = vst [vmem:[%s177 + $0x38] sm:$0xff] %v3604
        %3893 = vst [vmem:[%s177 + $0x40] sm:$0xff] %v3605
        %3894 = vst [vmem:[%s177 + $0x48] sm:$0xff] %v3606
        %3895 = vst [vmem:[%s177 + $0x50] sm:$0xff] %v3607
        %3896 = vst [vmem:[%s177 + $0x58] sm:$0xff] %v3608
        %3897 = vst [vmem:[%s177 + $0x60] sm:$0xff] %v3609
        %3898 = vst [vmem:[%s177 + $0x68] sm:$0xff] %v3610
        %3899 = vst [vmem:[%s177 + $0x70] sm:$0xff] %v3611
        %3900 = vst [vmem:[%s177 + $0x78] sm:$0xff] %v3612
        %3901 = vst [vmem:[%s177 + $0x80] sm:$0xff] %v3613
        %3902 = vst [vmem:[%s177 + $0x88] sm:$0xff] %v3614
        %3903 = vst [vmem:[%s177 + $0x90] sm:$0xff] %v3615
        %3904 = vst [vmem:[%s177 + $0x98] sm:$0xff] %v3616
        %3905 = vst [vmem:[%s177 + $0xa0] sm:$0xff] %v3617
        %3906 = vst [vmem:[%s177 + $0xa8] sm:$0xff] %v3618
        %3907 = vst [vmem:[%s177 + $0xb0] sm:$0xff] %v3619
        %3908 = vst [vmem:[%s177 + $0xb8] sm:$0xff] %v3620
        %3909 = vst [vmem:[%s177 + $0xc0] sm:$0xff] %v3621
        %3910 = vst [vmem:[%s177 + $0xc8] sm:$0xff] %v3622
        %3911 = vst [vmem:[%s177 + $0xd0] sm:$0xff] %v3623
        %3912 = vst [vmem:[%s177 + $0xd8] sm:$0xff] %v3624
        %3913 = vst [vmem:[%s177 + $0xe0] sm:$0xff] %v3625
        %3914 = vst [vmem:[%s177 + $0xe8] sm:$0xff] %v3626
        %3915 = vst [vmem:[%s177 + $0xf0] sm:$0xff] %v3627
        %3916 = vst [vmem:[%s177 + $0xf8] sm:$0xff] %v3628
        %3917 = vst [vmem:[%s177 + $0x100] sm:$0xff] %v3629
        %3918 = vst [vmem:[%s177 + $0x108] sm:$0xff] %v3630
        %3919 = vst [vmem:[%s177 + $0x110] sm:$0xff] %v3631
        %3920 = vst [vmem:[%s177 + $0x118] sm:$0xff] %v3632
        %3921 = vst [vmem:[%s177 + $0x120] sm:$0xff] %v3633
        %3922 = vst [vmem:[%s177 + $0x128] sm:$0xff] %v3634
        %3923 = vst [vmem:[%s177 + $0x130] sm:$0xff] %v3635
        %3924 = vst [vmem:[%s177 + $0x138] sm:$0xff] %v3636
        %3925 = vst [vmem:[%s177 + $0x140] sm:$0xff] %v3637
        %3926 = vst [vmem:[%s177 + $0x148] sm:$0xff] %v3638
        %3927 = vst [vmem:[%s177 + $0x150] sm:$0xff] %v3639
        %3928 = vst [vmem:[%s177 + $0x158] sm:$0xff] %v3640
        %3929 = vst [vmem:[%s177 + $0x160] sm:$0xff] %v3641
        %3930 = vst [vmem:[%s177 + $0x168] sm:$0xff] %v3642
        %3931 = vst [vmem:[%s177 + $0x170] sm:$0xff] %v3643
        %3932 = vst [vmem:[%s177 + $0x178] sm:$0xff] %v3644
        %3933 = vst [vmem:[%s177 + $0x180] sm:$0xff] %v3645
        %3934 = vst [vmem:[%s177 + $0x188] sm:$0xff] %v3646
        %3935 = vst [vmem:[%s177 + $0x190] sm:$0xff] %v3647
        %3936 = vst [vmem:[%s177 + $0x198] sm:$0xff] %v3648
        %3937 = vst [vmem:[%s177 + $0x1a0] sm:$0xff] %v3649
        %3938 = vst [vmem:[%s177 + $0x1a8] sm:$0xff] %v3650
        %3939 = vst [vmem:[%s177 + $0x1b0] sm:$0xff] %v3651
        %3940 = vst [vmem:[%s177 + $0x1b8] sm:$0xff] %v3652
        %3941 = vst [vmem:[%s177 + $0x1c0] sm:$0xff] %v3653
        %3942 = vst [vmem:[%s177 + $0x1c8] sm:$0xff] %v3654
        %3943 = vst [vmem:[%s177 + $0x1d0] sm:$0xff] %v3655
        %3944 = vst [vmem:[%s177 + $0x1d8] sm:$0xff] %v3656
        %3945 = vst [vmem:[%s177 + $0x1e0] sm:$0xff] %v3657
        %3946 = vst [vmem:[%s177 + $0x1e8] sm:$0xff] %v3658
        %3947 = vst [vmem:[%s177 + $0x1f0] sm:$0xff] %v3659
        %3948 = vst [vmem:[%s177 + $0x1f8] sm:$0xff] %v3660
        %3949 = vst [vmem:[%s177 + $0x200] sm:$0xff] %v3661
        %3950 = vst [vmem:[%s177 + $0x208] sm:$0xff] %v3662
        %3951 = vst [vmem:[%s177 + $0x210] sm:$0xff] %v3663
        %3952 = vst [vmem:[%s177 + $0x218] sm:$0xff] %v3664
        %3953 = vst [vmem:[%s177 + $0x220] sm:$0xff] %v3665
        %3954 = vst [vmem:[%s177 + $0x228] sm:$0xff] %v3666
        %3955 = vst [vmem:[%s177 + $0x230] sm:$0xff] %v3667
        %3956 = vst [vmem:[%s177 + $0x238] sm:$0xff] %v3668
        %3957 = vst [vmem:[%s177 + $0x240] sm:$0xff] %v3669
        %3958 = vst [vmem:[%s177 + $0x248] sm:$0xff] %v3670
        %3959 = vst [vmem:[%s177 + $0x250] sm:$0xff] %v3671
        %3960 = vst [vmem:[%s177 + $0x258] sm:$0xff] %v3672
        %3961 = vst [vmem:[%s177 + $0x260] sm:$0xff] %v3673
        %3962 = vst [vmem:[%s177 + $0x268] sm:$0xff] %v3674
        %3963 = vst [vmem:[%s177 + $0x270] sm:$0xff] %v3675
        %3964 = vst [vmem:[%s177 + $0x278] sm:$0xff] %v3676
        %3965 = vst [vmem:[%s177 + $0x280] sm:$0xff] %v3677
        %3966 = vst [vmem:[%s177 + $0x288] sm:$0xff] %v3678
        %3967 = vst [vmem:[%s177 + $0x290] sm:$0xff] %v3679
        %3968 = vst [vmem:[%s177 + $0x298] sm:$0xff] %v3680
        %3969 = vst [vmem:[%s177 + $0x2a0] sm:$0xff] %v3681
        %3970 = vst [vmem:[%s177 + $0x2a8] sm:$0xff] %v3682
        %3971 = vst [vmem:[%s177 + $0x2b0] sm:$0xff] %v3683
        %3972 = vst [vmem:[%s177 + $0x2b8] sm:$0xff] %v3684
        %3973 = vst [vmem:[%s177 + $0x2c0] sm:$0xff] %v3685
        %3974 = vst [vmem:[%s177 + $0x2c8] sm:$0xff] %v3686
        %3975 = vst [vmem:[%s177 + $0x2d0] sm:$0xff] %v3687
        %3976 = vst [vmem:[%s177 + $0x2d8] sm:$0xff] %v3688
        %3977 = vst [vmem:[%s177 + $0x2e0] sm:$0xff] %v3689
        %3978 = vst [vmem:[%s177 + $0x2e8] sm:$0xff] %v3690
        %3979 = vst [vmem:[%s177 + $0x2f0] sm:$0xff] %v3691
        %3980 = vst [vmem:[%s177 + $0x2f8] sm:$0xff] %v3692
        %3981 = vst [vmem:[%s177 + $0x300] sm:$0xff] %v3693
        %3982 = vst [vmem:[%s177 + $0x308] sm:$0xff] %v3694
        %3983 = vst [vmem:[%s177 + $0x310] sm:$0xff] %v3695
        %3984 = vst [vmem:[%s177 + $0x318] sm:$0xff] %v3696
        %3985 = vst [vmem:[%s177 + $0x320] sm:$0xff] %v3697
        %3986 = vst [vmem:[%s177 + $0x328] sm:$0xff] %v3698
        %3987 = vst [vmem:[%s177 + $0x330] sm:$0xff] %v3699
        %3988 = vst [vmem:[%s177 + $0x338] sm:$0xff] %v3700
        %3989 = vst [vmem:[%s177 + $0x340] sm:$0xff] %v3701
        %3990 = vst [vmem:[%s177 + $0x348] sm:$0xff] %v3702
        %3991 = vst [vmem:[%s177 + $0x350] sm:$0xff] %v3703
        %3992 = vst [vmem:[%s177 + $0x358] sm:$0xff] %v3704
        %3993 = vst [vmem:[%s177 + $0x360] sm:$0xff] %v3705
        %3994 = vst [vmem:[%s177 + $0x368] sm:$0xff] %v3706
        %3995 = vst [vmem:[%s177 + $0x370] sm:$0xff] %v3707
        %3996 = vst [vmem:[%s177 + $0x378] sm:$0xff] %v3708
        %3997 = vst [vmem:[%s177 + $0x380] sm:$0xff] %v3709
        %3998 = vst [vmem:[%s177 + $0x388] sm:$0xff] %v3710
        %3999 = vst [vmem:[%s177 + $0x390] sm:$0xff] %v3711
        %4000 = vst [vmem:[%s177 + $0x398] sm:$0xff] %v3712
        %4001 = vst [vmem:[%s177 + $0x3a0] sm:$0xff] %v3713
        %4002 = vst [vmem:[%s177 + $0x3a8] sm:$0xff] %v3714
        %4003 = vst [vmem:[%s177 + $0x3b0] sm:$0xff] %v3715
        %4004 = vst [vmem:[%s177 + $0x3b8] sm:$0xff] %v3716
        %4005 = vst [vmem:[%s177 + $0x3c0] sm:$0xff] %v3717
        %4006 = vst [vmem:[%s177 + $0x3c8] sm:$0xff] %v3718
        %4007 = vst [vmem:[%s177 + $0x3d0] sm:$0xff] %v3719
        %4008 = vst [vmem:[%s177 + $0x3d8] sm:$0xff] %v3720
        %4009 = vst [vmem:[%s177 + $0x3e0] sm:$0xff] %v3721
        %4010 = vst [vmem:[%s177 + $0x3e8] sm:$0xff] %v3722
        %4011 = vst [vmem:[%s177 + $0x3f0] sm:$0xff] %v3723
        %4012 = vst [vmem:[%s177 + $0x3f8] sm:$0xff] %v3724
        %4013 = vst [vmem:[%s177 + $0x400] sm:$0xff] %v3725
        %4014 = vst [vmem:[%s177 + $0x408] sm:$0xff] %v3726
        %4015 = vst [vmem:[%s177 + $0x410] sm:$0xff] %v3727
        %4016 = vst [vmem:[%s177 + $0x418] sm:$0xff] %v3728
        %4017 = vst [vmem:[%s177 + $0x420] sm:$0xff] %v3729
        %4018 = vst [vmem:[%s177 + $0x428] sm:$0xff] %v3730
        %4019 = vst [vmem:[%s177 + $0x430] sm:$0xff] %v3731
        %4020 = vst [vmem:[%s177 + $0x438] sm:$0xff] %v3732
        %4021 = vst [vmem:[%s177 + $0x440] sm:$0xff] %v3733
        %4022 = vst [vmem:[%s177 + $0x448] sm:$0xff] %v3734
        %4023 = vst [vmem:[%s177 + $0x450] sm:$0xff] %v3735
        %4024 = vst [vmem:[%s177 + $0x458] sm:$0xff] %v3736
        %4025 = vst [vmem:[%s177 + $0x460] sm:$0xff] %v3737
        %4026 = vst [vmem:[%s177 + $0x468] sm:$0xff] %v3738
        %4027 = vst [vmem:[%s177 + $0x470] sm:$0xff] %v3739
        %4028 = vst [vmem:[%s177 + $0x478] sm:$0xff] %v3740
        %s4029 = sand.u32 %s75, 1
        %s4030 = scalar_lea.sflag [#allocation4], %s4029
        %s4031 = sand.u32 %s75, 1
        %s4032 = smul.addr %s4031, 1152
        %s4033 = scalar_lea.vmem [#allocation7], %s4032
        // Predicated region
        $region37: #{tpu_custom_call.1} parent=27 // pred_check
          %p4034 = pneg %p85
        $region38: #{tpu_custom_call.1} parent=27 // pred_check_branch
          %4036 = sbr.rel (%p4034) target = $region40
        $region39: #{tpu_custom_call.1} parent=27 // pred_region
          %s4037 = smul.u32 16, %s20
          %s4039 = ssub.s32 18432, 18432
          %4040 = vsyncadd %s4030, %s4039
          %s4041 = smul.addr %s4037, 18
          %s4042 = smul.addr %s4041, 64
          %s4043 = scalar_lea.hbm %s2, %s4042
          %s4044 = sshll.u32 %s4033, 4
          %s4045 = int_to_ptr.vmem [resolvable:$true] %s4044
          %4050 = dma.vmem_to_hbm [thread:$0]  %s4045, 18432, %s4043, %s4030, 1152, 1152, 72
        $region40: #{tpu_custom_call.1} parent=27 // pred_fallthru
          _
      $region28: #{tpu_custom_call.1} parent=5 // pred_fallthru
        _
      %p4051 = scmp.le.s32.totalorder 2, %s15
      // Predicated region
      $region41: #{tpu_custom_call.1} parent=5 // pred_check
        %p4052 = pneg %p4051
      $region42: #{tpu_custom_call.1} parent=5 // pred_check_branch
        %4054 = sbr.rel (%p4052) target = $region44
      $region43: #{tpu_custom_call.1} parent=5 // pred_region
        %s4055 = ssub.s32 %s15, 2
        // Predicated region
        $region45: #{tpu_custom_call.1} parent=43 // pred_check
          %p4056 = pneg %p91
        $region46: #{tpu_custom_call.1} parent=43 // pred_check_branch
          %4058 = sbr.rel (%p4056) target = $region48
        $region47: #{tpu_custom_call.1} parent=43 // pred_region
          %s4059 = sand.u32 %s76, 1
          %s4060 = scalar_lea.sflag [#allocation4], %s4059
          %s4061 = sand.u32 %s76, 1
          %s4062 = smul.addr %s4061, 1152
          %s4063 = scalar_lea.vmem [#allocation7], %s4062
          %4064 = dma.done %s4060, 18432
        $region48: #{tpu_custom_call.1} parent=43 // pred_fallthru
          _
      $region44: #{tpu_custom_call.1} parent=5 // pred_fallthru
        _
    $region6: #{tpu_custom_call.1} parent=1 // loop_footer
      %s19 = sadd.s32 1, %s15
    $region7: #{tpu_custom_call.1} parent=1 // loop_footer_branch
      %14 = sbr.rel target = $region3
    $region8: #{tpu_custom_call.1} parent=1 // loop_exit
      _
    %4065 = vsyncpa [#allocation3], 1
    %s4066 = scalar_lea.sflag [#allocation3], 1
    %4067 = vsyncpa %s4066, 1
    %4068 = vsyncpa [#allocation6], 1
    %4069 = vsyncpa [#allocation4], 1
    %s4070 = scalar_lea.sflag [#allocation4], 1
    %4071 = vsyncpa %s4070, 1

</llo_original>
